<compile_context>
chip_gen: v6e
topology: v6e:2x2x1
jax: 0.10.0
libtpu: 0.0.40
codegen_flags: <defaults>
</compile_context>

<pallas_src>
import jax
import jax.numpy as jnp
from jax.experimental import pallas as pl
from jax.experimental.pallas import tpu as pltpu

BN_EPS = 1e-5
USE_BF16_MATMUL = True      # bf16 MXU operands, f32 accumulation

_FUSED_TILE_CAP = 512       # max rows processed per grid step in the fused path
_FUSED_X_BUDGET = 8 << 20   # keep x[0] resident in VMEM only below this size


def _round_up(n, m):
    return (n + m - 1) // m * m


def _vmem_budget():
    """Half of physical VMEM (~64 MiB on v5e/v6e, ~32 MiB on v7x)."""
    try:
        phys = pltpu.get_tpu_info().vmem_capacity_bytes
    except Exception:
        phys = 64 << 20     # v7x-safe assumption if the query is unavailable
    return min(phys // 2, 64 << 20)


def _bn_relu_mlp(x, scale, shift, w1, b1, w2, b2, out_dtype):
    """BN affine + ReLU -> Linear(2D,Dp) + ReLU -> Linear(Dp,Dp).

    Elementwise math stays f32 on the VPU; matmuls feed the MXU in the stored
    weight dtype (bf16) with f32 accumulation.
    """
    y = jnp.maximum(x * scale + shift, 0.0)
    mm = w1.dtype
    h = jnp.dot(y.astype(mm), w1, preferred_element_type=jnp.float32) + b1
    h = jnp.maximum(h, 0.0)
    out = jnp.dot(h.astype(mm), w2, preferred_element_type=jnp.float32) + b2
    return out.astype(out_dtype)


def _fused_kernel(x_ref, bn_ref, w1_ref, w2_ref, bias_ref, o_ref, ss_ref):
    """Single-HBM-read path: full x[0] block resident in VMEM.

    Grid step 0 computes full-batch BN stats into ss_ref; every step then
    slices one batch tile out of the resident block and runs the fused MLP.
    """
    i = pl.program_id(0)
    tile_b = o_ref.shape[0]

    @pl.when(i == 0)
    def _():
        x = x_ref[...].astype(jnp.float32)                       # (B, 2D)
        inv_n = 1.0 / x.shape[0]
        mean = jnp.sum(x, axis=0, keepdims=True) * inv_n
        # biased variance, like PyTorch BatchNorm1d train-mode normalization
        var = jnp.sum(jnp.square(x - mean), axis=0, keepdims=True) * inv_n
        scale = bn_ref[0:1, :] * jax.lax.rsqrt(var + BN_EPS)
        ss_ref[0:1, :] = scale
        ss_ref[1:2, :] = bn_ref[1:2, :] - mean * scale

    r0 = pl.multiple_of(i * tile_b, tile_b)
    x_t = x_ref[pl.ds(r0, tile_b), :].astype(jnp.float32)
    o_ref[...] = _bn_relu_mlp(x_t, ss_ref[0:1, :], ss_ref[1:2, :],
                              w1_ref[...], bias_ref[0:1, :],
                              w2_ref[...], bias_ref[1:2, :], o_ref.dtype)


def _tiled_kernel(x_ref, ss_ref, w1_ref, w2_ref, bias_ref, o_ref):
    """Two-pass path: BN scale/shift precomputed in the wrapper; batch tiles
    are independent so the grid axis is 'parallel' (megacore sharding)."""
    x = x_ref[...].astype(jnp.float32)
    o_ref[...] = _bn_relu_mlp(x, ss_ref[0:1, :], ss_ref[1:2, :],
                              w1_ref[...], bias_ref[0:1, :],
                              w2_ref[...], bias_ref[1:2, :], o_ref.dtype)


def _fused_tile(B, cap=_FUSED_TILE_CAP):
    """Largest multiple-of-8 divisor of B that is <= cap (else B itself)."""
    t = min(B, cap)
    t -= t % 8
    while t >= 8:
        if B % t == 0:
            return t
        t -= 8
    return B


def _tiled_tile(B, twoD, Dp, budget, const_bytes):
    """Largest multiple-of-8 divisor of B whose double-buffered x/out tiles fit
    the VMEM budget left after the (double-buffered) constants, preferring
    grid >= 2 so v7x's two TensorCores both get work."""
    per_row = 2 * twoD * 4 + 2 * Dp * 4          # double-buffered x + out rows (f32)
    cap = max(8, (budget - const_bytes) // per_row)
    fallback = None
    t = min(B, cap)
    t -= t % 8
    while t >= 8:
        if B % t == 0:
            if B // t >= 2:
                return t
            if fallback is None:
                fallback = t                     # fits but grid == 1
        t -= 8
    return fallback if fallback is not None else B


def linear_mapping(x, params, *, use_bf16_matmul=USE_BF16_MATMUL,
                   force_two_pass=False):
    """Forward pass.  x: (2, B, 2*D) stack; only x[0] is used (like the module)."""
    gamma, beta, w1, b1, w2, b2 = params
    _, B, twoD = x.shape
    D = w1.shape[1]
    Dp = _round_up(D, 128)                       # lane-dense output (unmasked vst)
    mm_dtype = jnp.bfloat16 if use_bf16_matmul else jnp.float32
    mm_bytes = 2 if use_bf16_matmul else 4

    # Zero-pad the output feature dim so every store is full-lane; padded
    # columns are sliced off after the call (no-op when D % 128 == 0).
    pc = Dp - D
    w1p = jnp.pad(w1, ((0, 0), (0, pc))).astype(mm_dtype)                  # (2D, Dp)
    w2p = jnp.pad(w2, ((0, pc), (0, pc))).astype(mm_dtype)                 # (Dp, Dp)
    bias = jnp.pad(jnp.concatenate([b1, b2], axis=0), ((0, 0), (0, pc)))   # (2, Dp)

    budget = _vmem_budget()
    # Constant blocks are conservatively counted double-buffered (default
    # pipelining).  (pl.Buffered(1) on these specs would halve this further.)
    const_bytes = 2 * (twoD * Dp * mm_bytes + Dp * Dp * mm_bytes
                       + 2 * twoD * 4 + 2 * Dp * 4)

    cost = pl.CostEstimate(
        flops=2 * B * Dp * (twoD + Dp),
        transcendentals=0,
        bytes_accessed=B * twoD * 4 + B * Dp * 4 + const_bytes // 2)

    const = lambda shape: pl.BlockSpec(shape, lambda i: (0,) * len(shape))

    x_bytes = B * twoD * 4
    fused = (not force_two_pass) and x_bytes <= min(_FUSED_X_BUDGET, budget // 4)

    if fused:
        # ---- Single-read path: x[0] DMA'd from HBM exactly once.
        tile_b = _fused_tile(B)
        grid = (B // tile_b,)
        bn = jnp.concatenate([gamma, beta], axis=0)                        # (2, 2D)
        out_p = pl.pallas_call(
            _fused_kernel,
            out_shape=jax.ShapeDtypeStruct((B, Dp), x.dtype),
            grid=grid,
            in_specs=[
                # Full (2, B, 2D) stack; leading dim squeezed at block index 0
                # (== x[0]); constant index_map => fetched once, stays resident.
                pl.BlockSpec((pl.Squeezed(), B, twoD), lambda i: (0, 0, 0)),
                const((2, twoD)),     # [gamma; beta]
                const((twoD, Dp)),    # W1
                const((Dp, Dp)),      # W2
                const((2, Dp)),       # [b1; b2]
            ],
            out_specs=pl.BlockSpec((tile_b, Dp), lambda i: (i, 0)),
            scratch_shapes=[pltpu.VMEM((2, twoD), jnp.float32)],   # [scale; shift]
            compiler_params=pltpu.CompilerParams(
                dimension_semantics=("arbitrary",),  # step-0 scratch feeds later steps
                vmem_limit_bytes=budget),
            cost_estimate=cost,
        )(x, bn, w1p, w2p, bias)
    else:
        # ---- Two-pass path for large batches: full-batch BN stats via one XLA
        # reduction (semantics require full-batch stats, so they cannot be
        # computed per tile), then a "parallel" batch-tiled kernel.
        x0 = x[0].astype(jnp.float32)
        mean = jnp.mean(x0, axis=0, keepdims=True)
        var = jnp.mean(jnp.square(x0 - mean), axis=0, keepdims=True)  # biased
        scale = gamma * jax.lax.rsqrt(var + BN_EPS)
        ss = jnp.concatenate([scale, beta - mean * scale], axis=0)    # (2, 2D)

        tile_b = _tiled_tile(B, twoD, Dp, budget, const_bytes)
        grid = (B // tile_b,)
        out_p = pl.pallas_call(
            _tiled_kernel,
            out_shape=jax.ShapeDtypeStruct((B, Dp), x.dtype),
            grid=grid,
            in_specs=[
                pl.BlockSpec((pl.Squeezed(), tile_b, twoD), lambda i: (0, i, 0)),
                const((2, twoD)),     # [scale; shift]
                const((twoD, Dp)),    # W1
                const((Dp, Dp)),      # W2
                const((2, Dp)),       # [b1; b2]
            ],
            out_specs=pl.BlockSpec((tile_b, Dp), lambda i: (i, 0)),
            compiler_params=pltpu.CompilerParams(
                dimension_semantics=("parallel",),   # shard batch tiles across TCs
                vmem_limit_bytes=budget),
            cost_estimate=cost,
        )(x, ss, w1p, w2p, bias)

    return out_p if Dp == D else out_p[:, :D]


def init_params(key, image_embed_dim):
    """Deterministic synthetic parameters matching the PyTorch shapes/init."""
    D = image_embed_dim
    twoD = 2 * D
    k1, k2, k3, k4 = jax.random.split(key, 4)
    gamma = jnp.ones((1, twoD), jnp.float32)      # BatchNorm1d init: gamma=1, beta=0
    beta = jnp.zeros((1, twoD), jnp.float32)
    lim1 = 1.0 / (twoD ** 0.5)
    w1 = jax.random.uniform(k1, (twoD, D), jnp.float32, -lim1, lim1)
    b1 = jax.random.uniform(k2, (1, D), jnp.float32, -lim1, lim1)
    lim2 = 1.0 / (D ** 0.5)
    w2 = jax.random.uniform(k3, (D, D), jnp.float32, -lim2, lim2)
    b2 = jax.random.uniform(k4, (1, D), jnp.float32, -lim2, lim2)
    return gamma, beta, w1, b1, w2, b2


def _reference(x, params):
    """Pure-JAX f32 reference mirroring the PyTorch forward (train-mode BN)."""
    gamma, beta, w1, b1, w2, b2 = params
    x0 = x[0].astype(jnp.float32)
    mean = jnp.mean(x0, axis=0, keepdims=True)
    var = jnp.mean((x0 - mean) ** 2, axis=0, keepdims=True)
    y = (x0 - mean) / jnp.sqrt(var + BN_EPS) * gamma + beta
    y = jnp.maximum(y, 0.0)
    h = jnp.maximum(y @ w1 + b1, 0.0)
    return h @ w2 + b2


if __name__ == "__main__":
    image_embed_dim = 128   # D=128 -> lane-dense output; 2D=256
    batch = 1024            # fused path: x[0] (1 MiB) resident, grid of 2 x 512-row tiles

    key = jax.random.PRNGKey(0)
    kx, kp = jax.random.split(key)

    # x[0] and x[1] are "two image embeddings" stacked; the module uses x[0].
    x = jax.random.normal(kx, (2, batch, 2 * image_embed_dim), jnp.float32)
    params = init_params(kp, image_embed_dim)

    ref = _reference(x, params)
    # bf16 MXU operands (f32 accumulation) -> tolerance loosened vs pure f32.
    tol = 2e-2 if USE_BF16_MATMUL else 1e-4

    # Default (fused single-HBM-read) path.
    out = jax.block_until_ready(linear_mapping(x, params))
    assert out.shape == (batch, image_embed_dim)
    assert jnp.allclose(out, ref, atol=tol, rtol=tol), "fused kernel mismatch vs reference"

    # Large-batch fallback path (forced here to exercise/validate it too).
    out2 = jax.block_until_ready(linear_mapping(x, params, force_two_pass=True))
    assert jnp.allclose(out2, ref, atol=tol, rtol=tol), "two-pass kernel mismatch vs reference"

    print("KERNEL_OK")
</pallas_src>

<mosaic_0001>
module attributes {stable_mosaic.version = 11 : i64} {
  func.func @_fused_kernel(%arg0: i32, %arg1: memref<1x1024x256xf32, #tpu.memory_space<vmem>>, %arg2: memref<2x256xf32, #tpu.memory_space<vmem>>, %arg3: memref<256x128xbf16, #tpu.memory_space<vmem>>, %arg4: memref<128x128xbf16, #tpu.memory_space<vmem>>, %arg5: memref<2x128xf32, #tpu.memory_space<vmem>>, %arg6: memref<512x128xf32, #tpu.memory_space<vmem>>, %arg7: memref<2x256xf32, #tpu.memory_space<vmem>>) attributes {dimension_semantics = [#tpu.dimension_semantics<arbitrary>], iteration_bounds = array<i64: 2>, scalar_prefetch = 0 : i64, scratch_operands = 1 : i64, tpu.core_type = #tpu.core_type<tc>, window_params = [{transform_indices = @transform_0, window_bounds = array<i64: 1, 1024, 256>}, {pipeline_mode = #tpu.pipeline_mode<synchronous>, transform_indices = @transform_1, window_bounds = array<i64: 2, 256>}, {pipeline_mode = #tpu.pipeline_mode<synchronous>, transform_indices = @transform_2, window_bounds = array<i64: 256, 128>}, {pipeline_mode = #tpu.pipeline_mode<synchronous>, transform_indices = @transform_3, window_bounds = array<i64: 128, 128>}, {pipeline_mode = #tpu.pipeline_mode<synchronous>, transform_indices = @transform_4, window_bounds = array<i64: 2, 128>}, {transform_indices = @transform_5, window_bounds = array<i64: 512, 128>}]} {
    %c0_i32 = arith.constant 0 : i32
    %0 = arith.cmpi eq, %arg0, %c0_i32 : i32
    %1 = arith.extui %0 : i1 to i32
    %c0_i32_0 = arith.constant 0 : i32
    %2 = arith.cmpi ne, %1, %c0_i32_0 : i32
    scf.if %2 {
      %c0_18 = arith.constant 0 : index
      %c0_19 = arith.constant 0 : index
      %c0_20 = arith.constant 0 : index
      %31 = vector.load %arg1[%c0_18, %c0_19, %c0_20] : memref<1x1024x256xf32, #tpu.memory_space<vmem>>, vector<1x1024x256xf32>
      %32 = vector.shape_cast %31 : vector<1x1024x256xf32> to vector<1024x256xf32>
      %cst_21 = arith.constant dense<0.000000e+00> : vector<256xf32>
      %33 = vector.multi_reduction <add>, %32, %cst_21 [0] : vector<1024x256xf32> to vector<256xf32>
      %34 = vector.shape_cast %33 : vector<256xf32> to vector<1x256xf32>
      %cst_22 = arith.constant 9.765625E-4 : f32
      %35 = vector.broadcast %cst_22 : f32 to vector<1x256xf32>
      %36 = arith.mulf %34, %35 : vector<1x256xf32>
      %37 = vector.broadcast %36 : vector<1x256xf32> to vector<1024x256xf32>
      %38 = arith.subf %32, %37 : vector<1024x256xf32>
      %39 = arith.mulf %38, %38 : vector<1024x256xf32>
      %cst_23 = arith.constant dense<0.000000e+00> : vector<256xf32>
      %40 = vector.multi_reduction <add>, %39, %cst_23 [0] : vector<1024x256xf32> to vector<256xf32>
      %41 = vector.shape_cast %40 : vector<256xf32> to vector<1x256xf32>
      %cst_24 = arith.constant 9.765625E-4 : f32
      %42 = vector.broadcast %cst_24 : f32 to vector<1x256xf32>
      %43 = arith.mulf %41, %42 : vector<1x256xf32>
      %c0_25 = arith.constant 0 : index
      %c0_26 = arith.constant 0 : index
      %44 = vector.load %arg2[%c0_25, %c0_26] : memref<2x256xf32, #tpu.memory_space<vmem>>, vector<1x256xf32>
      %cst_27 = arith.constant 9.99999974E-6 : f32
      %45 = vector.broadcast %cst_27 : f32 to vector<1x256xf32>
      %46 = arith.addf %43, %45 : vector<1x256xf32>
      %47 = math.rsqrt %46 : vector<1x256xf32>
      %48 = arith.mulf %44, %47 : vector<1x256xf32>
      %c0_28 = arith.constant 0 : index
      %c0_29 = arith.constant 0 : index
      %49 = vector.load %arg7[%c0_28, %c0_29] : memref<2x256xf32, #tpu.memory_space<vmem>>, vector<1x256xf32>
      tpu.vector_store %arg7[%c0_28, %c0_29], %48 {strides = array<i32>} : memref<2x256xf32, #tpu.memory_space<vmem>>, vector<1x256xf32>,
      %c1_30 = arith.constant 1 : index
      %c0_31 = arith.constant 0 : index
      %50 = vector.load %arg2[%c1_30, %c0_31] : memref<2x256xf32, #tpu.memory_space<vmem>>, vector<1x256xf32>
      %51 = arith.mulf %36, %48 : vector<1x256xf32>
      %52 = arith.subf %50, %51 : vector<1x256xf32>
      %c1_32 = arith.constant 1 : index
      %c0_33 = arith.constant 0 : index
      %53 = vector.load %arg7[%c1_32, %c0_33] : memref<2x256xf32, #tpu.memory_space<vmem>>, vector<1x256xf32>
      tpu.vector_store %arg7[%c1_32, %c0_33], %52 {strides = array<i32>} : memref<2x256xf32, #tpu.memory_space<vmem>>, vector<1x256xf32>,
    } else {
    }
    %c512_i32 = arith.constant 512 : i32
    %3 = arith.muli %arg0, %c512_i32 : i32
    %4 = tpu.assume_multiple %3, 512 : i32
    %c0 = arith.constant 0 : index
    %5 = arith.index_cast %4 : i32 to index
    %c0_1 = arith.constant 0 : index
    %6 = vector.load %arg1[%c0, %5, %c0_1] : memref<1x1024x256xf32, #tpu.memory_space<vmem>>, vector<1x512x256xf32>
    %7 = vector.shape_cast %6 : vector<1x512x256xf32> to vector<512x256xf32>
    %c0_2 = arith.constant 0 : index
    %c0_3 = arith.constant 0 : index
    %8 = vector.load %arg7[%c0_2, %c0_3] : memref<2x256xf32, #tpu.memory_space<vmem>>, vector<1x256xf32>
    %c1 = arith.constant 1 : index
    %c0_4 = arith.constant 0 : index
    %9 = vector.load %arg7[%c1, %c0_4] : memref<2x256xf32, #tpu.memory_space<vmem>>, vector<1x256xf32>
    %c0_5 = arith.constant 0 : index
    %c0_6 = arith.constant 0 : index
    %10 = vector.load %arg3[%c0_5, %c0_6] : memref<256x128xbf16, #tpu.memory_space<vmem>>, vector<256x128xbf16>
    %c0_7 = arith.constant 0 : index
    %c0_8 = arith.constant 0 : index
    %11 = vector.load %arg5[%c0_7, %c0_8] : memref<2x128xf32, #tpu.memory_space<vmem>>, vector<1x128xf32>
    %c0_9 = arith.constant 0 : index
    %c0_10 = arith.constant 0 : index
    %12 = vector.load %arg4[%c0_9, %c0_10] : memref<128x128xbf16, #tpu.memory_space<vmem>>, vector<128x128xbf16>
    %c1_11 = arith.constant 1 : index
    %c0_12 = arith.constant 0 : index
    %13 = vector.load %arg5[%c1_11, %c0_12] : memref<2x128xf32, #tpu.memory_space<vmem>>, vector<1x128xf32>
    %14 = vector.broadcast %8 : vector<1x256xf32> to vector<512x256xf32>
    %15 = arith.mulf %7, %14 : vector<512x256xf32>
    %16 = vector.broadcast %9 : vector<1x256xf32> to vector<512x256xf32>
    %17 = arith.addf %15, %16 : vector<512x256xf32>
    %cst = arith.constant 0.000000e+00 : f32
    %18 = vector.broadcast %cst : f32 to vector<512x256xf32>
    %19 = arith.maximumf %17, %18 : vector<512x256xf32>
    %20 = arith.truncf %19 : vector<512x256xf32> to vector<512x256xbf16>
    %cst_13 = arith.constant dense<0.000000e+00> : vector<512x128xf32>
    %21 = tpu.matmul %20, %10, %cst_13 {dimension_numbers = #tpu.dot_dimension_numbers<[1], [0], [0], [1], [0, 0, 1, 1], [], []>} : vector<512x256xbf16>, vector<256x128xbf16>, vector<512x128xf32> -> vector<512x128xf32>
    %22 = vector.broadcast %11 : vector<1x128xf32> to vector<512x128xf32>
    %23 = arith.addf %21, %22 : vector<512x128xf32>
    %cst_14 = arith.constant 0.000000e+00 : f32
    %24 = vector.broadcast %cst_14 : f32 to vector<512x128xf32>
    %25 = arith.maximumf %23, %24 : vector<512x128xf32>
    %26 = arith.truncf %25 : vector<512x128xf32> to vector<512x128xbf16>
    %cst_15 = arith.constant dense<0.000000e+00> : vector<512x128xf32>
    %27 = tpu.matmul %26, %12, %cst_15 {dimension_numbers = #tpu.dot_dimension_numbers<[1], [0], [0], [1], [0, 0, 1, 1], [], []>} : vector<512x128xbf16>, vector<128x128xbf16>, vector<512x128xf32> -> vector<512x128xf32>
    %28 = vector.broadcast %13 : vector<1x128xf32> to vector<512x128xf32>
    %29 = arith.addf %27, %28 : vector<512x128xf32>
    %c0_16 = arith.constant 0 : index
    %c0_17 = arith.constant 0 : index
    %30 = vector.load %arg6[%c0_16, %c0_17] : memref<512x128xf32, #tpu.memory_space<vmem>>, vector<512x128xf32>
    tpu.vector_store %arg6[%c0_16, %c0_17], %29 {strides = array<i32>} : memref<512x128xf32, #tpu.memory_space<vmem>>, vector<512x128xf32>,
    return
  }
  func.func @transform_0(%arg0: i32) -> (i32, i32, i32) {
    %c0_i32 = arith.constant 0 : i32
    %c0_i32_0 = arith.constant 0 : i32
    %c0_i32_1 = arith.constant 0 : i32
    %c0_i32_2 = arith.constant 0 : i32
    return %c0_i32, %c0_i32_0, %c0_i32_1 : i32, i32, i32
  }
  func.func @transform_1(%arg0: i32) -> (i32, i32) {
    %c0_i32 = arith.constant 0 : i32
    %c0_i32_0 = arith.constant 0 : i32
    %c0_i32_1 = arith.constant 0 : i32
    return %c0_i32, %c0_i32_0 : i32, i32
  }
  func.func @transform_2(%arg0: i32) -> (i32, i32) {
    %c0_i32 = arith.constant 0 : i32
    %c0_i32_0 = arith.constant 0 : i32
    %c0_i32_1 = arith.constant 0 : i32
    return %c0_i32, %c0_i32_0 : i32, i32
  }
  func.func @transform_3(%arg0: i32) -> (i32, i32) {
    %c0_i32 = arith.constant 0 : i32
    %c0_i32_0 = arith.constant 0 : i32
    %c0_i32_1 = arith.constant 0 : i32
    return %c0_i32, %c0_i32_0 : i32, i32
  }
  func.func @transform_4(%arg0: i32) -> (i32, i32) {
    %c0_i32 = arith.constant 0 : i32
    %c0_i32_0 = arith.constant 0 : i32
    %c0_i32_1 = arith.constant 0 : i32
    return %c0_i32, %c0_i32_0 : i32, i32
  }
  func.func @transform_5(%arg0: i32) -> (i32, i32) {
    %c0_i32 = arith.constant 0 : i32
    %c0_i32_0 = arith.constant 0 : i32
    return %arg0, %c0_i32 : i32, i32
  }
}

</mosaic_0001>

<llo_original>
// kernel: tpu_custom_call.1
$region0: #{tpu_custom_call.1}
  #allocation0 [shape = 'u32[]', space=smem, size = 0x4, offset = 0x4, fixed_abs, tag = 'smem constant byte address 0x4 - core index']
  #allocation1 [shape = 'u32[144,128]{1,0:T(1,128)}', space=vmem, size = 0x12000, scoped, tag = 'internal scratch']
  #allocation2 [shape = 'f32[2,256]{1,0:T(2,128)}', space=vmem, size = 0x800, scoped, tag = 'scratch operand']
  %s0 = inlined_call_operand.hbm [shape: f32[2,1024,256], index: 0, kind: input, shape index: {}]
  %s1 = inlined_call_operand.hbm [shape: f32[2,256], index: 1, kind: input, shape index: {}]
  %s2 = inlined_call_operand.hbm [shape: bf16[256,128], index: 2, kind: input, shape index: {}]
  %s3 = inlined_call_operand.hbm [shape: bf16[128,128], index: 3, kind: input, shape index: {}]
  %s4 = inlined_call_operand.hbm [shape: f32[2,128], index: 4, kind: input, shape index: {}]
  %s5 = inlined_call_operand.hbm [shape: f32[1024,128], index: 5, kind: output, shape index: {}]
  %s6 = sld [smem:[#allocation0]]
  $region77: #{tpu_custom_call.1} parent=0
    _
  %s8 = ssub.s32 1, %s6
  %s9 = scalar_select 0, %s8, %s6
  $region1: #{tpu_custom_call.1} parent=0
    #allocation3 [shape = 'u8[1048576]{0}', space=vmem, size = 0x100000, scoped, tag = 'input window, operand 0, single buffered']
    #allocation4 [shape = 's32[2]{0}', space=sflag, size = 0x8, scoped, tag = 'scoped memory for tpu_custom_call.1']
    #allocation5 [shape = 's32[2]{0}', space=sflag, size = 0x8, scoped, tag = 'scoped memory for tpu_custom_call.1']
    #allocation6 [shape = 'u8[2048]{0}', space=vmem, size = 0x800, scoped, tag = 'input window, operand 1, single buffered']
    #allocation7 [shape = 's32[1]{0}', space=sflag, size = 0x4, scoped, tag = 'scoped memory for tpu_custom_call.1']
    #allocation8 [shape = 'u8[65536]{0}', space=vmem, size = 0x10000, scoped, tag = 'input window, operand 2, single buffered']
    #allocation9 [shape = 'u8[32768]{0}', space=vmem, size = 0x8000, scoped, tag = 'input window, operand 3, single buffered']
    #allocation10 [shape = 's32[1]{0}', space=sflag, size = 0x4, scoped, tag = 'scoped memory for tpu_custom_call.1']
    #allocation11 [shape = 'u8[1024]{0}', space=vmem, size = 0x400, scoped, tag = 'input window, operand 4, single buffered']
    #allocation12 [shape = 'u8[524288]{0}', space=vmem, size = 0x80000, scoped, tag = 'output window, operand 0']
    %10 = vsyncpa [#allocation4], 0
    %11 = vsyncpa [#allocation7], 0
    %12 = vsyncpa [#allocation10], 0
    %13 = vsyncpa [#allocation5], 0
    %s14 = scalar_lea.sflag [#allocation5], 1
    %15 = vsyncpa %s14, 0
    loop: start=0, step=1, limit=4
    $region2: #{tpu_custom_call.1} parent=1 // loop_pre_header
      _
    $region3: #{tpu_custom_call.1} parent=1 // loop_header
      %s17 = sphi 0, %s21
      %p18 = scmp.ge.s32.totalorder %s17, 4
      %s25 = sphi 0, %s25
      %s27 = sphi 0, %s25
      %s28 = sphi 0, %s27
      %s42 = sphi 0, %s28
      %s46 = sphi 0, %s46
      %s48 = sphi 0, %s46
      %s49 = sphi 0, %s48
      %s63 = sphi 0, %s49
      %s67 = sphi 0, %s67
      %s69 = sphi 0, %s67
      %s70 = sphi 0, %s69
      %s84 = sphi 0, %s70
      %s88 = sphi 0, %s88
      %s90 = sphi 0, %s88
      %s91 = sphi 0, %s90
      %s105 = sphi 0, %s91
      %s109 = sphi 0, %s109
      %s111 = sphi 0, %s109
      %s112 = sphi 0, %s111
      %s126 = sphi 0, %s112
      %s132 = sphi 0, %s134
      %s135 = sphi 0, %s132
      %s136 = sphi 0, %s135
      %s152 = sphi 0, %s136
    $region4: #{tpu_custom_call.1} parent=1 // loop_header_branch
      %20 = sbr.rel (%p18) target = $region8
    $region5: #{tpu_custom_call.1} parent=1 // loop_body
      %s22 = ssub.s32 %s17, 1
      %s23 = ssub.s32 %s17, 2
      %s24 = sadd.s32 %s17, 1
      %s26 = sadd.s32 %s25, 1
      %p29 = scmp.eq.s32.totalorder %s17, 1
      %p30 = scmp.ne.s32.totalorder %s25, %s27
      %p31 = scmp.eq.s32.totalorder %s17, 0
      %p32 = por %p30, %p31
      %p33 = scmp.ne.s32.totalorder %s25, %s27
      %p34 = scmp.eq.s32.totalorder %s22, 1
      %p35 = por %p33, %p34
      %p36 = scmp.ne.s32.totalorder %s27, %s28
      %p37 = scmp.eq.s32.totalorder %s22, 0
      %p38 = por %p36, %p37
      %p39 = scmp.ne.s32.totalorder %s27, %s28
      %p40 = scmp.eq.s32.totalorder %s23, 1
      %p41 = por %p39, %p40
      %p43 = scmp.ne.s32.totalorder %s28, %s42
      %p44 = scmp.eq.s32.totalorder %s23, 0
      %p45 = por %p43, %p44
      %s47 = sadd.s32 %s46, 1
      %p50 = scmp.eq.s32.totalorder %s17, 1
      %p51 = scmp.ne.s32.totalorder %s46, %s48
      %p52 = scmp.eq.s32.totalorder %s17, 0
      %p53 = por %p51, %p52
      %p54 = scmp.ne.s32.totalorder %s46, %s48
      %p55 = scmp.eq.s32.totalorder %s22, 1
      %p56 = por %p54, %p55
      %p57 = scmp.ne.s32.totalorder %s48, %s49
      %p58 = scmp.eq.s32.totalorder %s22, 0
      %p59 = por %p57, %p58
      %p60 = scmp.ne.s32.totalorder %s48, %s49
      %p61 = scmp.eq.s32.totalorder %s23, 1
      %p62 = por %p60, %p61
      %p64 = scmp.ne.s32.totalorder %s49, %s63
      %p65 = scmp.eq.s32.totalorder %s23, 0
      %p66 = por %p64, %p65
      %s68 = sadd.s32 %s67, 1
      %p71 = scmp.eq.s32.totalorder %s17, 1
      %p72 = scmp.ne.s32.totalorder %s67, %s69
      %p73 = scmp.eq.s32.totalorder %s17, 0
      %p74 = por %p72, %p73
      %p75 = scmp.ne.s32.totalorder %s67, %s69
      %p76 = scmp.eq.s32.totalorder %s22, 1
      %p77 = por %p75, %p76
      %p78 = scmp.ne.s32.totalorder %s69, %s70
      %p79 = scmp.eq.s32.totalorder %s22, 0
      %p80 = por %p78, %p79
      %p81 = scmp.ne.s32.totalorder %s69, %s70
      %p82 = scmp.eq.s32.totalorder %s23, 1
      %p83 = por %p81, %p82
      %p85 = scmp.ne.s32.totalorder %s70, %s84
      %p86 = scmp.eq.s32.totalorder %s23, 0
      %p87 = por %p85, %p86
      %s89 = sadd.s32 %s88, 1
      %p92 = scmp.eq.s32.totalorder %s17, 1
      %p93 = scmp.ne.s32.totalorder %s88, %s90
      %p94 = scmp.eq.s32.totalorder %s17, 0
      %p95 = por %p93, %p94
      %p96 = scmp.ne.s32.totalorder %s88, %s90
      %p97 = scmp.eq.s32.totalorder %s22, 1
      %p98 = por %p96, %p97
      %p99 = scmp.ne.s32.totalorder %s90, %s91
      %p100 = scmp.eq.s32.totalorder %s22, 0
      %p101 = por %p99, %p100
      %p102 = scmp.ne.s32.totalorder %s90, %s91
      %p103 = scmp.eq.s32.totalorder %s23, 1
      %p104 = por %p102, %p103
      %p106 = scmp.ne.s32.totalorder %s91, %s105
      %p107 = scmp.eq.s32.totalorder %s23, 0
      %p108 = por %p106, %p107
      %s110 = sadd.s32 %s109, 1
      %p113 = scmp.eq.s32.totalorder %s17, 1
      %p114 = scmp.ne.s32.totalorder %s109, %s111
      %p115 = scmp.eq.s32.totalorder %s17, 0
      %p116 = por %p114, %p115
      %p117 = scmp.ne.s32.totalorder %s109, %s111
      %p118 = scmp.eq.s32.totalorder %s22, 1
      %p119 = por %p117, %p118
      %p120 = scmp.ne.s32.totalorder %s111, %s112
      %p121 = scmp.eq.s32.totalorder %s22, 0
      %p122 = por %p120, %p121
      %p123 = scmp.ne.s32.totalorder %s111, %s112
      %p124 = scmp.eq.s32.totalorder %s23, 1
      %p125 = por %p123, %p124
      %p127 = scmp.ne.s32.totalorder %s112, %s126
      %p128 = scmp.eq.s32.totalorder %s23, 0
      %p129 = por %p127, %p128
      %s130 = ssub.s32 %s17, %s24
      %p131 = scmp.eq.s32.totalorder %s130, 0
      %s133 = sadd.s32 %s132, 1
      %s134 = scalar_select %p131, %s132, %s133
      %p137 = pneg %p131
      %p138 = scmp.eq.s32.totalorder %s17, 1
      %p139 = por %p137, %p138
      %p140 = scmp.ne.s32.totalorder %s132, %s135
      %p141 = scmp.eq.s32.totalorder %s17, 0
      %p142 = por %p140, %p141
      %p143 = scmp.ne.s32.totalorder %s132, %s135
      %p144 = scmp.eq.s32.totalorder %s22, 1
      %p145 = por %p143, %p144
      %p146 = scmp.ne.s32.totalorder %s135, %s136
      %p147 = scmp.eq.s32.totalorder %s22, 0
      %p148 = por %p146, %p147
      %p149 = scmp.ne.s32.totalorder %s135, %s136
      %p150 = scmp.eq.s32.totalorder %s23, 1
      %p151 = por %p149, %p150
      %p153 = scmp.ne.s32.totalorder %s136, %s152
      %p154 = scmp.eq.s32.totalorder %s23, 0
      %p155 = por %p153, %p154
      %p156 = scmp.le.s32.totalorder 1, %s17
      %p157 = scmp.lt.s32.totalorder %s17, 3
      %p158 = pnand %p156, %p157
      %p159 = pneg %p158
      // Predicated region
      $region9: #{tpu_custom_call.1} parent=5 // pred_check
        _
      $region10: #{tpu_custom_call.1} parent=5 // pred_check_branch
        %161 = sbr.rel (%p158) target = $region12
      $region11: #{tpu_custom_call.1} parent=5 // pred_region
        %s162 = ssub.s32 %s17, 1
        // Predicated region
        $region13: #{tpu_custom_call.1} parent=11 // pred_check
          %p163 = pneg %p38
        $region14: #{tpu_custom_call.1} parent=11 // pred_check_branch
          %165 = sbr.rel (%p163) target = $region16
        $region15: #{tpu_custom_call.1} parent=11 // pred_region
          %s167 = ssub.s32 32768, 32768
          %168 = vsyncadd [#allocation4], %s167
          %s169 = sshll.u32 [#allocation3], 4
          %s170 = int_to_ptr.vmem [resolvable:$true] %s169
          %175 = dma.hbm_to_vmem [thread:$0]  %s0, 32768, %s170, [#allocation4], 256, 256, 16
        $region16: #{tpu_custom_call.1} parent=11 // pred_fallthru
          _
        // Predicated region
        $region17: #{tpu_custom_call.1} parent=11 // pred_check
          %p176 = pneg %p59
        $region18: #{tpu_custom_call.1} parent=11 // pred_check_branch
          %178 = sbr.rel (%p176) target = $region20
        $region19: #{tpu_custom_call.1} parent=11 // pred_region
          %s180 = ssub.s32 64, 64
          %181 = vsyncadd [#allocation7], %s180
          %s183 = sshll.u32 [#allocation6], 4
          %s184 = int_to_ptr.vmem [resolvable:$true] %s183
          %186 = dma.hbm_to_vmem [thread:$0]  %s1, 64, %s184, [#allocation7]
        $region20: #{tpu_custom_call.1} parent=11 // pred_fallthru
          _
        // Predicated region
        $region21: #{tpu_custom_call.1} parent=11 // pred_check
          %p187 = pneg %p80
        $region22: #{tpu_custom_call.1} parent=11 // pred_check_branch
          %189 = sbr.rel (%p187) target = $region24
        $region23: #{tpu_custom_call.1} parent=11 // pred_region
          %s191 = ssub.s32 2048, 2048
          %192 = vsyncadd [#allocation7], %s191
          %s193 = sshll.u32 [#allocation8], 4
          %s194 = int_to_ptr.vmem [resolvable:$true] %s193
          %199 = dma.hbm_to_vmem [thread:$0]  %s2, 2048, %s194, [#allocation7], 64, 64, 4
        $region24: #{tpu_custom_call.1} parent=11 // pred_fallthru
          _
        // Predicated region
        $region25: #{tpu_custom_call.1} parent=11 // pred_check
          %p200 = pneg %p101
        $region26: #{tpu_custom_call.1} parent=11 // pred_check_branch
          %202 = sbr.rel (%p200) target = $region28
        $region27: #{tpu_custom_call.1} parent=11 // pred_region
          %s204 = ssub.s32 1024, 1024
          %205 = vsyncadd [#allocation10], %s204
          %s206 = sshll.u32 [#allocation9], 4
          %s207 = int_to_ptr.vmem [resolvable:$true] %s206
          %212 = dma.hbm_to_vmem [thread:$0]  %s3, 1024, %s207, [#allocation10], 64, 64, 4
        $region28: #{tpu_custom_call.1} parent=11 // pred_fallthru
          _
        // Predicated region
        $region29: #{tpu_custom_call.1} parent=11 // pred_check
          %p213 = pneg %p122
        $region30: #{tpu_custom_call.1} parent=11 // pred_check_branch
          %215 = sbr.rel (%p213) target = $region32
        $region31: #{tpu_custom_call.1} parent=11 // pred_region
          %s217 = ssub.s32 32, 32
          %218 = vsyncadd [#allocation10], %s217
          %s220 = sshll.u32 [#allocation11], 4
          %s221 = int_to_ptr.vmem [resolvable:$true] %s220
          %223 = dma.hbm_to_vmem [thread:$0]  %s4, 32, %s221, [#allocation10]
        $region32: #{tpu_custom_call.1} parent=11 // pred_fallthru
          _
      $region12: #{tpu_custom_call.1} parent=5 // pred_fallthru
        _
      %p224 = scmp.lt.s32.totalorder %s17, 2
      // Predicated region
      $region33: #{tpu_custom_call.1} parent=5 // pred_check
        %p225 = pneg %p224
      $region34: #{tpu_custom_call.1} parent=5 // pred_check_branch
        %227 = sbr.rel (%p225) target = $region36
      $region35: #{tpu_custom_call.1} parent=5 // pred_region
        _
      $region36: #{tpu_custom_call.1} parent=5 // pred_fallthru
        _
      %p228 = scmp.le.s32.totalorder 1, %s17
      %p229 = scmp.lt.s32.totalorder %s17, 3
      %p230 = pnand %p228, %p229
      %p231 = pneg %p230
      // Predicated region
      $region37: #{tpu_custom_call.1} parent=5 // pred_check
        _
      $region38: #{tpu_custom_call.1} parent=5 // pred_check_branch
        %233 = sbr.rel (%p230) target = $region40
      $region39: #{tpu_custom_call.1} parent=5 // pred_region
        %s234 = ssub.s32 %s17, 1
        // Predicated region
        $region41: #{tpu_custom_call.1} parent=39 // pred_check
          %p235 = pneg %p38
        $region42: #{tpu_custom_call.1} parent=39 // pred_check_branch
          %237 = sbr.rel (%p235) target = $region44
        $region43: #{tpu_custom_call.1} parent=39 // pred_region
          %238 = dma.done [#allocation4], 32768
        $region44: #{tpu_custom_call.1} parent=39 // pred_fallthru
          _
        // Predicated region
        $region45: #{tpu_custom_call.1} parent=39 // pred_check
          %p239 = pneg %p59
        $region46: #{tpu_custom_call.1} parent=39 // pred_check_branch
          %241 = sbr.rel (%p239) target = $region48
        $region47: #{tpu_custom_call.1} parent=39 // pred_region
          %242 = dma.done [#allocation7], 64
        $region48: #{tpu_custom_call.1} parent=39 // pred_fallthru
          _
        // Predicated region
        $region49: #{tpu_custom_call.1} parent=39 // pred_check
          %p243 = pneg %p80
        $region50: #{tpu_custom_call.1} parent=39 // pred_check_branch
          %245 = sbr.rel (%p243) target = $region52
        $region51: #{tpu_custom_call.1} parent=39 // pred_region
          %246 = dma.done [#allocation7], 2048
        $region52: #{tpu_custom_call.1} parent=39 // pred_fallthru
          _
        // Predicated region
        $region53: #{tpu_custom_call.1} parent=39 // pred_check
          %p247 = pneg %p101
        $region54: #{tpu_custom_call.1} parent=39 // pred_check_branch
          %249 = sbr.rel (%p247) target = $region56
        $region55: #{tpu_custom_call.1} parent=39 // pred_region
          %250 = dma.done [#allocation10], 1024
        $region56: #{tpu_custom_call.1} parent=39 // pred_fallthru
          _
        // Predicated region
        $region57: #{tpu_custom_call.1} parent=39 // pred_check
          %p251 = pneg %p122
        $region58: #{tpu_custom_call.1} parent=39 // pred_check_branch
          %253 = sbr.rel (%p251) target = $region60
        $region59: #{tpu_custom_call.1} parent=39 // pred_region
          %254 = dma.done [#allocation10], 32
        $region60: #{tpu_custom_call.1} parent=39 // pred_fallthru
          _
        %p255 = pneg %p38
        %p256 = pneg %p35
        %p257 = pneg %p59
        %p258 = pneg %p56
        %p259 = pneg %p80
        %p260 = pneg %p77
        %p261 = pneg %p101
        %p262 = pneg %p98
        %p263 = pneg %p122
        %p264 = pneg %p119
        %p265 = pneg %p148
        %p266 = pneg %p145
        %s267 = sand.u32 %s135, 1
        %s268 = scalar_lea.sflag [#allocation5], %s267
        %s269 = sand.u32 %s135, 1
        %s270 = smul.addr %s269, 512
        %s271 = scalar_lea.vmem [#allocation12], %s270
        %s272 = smul.u32 64, %s22
        %p274 = scmp.eq.s32.totalorder %s22, 0
        // Predicated region
        $region61: #{tpu_custom_call.1} parent=39 // pred_check
          %p275 = pneg %p274
        $region62: #{tpu_custom_call.1} parent=39 // pred_check_branch
          %277 = sbr.rel (%p275) target = $region64
        $region63: #{tpu_custom_call.1} parent=39 // pred_region
          %v278 = vld [vmem:[#allocation3] sm:$0xff]
          %v279 = vld [vmem:[#allocation3 + $0x8] sm:$0xff]
          %v280 = vld [vmem:[#allocation3 + $0x10] sm:$0xff]
          %v281 = vld [vmem:[#allocation3 + $0x18] sm:$0xff]
          %v282 = vld [vmem:[#allocation3 + $0x20] sm:$0xff]
          %v283 = vld [vmem:[#allocation3 + $0x28] sm:$0xff]
          %v284 = vld [vmem:[#allocation3 + $0x30] sm:$0xff]
          %v285 = vld [vmem:[#allocation3 + $0x38] sm:$0xff]
          %v286 = vld [vmem:[#allocation3 + $0x40] sm:$0xff]
          %v287 = vld [vmem:[#allocation3 + $0x48] sm:$0xff]
          %v288 = vld [vmem:[#allocation3 + $0x50] sm:$0xff]
          %v289 = vld [vmem:[#allocation3 + $0x58] sm:$0xff]
          %v290 = vld [vmem:[#allocation3 + $0x60] sm:$0xff]
          %v291 = vld [vmem:[#allocation3 + $0x68] sm:$0xff]
          %v292 = vld [vmem:[#allocation3 + $0x70] sm:$0xff]
          %v293 = vld [vmem:[#allocation3 + $0x78] sm:$0xff]
          %v294 = vld [vmem:[#allocation3 + $0x80] sm:$0xff]
          %v295 = vld [vmem:[#allocation3 + $0x88] sm:$0xff]
          %v296 = vld [vmem:[#allocation3 + $0x90] sm:$0xff]
          %v297 = vld [vmem:[#allocation3 + $0x98] sm:$0xff]
          %v298 = vld [vmem:[#allocation3 + $0xa0] sm:$0xff]
          %v299 = vld [vmem:[#allocation3 + $0xa8] sm:$0xff]
          %v300 = vld [vmem:[#allocation3 + $0xb0] sm:$0xff]
          %v301 = vld [vmem:[#allocation3 + $0xb8] sm:$0xff]
          %v302 = vld [vmem:[#allocation3 + $0xc0] sm:$0xff]
          %v303 = vld [vmem:[#allocation3 + $0xc8] sm:$0xff]
          %v304 = vld [vmem:[#allocation3 + $0xd0] sm:$0xff]
          %v305 = vld [vmem:[#allocation3 + $0xd8] sm:$0xff]
          %v306 = vld [vmem:[#allocation3 + $0xe0] sm:$0xff]
          %v307 = vld [vmem:[#allocation3 + $0xe8] sm:$0xff]
          %v308 = vld [vmem:[#allocation3 + $0xf0] sm:$0xff]
          %v309 = vld [vmem:[#allocation3 + $0xf8] sm:$0xff]
          %v310 = vld [vmem:[#allocation3 + $0x100] sm:$0xff]
          %v311 = vld [vmem:[#allocation3 + $0x108] sm:$0xff]
          %v312 = vld [vmem:[#allocation3 + $0x110] sm:$0xff]
          %v313 = vld [vmem:[#allocation3 + $0x118] sm:$0xff]
          %v314 = vld [vmem:[#allocation3 + $0x120] sm:$0xff]
          %v315 = vld [vmem:[#allocation3 + $0x128] sm:$0xff]
          %v316 = vld [vmem:[#allocation3 + $0x130] sm:$0xff]
          %v317 = vld [vmem:[#allocation3 + $0x138] sm:$0xff]
          %v318 = vld [vmem:[#allocation3 + $0x140] sm:$0xff]
          %v319 = vld [vmem:[#allocation3 + $0x148] sm:$0xff]
          %v320 = vld [vmem:[#allocation3 + $0x150] sm:$0xff]
          %v321 = vld [vmem:[#allocation3 + $0x158] sm:$0xff]
          %v322 = vld [vmem:[#allocation3 + $0x160] sm:$0xff]
          %v323 = vld [vmem:[#allocation3 + $0x168] sm:$0xff]
          %v324 = vld [vmem:[#allocation3 + $0x170] sm:$0xff]
          %v325 = vld [vmem:[#allocation3 + $0x178] sm:$0xff]
          %v326 = vld [vmem:[#allocation3 + $0x180] sm:$0xff]
          %v327 = vld [vmem:[#allocation3 + $0x188] sm:$0xff]
          %v328 = vld [vmem:[#allocation3 + $0x190] sm:$0xff]
          %v329 = vld [vmem:[#allocation3 + $0x198] sm:$0xff]
          %v330 = vld [vmem:[#allocation3 + $0x1a0] sm:$0xff]
          %v331 = vld [vmem:[#allocation3 + $0x1a8] sm:$0xff]
          %v332 = vld [vmem:[#allocation3 + $0x1b0] sm:$0xff]
          %v333 = vld [vmem:[#allocation3 + $0x1b8] sm:$0xff]
          %v334 = vld [vmem:[#allocation3 + $0x1c0] sm:$0xff]
          %v335 = vld [vmem:[#allocation3 + $0x1c8] sm:$0xff]
          %v336 = vld [vmem:[#allocation3 + $0x1d0] sm:$0xff]
          %v337 = vld [vmem:[#allocation3 + $0x1d8] sm:$0xff]
          %v338 = vld [vmem:[#allocation3 + $0x1e0] sm:$0xff]
          %v339 = vld [vmem:[#allocation3 + $0x1e8] sm:$0xff]
          %v340 = vld [vmem:[#allocation3 + $0x1f0] sm:$0xff]
          %v341 = vld [vmem:[#allocation3 + $0x1f8] sm:$0xff]
          %v342 = vld [vmem:[#allocation3 + $0x200] sm:$0xff]
          %v343 = vld [vmem:[#allocation3 + $0x208] sm:$0xff]
          %v344 = vld [vmem:[#allocation3 + $0x210] sm:$0xff]
          %v345 = vld [vmem:[#allocation3 + $0x218] sm:$0xff]
          %v346 = vld [vmem:[#allocation3 + $0x220] sm:$0xff]
          %v347 = vld [vmem:[#allocation3 + $0x228] sm:$0xff]
          %v348 = vld [vmem:[#allocation3 + $0x230] sm:$0xff]
          %v349 = vld [vmem:[#allocation3 + $0x238] sm:$0xff]
          %v350 = vld [vmem:[#allocation3 + $0x240] sm:$0xff]
          %v351 = vld [vmem:[#allocation3 + $0x248] sm:$0xff]
          %v352 = vld [vmem:[#allocation3 + $0x250] sm:$0xff]
          %v353 = vld [vmem:[#allocation3 + $0x258] sm:$0xff]
          %v354 = vld [vmem:[#allocation3 + $0x260] sm:$0xff]
          %v355 = vld [vmem:[#allocation3 + $0x268] sm:$0xff]
          %v356 = vld [vmem:[#allocation3 + $0x270] sm:$0xff]
          %v357 = vld [vmem:[#allocation3 + $0x278] sm:$0xff]
          %v358 = vld [vmem:[#allocation3 + $0x280] sm:$0xff]
          %v359 = vld [vmem:[#allocation3 + $0x288] sm:$0xff]
          %v360 = vld [vmem:[#allocation3 + $0x290] sm:$0xff]
          %v361 = vld [vmem:[#allocation3 + $0x298] sm:$0xff]
          %v362 = vld [vmem:[#allocation3 + $0x2a0] sm:$0xff]
          %v363 = vld [vmem:[#allocation3 + $0x2a8] sm:$0xff]
          %v364 = vld [vmem:[#allocation3 + $0x2b0] sm:$0xff]
          %v365 = vld [vmem:[#allocation3 + $0x2b8] sm:$0xff]
          %v366 = vld [vmem:[#allocation3 + $0x2c0] sm:$0xff]
          %v367 = vld [vmem:[#allocation3 + $0x2c8] sm:$0xff]
          %v368 = vld [vmem:[#allocation3 + $0x2d0] sm:$0xff]
          %v369 = vld [vmem:[#allocation3 + $0x2d8] sm:$0xff]
          %v370 = vld [vmem:[#allocation3 + $0x2e0] sm:$0xff]
          %v371 = vld [vmem:[#allocation3 + $0x2e8] sm:$0xff]
          %v372 = vld [vmem:[#allocation3 + $0x2f0] sm:$0xff]
          %v373 = vld [vmem:[#allocation3 + $0x2f8] sm:$0xff]
          %v374 = vld [vmem:[#allocation3 + $0x300] sm:$0xff]
          %v375 = vld [vmem:[#allocation3 + $0x308] sm:$0xff]
          %v376 = vld [vmem:[#allocation3 + $0x310] sm:$0xff]
          %v377 = vld [vmem:[#allocation3 + $0x318] sm:$0xff]
          %v378 = vld [vmem:[#allocation3 + $0x320] sm:$0xff]
          %v379 = vld [vmem:[#allocation3 + $0x328] sm:$0xff]
          %v380 = vld [vmem:[#allocation3 + $0x330] sm:$0xff]
          %v381 = vld [vmem:[#allocation3 + $0x338] sm:$0xff]
          %v382 = vld [vmem:[#allocation3 + $0x340] sm:$0xff]
          %v383 = vld [vmem:[#allocation3 + $0x348] sm:$0xff]
          %v384 = vld [vmem:[#allocation3 + $0x350] sm:$0xff]
          %v385 = vld [vmem:[#allocation3 + $0x358] sm:$0xff]
          %v386 = vld [vmem:[#allocation3 + $0x360] sm:$0xff]
          %v387 = vld [vmem:[#allocation3 + $0x368] sm:$0xff]
          %v388 = vld [vmem:[#allocation3 + $0x370] sm:$0xff]
          %v389 = vld [vmem:[#allocation3 + $0x378] sm:$0xff]
          %v390 = vld [vmem:[#allocation3 + $0x380] sm:$0xff]
          %v391 = vld [vmem:[#allocation3 + $0x388] sm:$0xff]
          %v392 = vld [vmem:[#allocation3 + $0x390] sm:$0xff]
          %v393 = vld [vmem:[#allocation3 + $0x398] sm:$0xff]
          %v394 = vld [vmem:[#allocation3 + $0x3a0] sm:$0xff]
          %v395 = vld [vmem:[#allocation3 + $0x3a8] sm:$0xff]
          %v396 = vld [vmem:[#allocation3 + $0x3b0] sm:$0xff]
          %v397 = vld [vmem:[#allocation3 + $0x3b8] sm:$0xff]
          %v398 = vld [vmem:[#allocation3 + $0x3c0] sm:$0xff]
          %v399 = vld [vmem:[#allocation3 + $0x3c8] sm:$0xff]
          %v400 = vld [vmem:[#allocation3 + $0x3d0] sm:$0xff]
          %v401 = vld [vmem:[#allocation3 + $0x3d8] sm:$0xff]
          %v402 = vld [vmem:[#allocation3 + $0x3e0] sm:$0xff]
          %v403 = vld [vmem:[#allocation3 + $0x3e8] sm:$0xff]
          %v404 = vld [vmem:[#allocation3 + $0x3f0] sm:$0xff]
          %v405 = vld [vmem:[#allocation3 + $0x3f8] sm:$0xff]
          %v406 = vld [vmem:[#allocation3 + $0x400] sm:$0xff]
          %v407 = vld [vmem:[#allocation3 + $0x408] sm:$0xff]
          %v408 = vld [vmem:[#allocation3 + $0x410] sm:$0xff]
          %v409 = vld [vmem:[#allocation3 + $0x418] sm:$0xff]
          %v410 = vld [vmem:[#allocation3 + $0x420] sm:$0xff]
          %v411 = vld [vmem:[#allocation3 + $0x428] sm:$0xff]
          %v412 = vld [vmem:[#allocation3 + $0x430] sm:$0xff]
          %v413 = vld [vmem:[#allocation3 + $0x438] sm:$0xff]
          %v414 = vld [vmem:[#allocation3 + $0x440] sm:$0xff]
          %v415 = vld [vmem:[#allocation3 + $0x448] sm:$0xff]
          %v416 = vld [vmem:[#allocation3 + $0x450] sm:$0xff]
          %v417 = vld [vmem:[#allocation3 + $0x458] sm:$0xff]
          %v418 = vld [vmem:[#allocation3 + $0x460] sm:$0xff]
          %v419 = vld [vmem:[#allocation3 + $0x468] sm:$0xff]
          %v420 = vld [vmem:[#allocation3 + $0x470] sm:$0xff]
          %v421 = vld [vmem:[#allocation3 + $0x478] sm:$0xff]
          %v422 = vld [vmem:[#allocation3 + $0x480] sm:$0xff]
          %v423 = vld [vmem:[#allocation3 + $0x488] sm:$0xff]
          %v424 = vld [vmem:[#allocation3 + $0x490] sm:$0xff]
          %v425 = vld [vmem:[#allocation3 + $0x498] sm:$0xff]
          %v426 = vld [vmem:[#allocation3 + $0x4a0] sm:$0xff]
          %v427 = vld [vmem:[#allocation3 + $0x4a8] sm:$0xff]
          %v428 = vld [vmem:[#allocation3 + $0x4b0] sm:$0xff]
          %v429 = vld [vmem:[#allocation3 + $0x4b8] sm:$0xff]
          %v430 = vld [vmem:[#allocation3 + $0x4c0] sm:$0xff]
          %v431 = vld [vmem:[#allocation3 + $0x4c8] sm:$0xff]
          %v432 = vld [vmem:[#allocation3 + $0x4d0] sm:$0xff]
          %v433 = vld [vmem:[#allocation3 + $0x4d8] sm:$0xff]
          %v434 = vld [vmem:[#allocation3 + $0x4e0] sm:$0xff]
          %v435 = vld [vmem:[#allocation3 + $0x4e8] sm:$0xff]
          %v436 = vld [vmem:[#allocation3 + $0x4f0] sm:$0xff]
          %v437 = vld [vmem:[#allocation3 + $0x4f8] sm:$0xff]
          %v438 = vld [vmem:[#allocation3 + $0x500] sm:$0xff]
          %v439 = vld [vmem:[#allocation3 + $0x508] sm:$0xff]
          %v440 = vld [vmem:[#allocation3 + $0x510] sm:$0xff]
          %v441 = vld [vmem:[#allocation3 + $0x518] sm:$0xff]
          %v442 = vld [vmem:[#allocation3 + $0x520] sm:$0xff]
          %v443 = vld [vmem:[#allocation3 + $0x528] sm:$0xff]
          %v444 = vld [vmem:[#allocation3 + $0x530] sm:$0xff]
          %v445 = vld [vmem:[#allocation3 + $0x538] sm:$0xff]
          %v446 = vld [vmem:[#allocation3 + $0x540] sm:$0xff]
          %v447 = vld [vmem:[#allocation3 + $0x548] sm:$0xff]
          %v448 = vld [vmem:[#allocation3 + $0x550] sm:$0xff]
          %v449 = vld [vmem:[#allocation3 + $0x558] sm:$0xff]
          %v450 = vld [vmem:[#allocation3 + $0x560] sm:$0xff]
          %v451 = vld [vmem:[#allocation3 + $0x568] sm:$0xff]
          %v452 = vld [vmem:[#allocation3 + $0x570] sm:$0xff]
          %v453 = vld [vmem:[#allocation3 + $0x578] sm:$0xff]
          %v454 = vld [vmem:[#allocation3 + $0x580] sm:$0xff]
          %v455 = vld [vmem:[#allocation3 + $0x588] sm:$0xff]
          %v456 = vld [vmem:[#allocation3 + $0x590] sm:$0xff]
          %v457 = vld [vmem:[#allocation3 + $0x598] sm:$0xff]
          %v458 = vld [vmem:[#allocation3 + $0x5a0] sm:$0xff]
          %v459 = vld [vmem:[#allocation3 + $0x5a8] sm:$0xff]
          %v460 = vld [vmem:[#allocation3 + $0x5b0] sm:$0xff]
          %v461 = vld [vmem:[#allocation3 + $0x5b8] sm:$0xff]
          %v462 = vld [vmem:[#allocation3 + $0x5c0] sm:$0xff]
          %v463 = vld [vmem:[#allocation3 + $0x5c8] sm:$0xff]
          %v464 = vld [vmem:[#allocation3 + $0x5d0] sm:$0xff]
          %v465 = vld [vmem:[#allocation3 + $0x5d8] sm:$0xff]
          %v466 = vld [vmem:[#allocation3 + $0x5e0] sm:$0xff]
          %v467 = vld [vmem:[#allocation3 + $0x5e8] sm:$0xff]
          %v468 = vld [vmem:[#allocation3 + $0x5f0] sm:$0xff]
          %v469 = vld [vmem:[#allocation3 + $0x5f8] sm:$0xff]
          %v470 = vld [vmem:[#allocation3 + $0x600] sm:$0xff]
          %v471 = vld [vmem:[#allocation3 + $0x608] sm:$0xff]
          %v472 = vld [vmem:[#allocation3 + $0x610] sm:$0xff]
          %v473 = vld [vmem:[#allocation3 + $0x618] sm:$0xff]
          %v474 = vld [vmem:[#allocation3 + $0x620] sm:$0xff]
          %v475 = vld [vmem:[#allocation3 + $0x628] sm:$0xff]
          %v476 = vld [vmem:[#allocation3 + $0x630] sm:$0xff]
          %v477 = vld [vmem:[#allocation3 + $0x638] sm:$0xff]
          %v478 = vld [vmem:[#allocation3 + $0x640] sm:$0xff]
          %v479 = vld [vmem:[#allocation3 + $0x648] sm:$0xff]
          %v480 = vld [vmem:[#allocation3 + $0x650] sm:$0xff]
          %v481 = vld [vmem:[#allocation3 + $0x658] sm:$0xff]
          %v482 = vld [vmem:[#allocation3 + $0x660] sm:$0xff]
          %v483 = vld [vmem:[#allocation3 + $0x668] sm:$0xff]
          %v484 = vld [vmem:[#allocation3 + $0x670] sm:$0xff]
          %v485 = vld [vmem:[#allocation3 + $0x678] sm:$0xff]
          %v486 = vld [vmem:[#allocation3 + $0x680] sm:$0xff]
          %v487 = vld [vmem:[#allocation3 + $0x688] sm:$0xff]
          %v488 = vld [vmem:[#allocation3 + $0x690] sm:$0xff]
          %v489 = vld [vmem:[#allocation3 + $0x698] sm:$0xff]
          %v490 = vld [vmem:[#allocation3 + $0x6a0] sm:$0xff]
          %v491 = vld [vmem:[#allocation3 + $0x6a8] sm:$0xff]
          %v492 = vld [vmem:[#allocation3 + $0x6b0] sm:$0xff]
          %v493 = vld [vmem:[#allocation3 + $0x6b8] sm:$0xff]
          %v494 = vld [vmem:[#allocation3 + $0x6c0] sm:$0xff]
          %v495 = vld [vmem:[#allocation3 + $0x6c8] sm:$0xff]
          %v496 = vld [vmem:[#allocation3 + $0x6d0] sm:$0xff]
          %v497 = vld [vmem:[#allocation3 + $0x6d8] sm:$0xff]
          %v498 = vld [vmem:[#allocation3 + $0x6e0] sm:$0xff]
          %v499 = vld [vmem:[#allocation3 + $0x6e8] sm:$0xff]
          %v500 = vld [vmem:[#allocation3 + $0x6f0] sm:$0xff]
          %v501 = vld [vmem:[#allocation3 + $0x6f8] sm:$0xff]
          %v502 = vld [vmem:[#allocation3 + $0x700] sm:$0xff]
          %v503 = vld [vmem:[#allocation3 + $0x708] sm:$0xff]
          %v504 = vld [vmem:[#allocation3 + $0x710] sm:$0xff]
          %v505 = vld [vmem:[#allocation3 + $0x718] sm:$0xff]
          %v506 = vld [vmem:[#allocation3 + $0x720] sm:$0xff]
          %v507 = vld [vmem:[#allocation3 + $0x728] sm:$0xff]
          %v508 = vld [vmem:[#allocation3 + $0x730] sm:$0xff]
          %v509 = vld [vmem:[#allocation3 + $0x738] sm:$0xff]
          %v510 = vld [vmem:[#allocation3 + $0x740] sm:$0xff]
          %v511 = vld [vmem:[#allocation3 + $0x748] sm:$0xff]
          %v512 = vld [vmem:[#allocation3 + $0x750] sm:$0xff]
          %v513 = vld [vmem:[#allocation3 + $0x758] sm:$0xff]
          %v514 = vld [vmem:[#allocation3 + $0x760] sm:$0xff]
          %v515 = vld [vmem:[#allocation3 + $0x768] sm:$0xff]
          %v516 = vld [vmem:[#allocation3 + $0x770] sm:$0xff]
          %v517 = vld [vmem:[#allocation3 + $0x778] sm:$0xff]
          %v518 = vld [vmem:[#allocation3 + $0x780] sm:$0xff]
          %v519 = vld [vmem:[#allocation3 + $0x788] sm:$0xff]
          %v520 = vld [vmem:[#allocation3 + $0x790] sm:$0xff]
          %v521 = vld [vmem:[#allocation3 + $0x798] sm:$0xff]
          %v522 = vld [vmem:[#allocation3 + $0x7a0] sm:$0xff]
          %v523 = vld [vmem:[#allocation3 + $0x7a8] sm:$0xff]
          %v524 = vld [vmem:[#allocation3 + $0x7b0] sm:$0xff]
          %v525 = vld [vmem:[#allocation3 + $0x7b8] sm:$0xff]
          %v526 = vld [vmem:[#allocation3 + $0x7c0] sm:$0xff]
          %v527 = vld [vmem:[#allocation3 + $0x7c8] sm:$0xff]
          %v528 = vld [vmem:[#allocation3 + $0x7d0] sm:$0xff]
          %v529 = vld [vmem:[#allocation3 + $0x7d8] sm:$0xff]
          %v530 = vld [vmem:[#allocation3 + $0x7e0] sm:$0xff]
          %v531 = vld [vmem:[#allocation3 + $0x7e8] sm:$0xff]
          %v532 = vld [vmem:[#allocation3 + $0x7f0] sm:$0xff]
          %v533 = vld [vmem:[#allocation3 + $0x7f8] sm:$0xff]
          %v534 = vadd.f32 %v278, %v280
          %v535 = vadd.f32 %v534, %v282
          %v536 = vadd.f32 %v535, %v284
          %v537 = vadd.f32 %v536, %v286
          %v538 = vadd.f32 %v537, %v288
          %v539 = vadd.f32 %v538, %v290
          %v540 = vadd.f32 %v539, %v292
          %v541 = vadd.f32 %v540, %v294
          %v542 = vadd.f32 %v541, %v296
          %v543 = vadd.f32 %v542, %v298
          %v544 = vadd.f32 %v543, %v300
          %v545 = vadd.f32 %v544, %v302
          %v546 = vadd.f32 %v545, %v304
          %v547 = vadd.f32 %v546, %v306
          %v548 = vadd.f32 %v547, %v308
          %v549 = vadd.f32 %v548, %v310
          %v550 = vadd.f32 %v549, %v312
          %v551 = vadd.f32 %v550, %v314
          %v552 = vadd.f32 %v551, %v316
          %v553 = vadd.f32 %v552, %v318
          %v554 = vadd.f32 %v553, %v320
          %v555 = vadd.f32 %v554, %v322
          %v556 = vadd.f32 %v555, %v324
          %v557 = vadd.f32 %v556, %v326
          %v558 = vadd.f32 %v557, %v328
          %v559 = vadd.f32 %v558, %v330
          %v560 = vadd.f32 %v559, %v332
          %v561 = vadd.f32 %v560, %v334
          %v562 = vadd.f32 %v561, %v336
          %v563 = vadd.f32 %v562, %v338
          %v564 = vadd.f32 %v563, %v340
          %v565 = vadd.f32 %v564, %v342
          %v566 = vadd.f32 %v565, %v344
          %v567 = vadd.f32 %v566, %v346
          %v568 = vadd.f32 %v567, %v348
          %v569 = vadd.f32 %v568, %v350
          %v570 = vadd.f32 %v569, %v352
          %v571 = vadd.f32 %v570, %v354
          %v572 = vadd.f32 %v571, %v356
          %v573 = vadd.f32 %v572, %v358
          %v574 = vadd.f32 %v573, %v360
          %v575 = vadd.f32 %v574, %v362
          %v576 = vadd.f32 %v575, %v364
          %v577 = vadd.f32 %v576, %v366
          %v578 = vadd.f32 %v577, %v368
          %v579 = vadd.f32 %v578, %v370
          %v580 = vadd.f32 %v579, %v372
          %v581 = vadd.f32 %v580, %v374
          %v582 = vadd.f32 %v581, %v376
          %v583 = vadd.f32 %v582, %v378
          %v584 = vadd.f32 %v583, %v380
          %v585 = vadd.f32 %v584, %v382
          %v586 = vadd.f32 %v585, %v384
          %v587 = vadd.f32 %v586, %v386
          %v588 = vadd.f32 %v587, %v388
          %v589 = vadd.f32 %v588, %v390
          %v590 = vadd.f32 %v589, %v392
          %v591 = vadd.f32 %v590, %v394
          %v592 = vadd.f32 %v591, %v396
          %v593 = vadd.f32 %v592, %v398
          %v594 = vadd.f32 %v593, %v400
          %v595 = vadd.f32 %v594, %v402
          %v596 = vadd.f32 %v595, %v404
          %v597 = vadd.f32 %v596, %v406
          %v598 = vadd.f32 %v597, %v408
          %v599 = vadd.f32 %v598, %v410
          %v600 = vadd.f32 %v599, %v412
          %v601 = vadd.f32 %v600, %v414
          %v602 = vadd.f32 %v601, %v416
          %v603 = vadd.f32 %v602, %v418
          %v604 = vadd.f32 %v603, %v420
          %v605 = vadd.f32 %v604, %v422
          %v606 = vadd.f32 %v605, %v424
          %v607 = vadd.f32 %v606, %v426
          %v608 = vadd.f32 %v607, %v428
          %v609 = vadd.f32 %v608, %v430
          %v610 = vadd.f32 %v609, %v432
          %v611 = vadd.f32 %v610, %v434
          %v612 = vadd.f32 %v611, %v436
          %v613 = vadd.f32 %v612, %v438
          %v614 = vadd.f32 %v613, %v440
          %v615 = vadd.f32 %v614, %v442
          %v616 = vadd.f32 %v615, %v444
          %v617 = vadd.f32 %v616, %v446
          %v618 = vadd.f32 %v617, %v448
          %v619 = vadd.f32 %v618, %v450
          %v620 = vadd.f32 %v619, %v452
          %v621 = vadd.f32 %v620, %v454
          %v622 = vadd.f32 %v621, %v456
          %v623 = vadd.f32 %v622, %v458
          %v624 = vadd.f32 %v623, %v460
          %v625 = vadd.f32 %v624, %v462
          %v626 = vadd.f32 %v625, %v464
          %v627 = vadd.f32 %v626, %v466
          %v628 = vadd.f32 %v627, %v468
          %v629 = vadd.f32 %v628, %v470
          %v630 = vadd.f32 %v629, %v472
          %v631 = vadd.f32 %v630, %v474
          %v632 = vadd.f32 %v631, %v476
          %v633 = vadd.f32 %v632, %v478
          %v634 = vadd.f32 %v633, %v480
          %v635 = vadd.f32 %v634, %v482
          %v636 = vadd.f32 %v635, %v484
          %v637 = vadd.f32 %v636, %v486
          %v638 = vadd.f32 %v637, %v488
          %v639 = vadd.f32 %v638, %v490
          %v640 = vadd.f32 %v639, %v492
          %v641 = vadd.f32 %v640, %v494
          %v642 = vadd.f32 %v641, %v496
          %v643 = vadd.f32 %v642, %v498
          %v644 = vadd.f32 %v643, %v500
          %v645 = vadd.f32 %v644, %v502
          %v646 = vadd.f32 %v645, %v504
          %v647 = vadd.f32 %v646, %v506
          %v648 = vadd.f32 %v647, %v508
          %v649 = vadd.f32 %v648, %v510
          %v650 = vadd.f32 %v649, %v512
          %v651 = vadd.f32 %v650, %v514
          %v652 = vadd.f32 %v651, %v516
          %v653 = vadd.f32 %v652, %v518
          %v654 = vadd.f32 %v653, %v520
          %v655 = vadd.f32 %v654, %v522
          %v656 = vadd.f32 %v655, %v524
          %v657 = vadd.f32 %v656, %v526
          %v658 = vadd.f32 %v657, %v528
          %v659 = vadd.f32 %v658, %v530
          %v660 = vadd.f32 %v659, %v532
          %v661 = vrot.slane %v660, 4
          %v662 = vadd.f32 %v660, %v661
          %v663 = vrot.slane %v662, 2
          %v664 = vadd.f32 %v662, %v663
          %v665 = vrot.slane %v664, 1
          %v666 = vadd.f32 %v664, %v665
          %v667 = vadd.f32 %v279, %v281
          %v668 = vadd.f32 %v667, %v283
          %v669 = vadd.f32 %v668, %v285
          %v670 = vadd.f32 %v669, %v287
          %v671 = vadd.f32 %v670, %v289
          %v672 = vadd.f32 %v671, %v291
          %v673 = vadd.f32 %v672, %v293
          %v674 = vadd.f32 %v673, %v295
          %v675 = vadd.f32 %v674, %v297
          %v676 = vadd.f32 %v675, %v299
          %v677 = vadd.f32 %v676, %v301
          %v678 = vadd.f32 %v677, %v303
          %v679 = vadd.f32 %v678, %v305
          %v680 = vadd.f32 %v679, %v307
          %v681 = vadd.f32 %v680, %v309
          %v682 = vadd.f32 %v681, %v311
          %v683 = vadd.f32 %v682, %v313
          %v684 = vadd.f32 %v683, %v315
          %v685 = vadd.f32 %v684, %v317
          %v686 = vadd.f32 %v685, %v319
          %v687 = vadd.f32 %v686, %v321
          %v688 = vadd.f32 %v687, %v323
          %v689 = vadd.f32 %v688, %v325
          %v690 = vadd.f32 %v689, %v327
          %v691 = vadd.f32 %v690, %v329
          %v692 = vadd.f32 %v691, %v331
          %v693 = vadd.f32 %v692, %v333
          %v694 = vadd.f32 %v693, %v335
          %v695 = vadd.f32 %v694, %v337
          %v696 = vadd.f32 %v695, %v339
          %v697 = vadd.f32 %v696, %v341
          %v698 = vadd.f32 %v697, %v343
          %v699 = vadd.f32 %v698, %v345
          %v700 = vadd.f32 %v699, %v347
          %v701 = vadd.f32 %v700, %v349
          %v702 = vadd.f32 %v701, %v351
          %v703 = vadd.f32 %v702, %v353
          %v704 = vadd.f32 %v703, %v355
          %v705 = vadd.f32 %v704, %v357
          %v706 = vadd.f32 %v705, %v359
          %v707 = vadd.f32 %v706, %v361
          %v708 = vadd.f32 %v707, %v363
          %v709 = vadd.f32 %v708, %v365
          %v710 = vadd.f32 %v709, %v367
          %v711 = vadd.f32 %v710, %v369
          %v712 = vadd.f32 %v711, %v371
          %v713 = vadd.f32 %v712, %v373
          %v714 = vadd.f32 %v713, %v375
          %v715 = vadd.f32 %v714, %v377
          %v716 = vadd.f32 %v715, %v379
          %v717 = vadd.f32 %v716, %v381
          %v718 = vadd.f32 %v717, %v383
          %v719 = vadd.f32 %v718, %v385
          %v720 = vadd.f32 %v719, %v387
          %v721 = vadd.f32 %v720, %v389
          %v722 = vadd.f32 %v721, %v391
          %v723 = vadd.f32 %v722, %v393
          %v724 = vadd.f32 %v723, %v395
          %v725 = vadd.f32 %v724, %v397
          %v726 = vadd.f32 %v725, %v399
          %v727 = vadd.f32 %v726, %v401
          %v728 = vadd.f32 %v727, %v403
          %v729 = vadd.f32 %v728, %v405
          %v730 = vadd.f32 %v729, %v407
          %v731 = vadd.f32 %v730, %v409
          %v732 = vadd.f32 %v731, %v411
          %v733 = vadd.f32 %v732, %v413
          %v734 = vadd.f32 %v733, %v415
          %v735 = vadd.f32 %v734, %v417
          %v736 = vadd.f32 %v735, %v419
          %v737 = vadd.f32 %v736, %v421
          %v738 = vadd.f32 %v737, %v423
          %v739 = vadd.f32 %v738, %v425
          %v740 = vadd.f32 %v739, %v427
          %v741 = vadd.f32 %v740, %v429
          %v742 = vadd.f32 %v741, %v431
          %v743 = vadd.f32 %v742, %v433
          %v744 = vadd.f32 %v743, %v435
          %v745 = vadd.f32 %v744, %v437
          %v746 = vadd.f32 %v745, %v439
          %v747 = vadd.f32 %v746, %v441
          %v748 = vadd.f32 %v747, %v443
          %v749 = vadd.f32 %v748, %v445
          %v750 = vadd.f32 %v749, %v447
          %v751 = vadd.f32 %v750, %v449
          %v752 = vadd.f32 %v751, %v451
          %v753 = vadd.f32 %v752, %v453
          %v754 = vadd.f32 %v753, %v455
          %v755 = vadd.f32 %v754, %v457
          %v756 = vadd.f32 %v755, %v459
          %v757 = vadd.f32 %v756, %v461
          %v758 = vadd.f32 %v757, %v463
          %v759 = vadd.f32 %v758, %v465
          %v760 = vadd.f32 %v759, %v467
          %v761 = vadd.f32 %v760, %v469
          %v762 = vadd.f32 %v761, %v471
          %v763 = vadd.f32 %v762, %v473
          %v764 = vadd.f32 %v763, %v475
          %v765 = vadd.f32 %v764, %v477
          %v766 = vadd.f32 %v765, %v479
          %v767 = vadd.f32 %v766, %v481
          %v768 = vadd.f32 %v767, %v483
          %v769 = vadd.f32 %v768, %v485
          %v770 = vadd.f32 %v769, %v487
          %v771 = vadd.f32 %v770, %v489
          %v772 = vadd.f32 %v771, %v491
          %v773 = vadd.f32 %v772, %v493
          %v774 = vadd.f32 %v773, %v495
          %v775 = vadd.f32 %v774, %v497
          %v776 = vadd.f32 %v775, %v499
          %v777 = vadd.f32 %v776, %v501
          %v778 = vadd.f32 %v777, %v503
          %v779 = vadd.f32 %v778, %v505
          %v780 = vadd.f32 %v779, %v507
          %v781 = vadd.f32 %v780, %v509
          %v782 = vadd.f32 %v781, %v511
          %v783 = vadd.f32 %v782, %v513
          %v784 = vadd.f32 %v783, %v515
          %v785 = vadd.f32 %v784, %v517
          %v786 = vadd.f32 %v785, %v519
          %v787 = vadd.f32 %v786, %v521
          %v788 = vadd.f32 %v787, %v523
          %v789 = vadd.f32 %v788, %v525
          %v790 = vadd.f32 %v789, %v527
          %v791 = vadd.f32 %v790, %v529
          %v792 = vadd.f32 %v791, %v531
          %v793 = vadd.f32 %v792, %v533
          %v794 = vrot.slane %v793, 4
          %v795 = vadd.f32 %v793, %v794
          %v796 = vrot.slane %v795, 2
          %v797 = vadd.f32 %v795, %v796
          %v798 = vrot.slane %v797, 1
          %v799 = vadd.f32 %v797, %v798
          %v800 = vmul.f32 %v666, 0.0009765625
          %v801 = vmul.f32 %v799, 0.0009765625
          %v802 = vsub.f32 %v278, %v800
          %v803 = vsub.f32 %v279, %v801
          %v804 = vsub.f32 %v280, %v800
          %v805 = vsub.f32 %v281, %v801
          %v806 = vsub.f32 %v282, %v800
          %v807 = vsub.f32 %v283, %v801
          %v808 = vsub.f32 %v284, %v800
          %v809 = vsub.f32 %v285, %v801
          %v810 = vsub.f32 %v286, %v800
          %v811 = vsub.f32 %v287, %v801
          %v812 = vsub.f32 %v288, %v800
          %v813 = vsub.f32 %v289, %v801
          %v814 = vsub.f32 %v290, %v800
          %v815 = vsub.f32 %v291, %v801
          %v816 = vsub.f32 %v292, %v800
          %v817 = vsub.f32 %v293, %v801
          %v818 = vsub.f32 %v294, %v800
          %v819 = vsub.f32 %v295, %v801
          %v820 = vsub.f32 %v296, %v800
          %v821 = vsub.f32 %v297, %v801
          %v822 = vsub.f32 %v298, %v800
          %v823 = vsub.f32 %v299, %v801
          %v824 = vsub.f32 %v300, %v800
          %v825 = vsub.f32 %v301, %v801
          %v826 = vsub.f32 %v302, %v800
          %v827 = vsub.f32 %v303, %v801
          %v828 = vsub.f32 %v304, %v800
          %v829 = vsub.f32 %v305, %v801
          %v830 = vsub.f32 %v306, %v800
          %v831 = vsub.f32 %v307, %v801
          %v832 = vsub.f32 %v308, %v800
          %v833 = vsub.f32 %v309, %v801
          %v834 = vsub.f32 %v310, %v800
          %v835 = vsub.f32 %v311, %v801
          %v836 = vsub.f32 %v312, %v800
          %v837 = vsub.f32 %v313, %v801
          %v838 = vsub.f32 %v314, %v800
          %v839 = vsub.f32 %v315, %v801
          %v840 = vsub.f32 %v316, %v800
          %v841 = vsub.f32 %v317, %v801
          %v842 = vsub.f32 %v318, %v800
          %v843 = vsub.f32 %v319, %v801
          %v844 = vsub.f32 %v320, %v800
          %v845 = vsub.f32 %v321, %v801
          %v846 = vsub.f32 %v322, %v800
          %v847 = vsub.f32 %v323, %v801
          %v848 = vsub.f32 %v324, %v800
          %v849 = vsub.f32 %v325, %v801
          %v850 = vsub.f32 %v326, %v800
          %v851 = vsub.f32 %v327, %v801
          %v852 = vsub.f32 %v328, %v800
          %v853 = vsub.f32 %v329, %v801
          %v854 = vsub.f32 %v330, %v800
          %v855 = vsub.f32 %v331, %v801
          %v856 = vsub.f32 %v332, %v800
          %v857 = vsub.f32 %v333, %v801
          %v858 = vsub.f32 %v334, %v800
          %v859 = vsub.f32 %v335, %v801
          %v860 = vsub.f32 %v336, %v800
          %v861 = vsub.f32 %v337, %v801
          %v862 = vsub.f32 %v338, %v800
          %v863 = vsub.f32 %v339, %v801
          %v864 = vsub.f32 %v340, %v800
          %v865 = vsub.f32 %v341, %v801
          %v866 = vsub.f32 %v342, %v800
          %v867 = vsub.f32 %v343, %v801
          %v868 = vsub.f32 %v344, %v800
          %v869 = vsub.f32 %v345, %v801
          %v870 = vsub.f32 %v346, %v800
          %v871 = vsub.f32 %v347, %v801
          %v872 = vsub.f32 %v348, %v800
          %v873 = vsub.f32 %v349, %v801
          %v874 = vsub.f32 %v350, %v800
          %v875 = vsub.f32 %v351, %v801
          %v876 = vsub.f32 %v352, %v800
          %v877 = vsub.f32 %v353, %v801
          %v878 = vsub.f32 %v354, %v800
          %v879 = vsub.f32 %v355, %v801
          %v880 = vsub.f32 %v356, %v800
          %v881 = vsub.f32 %v357, %v801
          %v882 = vsub.f32 %v358, %v800
          %v883 = vsub.f32 %v359, %v801
          %v884 = vsub.f32 %v360, %v800
          %v885 = vsub.f32 %v361, %v801
          %v886 = vsub.f32 %v362, %v800
          %v887 = vsub.f32 %v363, %v801
          %v888 = vsub.f32 %v364, %v800
          %v889 = vsub.f32 %v365, %v801
          %v890 = vsub.f32 %v366, %v800
          %v891 = vsub.f32 %v367, %v801
          %v892 = vsub.f32 %v368, %v800
          %v893 = vsub.f32 %v369, %v801
          %v894 = vsub.f32 %v370, %v800
          %v895 = vsub.f32 %v371, %v801
          %v896 = vsub.f32 %v372, %v800
          %v897 = vsub.f32 %v373, %v801
          %v898 = vsub.f32 %v374, %v800
          %v899 = vsub.f32 %v375, %v801
          %v900 = vsub.f32 %v376, %v800
          %v901 = vsub.f32 %v377, %v801
          %v902 = vsub.f32 %v378, %v800
          %v903 = vsub.f32 %v379, %v801
          %v904 = vsub.f32 %v380, %v800
          %v905 = vsub.f32 %v381, %v801
          %v906 = vsub.f32 %v382, %v800
          %v907 = vsub.f32 %v383, %v801
          %v908 = vsub.f32 %v384, %v800
          %v909 = vsub.f32 %v385, %v801
          %v910 = vsub.f32 %v386, %v800
          %v911 = vsub.f32 %v387, %v801
          %v912 = vsub.f32 %v388, %v800
          %v913 = vsub.f32 %v389, %v801
          %v914 = vsub.f32 %v390, %v800
          %v915 = vsub.f32 %v391, %v801
          %v916 = vsub.f32 %v392, %v800
          %v917 = vsub.f32 %v393, %v801
          %v918 = vsub.f32 %v394, %v800
          %v919 = vsub.f32 %v395, %v801
          %v920 = vsub.f32 %v396, %v800
          %v921 = vsub.f32 %v397, %v801
          %v922 = vsub.f32 %v398, %v800
          %v923 = vsub.f32 %v399, %v801
          %v924 = vsub.f32 %v400, %v800
          %v925 = vsub.f32 %v401, %v801
          %v926 = vsub.f32 %v402, %v800
          %v927 = vsub.f32 %v403, %v801
          %v928 = vsub.f32 %v404, %v800
          %v929 = vsub.f32 %v405, %v801
          %v930 = vsub.f32 %v406, %v800
          %v931 = vsub.f32 %v407, %v801
          %v932 = vsub.f32 %v408, %v800
          %v933 = vsub.f32 %v409, %v801
          %v934 = vsub.f32 %v410, %v800
          %v935 = vsub.f32 %v411, %v801
          %v936 = vsub.f32 %v412, %v800
          %v937 = vsub.f32 %v413, %v801
          %v938 = vsub.f32 %v414, %v800
          %v939 = vsub.f32 %v415, %v801
          %v940 = vsub.f32 %v416, %v800
          %v941 = vsub.f32 %v417, %v801
          %v942 = vsub.f32 %v418, %v800
          %v943 = vsub.f32 %v419, %v801
          %v944 = vsub.f32 %v420, %v800
          %v945 = vsub.f32 %v421, %v801
          %v946 = vsub.f32 %v422, %v800
          %v947 = vsub.f32 %v423, %v801
          %v948 = vsub.f32 %v424, %v800
          %v949 = vsub.f32 %v425, %v801
          %v950 = vsub.f32 %v426, %v800
          %v951 = vsub.f32 %v427, %v801
          %v952 = vsub.f32 %v428, %v800
          %v953 = vsub.f32 %v429, %v801
          %v954 = vsub.f32 %v430, %v800
          %v955 = vsub.f32 %v431, %v801
          %v956 = vsub.f32 %v432, %v800
          %v957 = vsub.f32 %v433, %v801
          %v958 = vsub.f32 %v434, %v800
          %v959 = vsub.f32 %v435, %v801
          %v960 = vsub.f32 %v436, %v800
          %v961 = vsub.f32 %v437, %v801
          %v962 = vsub.f32 %v438, %v800
          %v963 = vsub.f32 %v439, %v801
          %v964 = vsub.f32 %v440, %v800
          %v965 = vsub.f32 %v441, %v801
          %v966 = vsub.f32 %v442, %v800
          %v967 = vsub.f32 %v443, %v801
          %v968 = vsub.f32 %v444, %v800
          %v969 = vsub.f32 %v445, %v801
          %v970 = vsub.f32 %v446, %v800
          %v971 = vsub.f32 %v447, %v801
          %v972 = vsub.f32 %v448, %v800
          %v973 = vsub.f32 %v449, %v801
          %v974 = vsub.f32 %v450, %v800
          %v975 = vsub.f32 %v451, %v801
          %v976 = vsub.f32 %v452, %v800
          %v977 = vsub.f32 %v453, %v801
          %v978 = vsub.f32 %v454, %v800
          %v979 = vsub.f32 %v455, %v801
          %v980 = vsub.f32 %v456, %v800
          %v981 = vsub.f32 %v457, %v801
          %v982 = vsub.f32 %v458, %v800
          %v983 = vsub.f32 %v459, %v801
          %v984 = vsub.f32 %v460, %v800
          %v985 = vsub.f32 %v461, %v801
          %v986 = vsub.f32 %v462, %v800
          %v987 = vsub.f32 %v463, %v801
          %v988 = vsub.f32 %v464, %v800
          %v989 = vsub.f32 %v465, %v801
          %v990 = vsub.f32 %v466, %v800
          %v991 = vsub.f32 %v467, %v801
          %v992 = vsub.f32 %v468, %v800
          %v993 = vsub.f32 %v469, %v801
          %v994 = vsub.f32 %v470, %v800
          %v995 = vsub.f32 %v471, %v801
          %v996 = vsub.f32 %v472, %v800
          %v997 = vsub.f32 %v473, %v801
          %v998 = vsub.f32 %v474, %v800
          %v999 = vsub.f32 %v475, %v801
          %v1000 = vsub.f32 %v476, %v800
          %v1001 = vsub.f32 %v477, %v801
          %v1002 = vsub.f32 %v478, %v800
          %v1003 = vsub.f32 %v479, %v801
          %v1004 = vsub.f32 %v480, %v800
          %v1005 = vsub.f32 %v481, %v801
          %v1006 = vsub.f32 %v482, %v800
          %v1007 = vsub.f32 %v483, %v801
          %v1008 = vsub.f32 %v484, %v800
          %v1009 = vsub.f32 %v485, %v801
          %v1010 = vsub.f32 %v486, %v800
          %v1011 = vsub.f32 %v487, %v801
          %v1012 = vsub.f32 %v488, %v800
          %v1013 = vsub.f32 %v489, %v801
          %v1014 = vsub.f32 %v490, %v800
          %v1015 = vsub.f32 %v491, %v801
          %v1016 = vsub.f32 %v492, %v800
          %v1017 = vsub.f32 %v493, %v801
          %v1018 = vsub.f32 %v494, %v800
          %v1019 = vsub.f32 %v495, %v801
          %v1020 = vsub.f32 %v496, %v800
          %v1021 = vsub.f32 %v497, %v801
          %v1022 = vsub.f32 %v498, %v800
          %v1023 = vsub.f32 %v499, %v801
          %v1024 = vsub.f32 %v500, %v800
          %v1025 = vsub.f32 %v501, %v801
          %v1026 = vsub.f32 %v502, %v800
          %v1027 = vsub.f32 %v503, %v801
          %v1028 = vsub.f32 %v504, %v800
          %v1029 = vsub.f32 %v505, %v801
          %v1030 = vsub.f32 %v506, %v800
          %v1031 = vsub.f32 %v507, %v801
          %v1032 = vsub.f32 %v508, %v800
          %v1033 = vsub.f32 %v509, %v801
          %v1034 = vsub.f32 %v510, %v800
          %v1035 = vsub.f32 %v511, %v801
          %v1036 = vsub.f32 %v512, %v800
          %v1037 = vsub.f32 %v513, %v801
          %v1038 = vsub.f32 %v514, %v800
          %v1039 = vsub.f32 %v515, %v801
          %v1040 = vsub.f32 %v516, %v800
          %v1041 = vsub.f32 %v517, %v801
          %v1042 = vsub.f32 %v518, %v800
          %v1043 = vsub.f32 %v519, %v801
          %v1044 = vsub.f32 %v520, %v800
          %v1045 = vsub.f32 %v521, %v801
          %v1046 = vsub.f32 %v522, %v800
          %v1047 = vsub.f32 %v523, %v801
          %v1048 = vsub.f32 %v524, %v800
          %v1049 = vsub.f32 %v525, %v801
          %v1050 = vsub.f32 %v526, %v800
          %v1051 = vsub.f32 %v527, %v801
          %v1052 = vsub.f32 %v528, %v800
          %v1053 = vsub.f32 %v529, %v801
          %v1054 = vsub.f32 %v530, %v800
          %v1055 = vsub.f32 %v531, %v801
          %v1056 = vsub.f32 %v532, %v800
          %v1057 = vsub.f32 %v533, %v801
          %v1058 = vmul.f32 %v802, %v802
          %v1059 = vmul.f32 %v803, %v803
          %v1060 = vmul.f32 %v804, %v804
          %v1061 = vmul.f32 %v805, %v805
          %v1062 = vmul.f32 %v806, %v806
          %v1063 = vmul.f32 %v807, %v807
          %v1064 = vmul.f32 %v808, %v808
          %v1065 = vmul.f32 %v809, %v809
          %v1066 = vmul.f32 %v810, %v810
          %v1067 = vmul.f32 %v811, %v811
          %v1068 = vmul.f32 %v812, %v812
          %v1069 = vmul.f32 %v813, %v813
          %v1070 = vmul.f32 %v814, %v814
          %v1071 = vmul.f32 %v815, %v815
          %v1072 = vmul.f32 %v816, %v816
          %v1073 = vmul.f32 %v817, %v817
          %v1074 = vmul.f32 %v818, %v818
          %v1075 = vmul.f32 %v819, %v819
          %v1076 = vmul.f32 %v820, %v820
          %v1077 = vmul.f32 %v821, %v821
          %v1078 = vmul.f32 %v822, %v822
          %v1079 = vmul.f32 %v823, %v823
          %v1080 = vmul.f32 %v824, %v824
          %v1081 = vmul.f32 %v825, %v825
          %v1082 = vmul.f32 %v826, %v826
          %v1083 = vmul.f32 %v827, %v827
          %v1084 = vmul.f32 %v828, %v828
          %v1085 = vmul.f32 %v829, %v829
          %v1086 = vmul.f32 %v830, %v830
          %v1087 = vmul.f32 %v831, %v831
          %v1088 = vmul.f32 %v832, %v832
          %v1089 = vmul.f32 %v833, %v833
          %v1090 = vmul.f32 %v834, %v834
          %v1091 = vmul.f32 %v835, %v835
          %v1092 = vmul.f32 %v836, %v836
          %v1093 = vmul.f32 %v837, %v837
          %v1094 = vmul.f32 %v838, %v838
          %v1095 = vmul.f32 %v839, %v839
          %v1096 = vmul.f32 %v840, %v840
          %v1097 = vmul.f32 %v841, %v841
          %v1098 = vmul.f32 %v842, %v842
          %v1099 = vmul.f32 %v843, %v843
          %v1100 = vmul.f32 %v844, %v844
          %v1101 = vmul.f32 %v845, %v845
          %v1102 = vmul.f32 %v846, %v846
          %v1103 = vmul.f32 %v847, %v847
          %v1104 = vmul.f32 %v848, %v848
          %v1105 = vmul.f32 %v849, %v849
          %v1106 = vmul.f32 %v850, %v850
          %v1107 = vmul.f32 %v851, %v851
          %v1108 = vmul.f32 %v852, %v852
          %v1109 = vmul.f32 %v853, %v853
          %v1110 = vmul.f32 %v854, %v854
          %v1111 = vmul.f32 %v855, %v855
          %v1112 = vmul.f32 %v856, %v856
          %v1113 = vmul.f32 %v857, %v857
          %v1114 = vmul.f32 %v858, %v858
          %v1115 = vmul.f32 %v859, %v859
          %v1116 = vmul.f32 %v860, %v860
          %v1117 = vmul.f32 %v861, %v861
          %v1118 = vmul.f32 %v862, %v862
          %v1119 = vmul.f32 %v863, %v863
          %v1120 = vmul.f32 %v864, %v864
          %v1121 = vmul.f32 %v865, %v865
          %v1122 = vmul.f32 %v866, %v866
          %v1123 = vmul.f32 %v867, %v867
          %v1124 = vmul.f32 %v868, %v868
          %v1125 = vmul.f32 %v869, %v869
          %v1126 = vmul.f32 %v870, %v870
          %v1127 = vmul.f32 %v871, %v871
          %v1128 = vmul.f32 %v872, %v872
          %v1129 = vmul.f32 %v873, %v873
          %v1130 = vmul.f32 %v874, %v874
          %v1131 = vmul.f32 %v875, %v875
          %v1132 = vmul.f32 %v876, %v876
          %v1133 = vmul.f32 %v877, %v877
          %v1134 = vmul.f32 %v878, %v878
          %v1135 = vmul.f32 %v879, %v879
          %v1136 = vmul.f32 %v880, %v880
          %v1137 = vmul.f32 %v881, %v881
          %v1138 = vmul.f32 %v882, %v882
          %v1139 = vmul.f32 %v883, %v883
          %v1140 = vmul.f32 %v884, %v884
          %v1141 = vmul.f32 %v885, %v885
          %v1142 = vmul.f32 %v886, %v886
          %v1143 = vmul.f32 %v887, %v887
          %v1144 = vmul.f32 %v888, %v888
          %v1145 = vmul.f32 %v889, %v889
          %v1146 = vmul.f32 %v890, %v890
          %v1147 = vmul.f32 %v891, %v891
          %v1148 = vmul.f32 %v892, %v892
          %v1149 = vmul.f32 %v893, %v893
          %v1150 = vmul.f32 %v894, %v894
          %v1151 = vmul.f32 %v895, %v895
          %v1152 = vmul.f32 %v896, %v896
          %v1153 = vmul.f32 %v897, %v897
          %v1154 = vmul.f32 %v898, %v898
          %v1155 = vmul.f32 %v899, %v899
          %v1156 = vmul.f32 %v900, %v900
          %v1157 = vmul.f32 %v901, %v901
          %v1158 = vmul.f32 %v902, %v902
          %v1159 = vmul.f32 %v903, %v903
          %v1160 = vmul.f32 %v904, %v904
          %v1161 = vmul.f32 %v905, %v905
          %v1162 = vmul.f32 %v906, %v906
          %v1163 = vmul.f32 %v907, %v907
          %v1164 = vmul.f32 %v908, %v908
          %v1165 = vmul.f32 %v909, %v909
          %v1166 = vmul.f32 %v910, %v910
          %v1167 = vmul.f32 %v911, %v911
          %v1168 = vmul.f32 %v912, %v912
          %v1169 = vmul.f32 %v913, %v913
          %v1170 = vmul.f32 %v914, %v914
          %v1171 = vmul.f32 %v915, %v915
          %v1172 = vmul.f32 %v916, %v916
          %v1173 = vmul.f32 %v917, %v917
          %v1174 = vmul.f32 %v918, %v918
          %v1175 = vmul.f32 %v919, %v919
          %v1176 = vmul.f32 %v920, %v920
          %v1177 = vmul.f32 %v921, %v921
          %v1178 = vmul.f32 %v922, %v922
          %v1179 = vmul.f32 %v923, %v923
          %v1180 = vmul.f32 %v924, %v924
          %v1181 = vmul.f32 %v925, %v925
          %v1182 = vmul.f32 %v926, %v926
          %v1183 = vmul.f32 %v927, %v927
          %v1184 = vmul.f32 %v928, %v928
          %v1185 = vmul.f32 %v929, %v929
          %v1186 = vmul.f32 %v930, %v930
          %v1187 = vmul.f32 %v931, %v931
          %v1188 = vmul.f32 %v932, %v932
          %v1189 = vmul.f32 %v933, %v933
          %v1190 = vmul.f32 %v934, %v934
          %v1191 = vmul.f32 %v935, %v935
          %v1192 = vmul.f32 %v936, %v936
          %v1193 = vmul.f32 %v937, %v937
          %v1194 = vmul.f32 %v938, %v938
          %v1195 = vmul.f32 %v939, %v939
          %v1196 = vmul.f32 %v940, %v940
          %v1197 = vmul.f32 %v941, %v941
          %v1198 = vmul.f32 %v942, %v942
          %v1199 = vmul.f32 %v943, %v943
          %v1200 = vmul.f32 %v944, %v944
          %v1201 = vmul.f32 %v945, %v945
          %v1202 = vmul.f32 %v946, %v946
          %v1203 = vmul.f32 %v947, %v947
          %v1204 = vmul.f32 %v948, %v948
          %v1205 = vmul.f32 %v949, %v949
          %v1206 = vmul.f32 %v950, %v950
          %v1207 = vmul.f32 %v951, %v951
          %v1208 = vmul.f32 %v952, %v952
          %v1209 = vmul.f32 %v953, %v953
          %v1210 = vmul.f32 %v954, %v954
          %v1211 = vmul.f32 %v955, %v955
          %v1212 = vmul.f32 %v956, %v956
          %v1213 = vmul.f32 %v957, %v957
          %v1214 = vmul.f32 %v958, %v958
          %v1215 = vmul.f32 %v959, %v959
          %v1216 = vmul.f32 %v960, %v960
          %v1217 = vmul.f32 %v961, %v961
          %v1218 = vmul.f32 %v962, %v962
          %v1219 = vmul.f32 %v963, %v963
          %v1220 = vmul.f32 %v964, %v964
          %v1221 = vmul.f32 %v965, %v965
          %v1222 = vmul.f32 %v966, %v966
          %v1223 = vmul.f32 %v967, %v967
          %v1224 = vmul.f32 %v968, %v968
          %v1225 = vmul.f32 %v969, %v969
          %v1226 = vmul.f32 %v970, %v970
          %v1227 = vmul.f32 %v971, %v971
          %v1228 = vmul.f32 %v972, %v972
          %v1229 = vmul.f32 %v973, %v973
          %v1230 = vmul.f32 %v974, %v974
          %v1231 = vmul.f32 %v975, %v975
          %v1232 = vmul.f32 %v976, %v976
          %v1233 = vmul.f32 %v977, %v977
          %v1234 = vmul.f32 %v978, %v978
          %v1235 = vmul.f32 %v979, %v979
          %v1236 = vmul.f32 %v980, %v980
          %v1237 = vmul.f32 %v981, %v981
          %v1238 = vmul.f32 %v982, %v982
          %v1239 = vmul.f32 %v983, %v983
          %v1240 = vmul.f32 %v984, %v984
          %v1241 = vmul.f32 %v985, %v985
          %v1242 = vmul.f32 %v986, %v986
          %v1243 = vmul.f32 %v987, %v987
          %v1244 = vmul.f32 %v988, %v988
          %v1245 = vmul.f32 %v989, %v989
          %v1246 = vmul.f32 %v990, %v990
          %v1247 = vmul.f32 %v991, %v991
          %v1248 = vmul.f32 %v992, %v992
          %v1249 = vmul.f32 %v993, %v993
          %v1250 = vmul.f32 %v994, %v994
          %v1251 = vmul.f32 %v995, %v995
          %v1252 = vmul.f32 %v996, %v996
          %v1253 = vmul.f32 %v997, %v997
          %v1254 = vmul.f32 %v998, %v998
          %v1255 = vmul.f32 %v999, %v999
          %v1256 = vmul.f32 %v1000, %v1000
          %v1257 = vmul.f32 %v1001, %v1001
          %v1258 = vmul.f32 %v1002, %v1002
          %v1259 = vmul.f32 %v1003, %v1003
          %v1260 = vmul.f32 %v1004, %v1004
          %v1261 = vmul.f32 %v1005, %v1005
          %v1262 = vmul.f32 %v1006, %v1006
          %v1263 = vmul.f32 %v1007, %v1007
          %v1264 = vmul.f32 %v1008, %v1008
          %v1265 = vmul.f32 %v1009, %v1009
          %v1266 = vmul.f32 %v1010, %v1010
          %v1267 = vmul.f32 %v1011, %v1011
          %v1268 = vmul.f32 %v1012, %v1012
          %v1269 = vmul.f32 %v1013, %v1013
          %v1270 = vmul.f32 %v1014, %v1014
          %v1271 = vmul.f32 %v1015, %v1015
          %v1272 = vmul.f32 %v1016, %v1016
          %v1273 = vmul.f32 %v1017, %v1017
          %v1274 = vmul.f32 %v1018, %v1018
          %v1275 = vmul.f32 %v1019, %v1019
          %v1276 = vmul.f32 %v1020, %v1020
          %v1277 = vmul.f32 %v1021, %v1021
          %v1278 = vmul.f32 %v1022, %v1022
          %v1279 = vmul.f32 %v1023, %v1023
          %v1280 = vmul.f32 %v1024, %v1024
          %v1281 = vmul.f32 %v1025, %v1025
          %v1282 = vmul.f32 %v1026, %v1026
          %v1283 = vmul.f32 %v1027, %v1027
          %v1284 = vmul.f32 %v1028, %v1028
          %v1285 = vmul.f32 %v1029, %v1029
          %v1286 = vmul.f32 %v1030, %v1030
          %v1287 = vmul.f32 %v1031, %v1031
          %v1288 = vmul.f32 %v1032, %v1032
          %v1289 = vmul.f32 %v1033, %v1033
          %v1290 = vmul.f32 %v1034, %v1034
          %v1291 = vmul.f32 %v1035, %v1035
          %v1292 = vmul.f32 %v1036, %v1036
          %v1293 = vmul.f32 %v1037, %v1037
          %v1294 = vmul.f32 %v1038, %v1038
          %v1295 = vmul.f32 %v1039, %v1039
          %v1296 = vmul.f32 %v1040, %v1040
          %v1297 = vmul.f32 %v1041, %v1041
          %v1298 = vmul.f32 %v1042, %v1042
          %v1299 = vmul.f32 %v1043, %v1043
          %v1300 = vmul.f32 %v1044, %v1044
          %v1301 = vmul.f32 %v1045, %v1045
          %v1302 = vmul.f32 %v1046, %v1046
          %v1303 = vmul.f32 %v1047, %v1047
          %v1304 = vmul.f32 %v1048, %v1048
          %v1305 = vmul.f32 %v1049, %v1049
          %v1306 = vmul.f32 %v1050, %v1050
          %v1307 = vmul.f32 %v1051, %v1051
          %v1308 = vmul.f32 %v1052, %v1052
          %v1309 = vmul.f32 %v1053, %v1053
          %v1310 = vmul.f32 %v1054, %v1054
          %v1311 = vmul.f32 %v1055, %v1055
          %v1312 = vmul.f32 %v1056, %v1056
          %v1313 = vmul.f32 %v1057, %v1057
          %v1314 = vadd.f32 %v1058, %v1060
          %v1315 = vadd.f32 %v1314, %v1062
          %v1316 = vadd.f32 %v1315, %v1064
          %v1317 = vadd.f32 %v1316, %v1066
          %v1318 = vadd.f32 %v1317, %v1068
          %v1319 = vadd.f32 %v1318, %v1070
          %v1320 = vadd.f32 %v1319, %v1072
          %v1321 = vadd.f32 %v1320, %v1074
          %v1322 = vadd.f32 %v1321, %v1076
          %v1323 = vadd.f32 %v1322, %v1078
          %v1324 = vadd.f32 %v1323, %v1080
          %v1325 = vadd.f32 %v1324, %v1082
          %v1326 = vadd.f32 %v1325, %v1084
          %v1327 = vadd.f32 %v1326, %v1086
          %v1328 = vadd.f32 %v1327, %v1088
          %v1329 = vadd.f32 %v1328, %v1090
          %v1330 = vadd.f32 %v1329, %v1092
          %v1331 = vadd.f32 %v1330, %v1094
          %v1332 = vadd.f32 %v1331, %v1096
          %v1333 = vadd.f32 %v1332, %v1098
          %v1334 = vadd.f32 %v1333, %v1100
          %v1335 = vadd.f32 %v1334, %v1102
          %v1336 = vadd.f32 %v1335, %v1104
          %v1337 = vadd.f32 %v1336, %v1106
          %v1338 = vadd.f32 %v1337, %v1108
          %v1339 = vadd.f32 %v1338, %v1110
          %v1340 = vadd.f32 %v1339, %v1112
          %v1341 = vadd.f32 %v1340, %v1114
          %v1342 = vadd.f32 %v1341, %v1116
          %v1343 = vadd.f32 %v1342, %v1118
          %v1344 = vadd.f32 %v1343, %v1120
          %v1345 = vadd.f32 %v1344, %v1122
          %v1346 = vadd.f32 %v1345, %v1124
          %v1347 = vadd.f32 %v1346, %v1126
          %v1348 = vadd.f32 %v1347, %v1128
          %v1349 = vadd.f32 %v1348, %v1130
          %v1350 = vadd.f32 %v1349, %v1132
          %v1351 = vadd.f32 %v1350, %v1134
          %v1352 = vadd.f32 %v1351, %v1136
          %v1353 = vadd.f32 %v1352, %v1138
          %v1354 = vadd.f32 %v1353, %v1140
          %v1355 = vadd.f32 %v1354, %v1142
          %v1356 = vadd.f32 %v1355, %v1144
          %v1357 = vadd.f32 %v1356, %v1146
          %v1358 = vadd.f32 %v1357, %v1148
          %v1359 = vadd.f32 %v1358, %v1150
          %v1360 = vadd.f32 %v1359, %v1152
          %v1361 = vadd.f32 %v1360, %v1154
          %v1362 = vadd.f32 %v1361, %v1156
          %v1363 = vadd.f32 %v1362, %v1158
          %v1364 = vadd.f32 %v1363, %v1160
          %v1365 = vadd.f32 %v1364, %v1162
          %v1366 = vadd.f32 %v1365, %v1164
          %v1367 = vadd.f32 %v1366, %v1166
          %v1368 = vadd.f32 %v1367, %v1168
          %v1369 = vadd.f32 %v1368, %v1170
          %v1370 = vadd.f32 %v1369, %v1172
          %v1371 = vadd.f32 %v1370, %v1174
          %v1372 = vadd.f32 %v1371, %v1176
          %v1373 = vadd.f32 %v1372, %v1178
          %v1374 = vadd.f32 %v1373, %v1180
          %v1375 = vadd.f32 %v1374, %v1182
          %v1376 = vadd.f32 %v1375, %v1184
          %v1377 = vadd.f32 %v1376, %v1186
          %v1378 = vadd.f32 %v1377, %v1188
          %v1379 = vadd.f32 %v1378, %v1190
          %v1380 = vadd.f32 %v1379, %v1192
          %v1381 = vadd.f32 %v1380, %v1194
          %v1382 = vadd.f32 %v1381, %v1196
          %v1383 = vadd.f32 %v1382, %v1198
          %v1384 = vadd.f32 %v1383, %v1200
          %v1385 = vadd.f32 %v1384, %v1202
          %v1386 = vadd.f32 %v1385, %v1204
          %v1387 = vadd.f32 %v1386, %v1206
          %v1388 = vadd.f32 %v1387, %v1208
          %v1389 = vadd.f32 %v1388, %v1210
          %v1390 = vadd.f32 %v1389, %v1212
          %v1391 = vadd.f32 %v1390, %v1214
          %v1392 = vadd.f32 %v1391, %v1216
          %v1393 = vadd.f32 %v1392, %v1218
          %v1394 = vadd.f32 %v1393, %v1220
          %v1395 = vadd.f32 %v1394, %v1222
          %v1396 = vadd.f32 %v1395, %v1224
          %v1397 = vadd.f32 %v1396, %v1226
          %v1398 = vadd.f32 %v1397, %v1228
          %v1399 = vadd.f32 %v1398, %v1230
          %v1400 = vadd.f32 %v1399, %v1232
          %v1401 = vadd.f32 %v1400, %v1234
          %v1402 = vadd.f32 %v1401, %v1236
          %v1403 = vadd.f32 %v1402, %v1238
          %v1404 = vadd.f32 %v1403, %v1240
          %v1405 = vadd.f32 %v1404, %v1242
          %v1406 = vadd.f32 %v1405, %v1244
          %v1407 = vadd.f32 %v1406, %v1246
          %v1408 = vadd.f32 %v1407, %v1248
          %v1409 = vadd.f32 %v1408, %v1250
          %v1410 = vadd.f32 %v1409, %v1252
          %v1411 = vadd.f32 %v1410, %v1254
          %v1412 = vadd.f32 %v1411, %v1256
          %v1413 = vadd.f32 %v1412, %v1258
          %v1414 = vadd.f32 %v1413, %v1260
          %v1415 = vadd.f32 %v1414, %v1262
          %v1416 = vadd.f32 %v1415, %v1264
          %v1417 = vadd.f32 %v1416, %v1266
          %v1418 = vadd.f32 %v1417, %v1268
          %v1419 = vadd.f32 %v1418, %v1270
          %v1420 = vadd.f32 %v1419, %v1272
          %v1421 = vadd.f32 %v1420, %v1274
          %v1422 = vadd.f32 %v1421, %v1276
          %v1423 = vadd.f32 %v1422, %v1278
          %v1424 = vadd.f32 %v1423, %v1280
          %v1425 = vadd.f32 %v1424, %v1282
          %v1426 = vadd.f32 %v1425, %v1284
          %v1427 = vadd.f32 %v1426, %v1286
          %v1428 = vadd.f32 %v1427, %v1288
          %v1429 = vadd.f32 %v1428, %v1290
          %v1430 = vadd.f32 %v1429, %v1292
          %v1431 = vadd.f32 %v1430, %v1294
          %v1432 = vadd.f32 %v1431, %v1296
          %v1433 = vadd.f32 %v1432, %v1298
          %v1434 = vadd.f32 %v1433, %v1300
          %v1435 = vadd.f32 %v1434, %v1302
          %v1436 = vadd.f32 %v1435, %v1304
          %v1437 = vadd.f32 %v1436, %v1306
          %v1438 = vadd.f32 %v1437, %v1308
          %v1439 = vadd.f32 %v1438, %v1310
          %v1440 = vadd.f32 %v1439, %v1312
          %v1441 = vrot.slane %v1440, 4
          %v1442 = vadd.f32 %v1440, %v1441
          %v1443 = vrot.slane %v1442, 2
          %v1444 = vadd.f32 %v1442, %v1443
          %v1445 = vrot.slane %v1444, 1
          %v1446 = vadd.f32 %v1444, %v1445
          %v1447 = vadd.f32 %v1059, %v1061
          %v1448 = vadd.f32 %v1447, %v1063
          %v1449 = vadd.f32 %v1448, %v1065
          %v1450 = vadd.f32 %v1449, %v1067
          %v1451 = vadd.f32 %v1450, %v1069
          %v1452 = vadd.f32 %v1451, %v1071
          %v1453 = vadd.f32 %v1452, %v1073
          %v1454 = vadd.f32 %v1453, %v1075
          %v1455 = vadd.f32 %v1454, %v1077
          %v1456 = vadd.f32 %v1455, %v1079
          %v1457 = vadd.f32 %v1456, %v1081
          %v1458 = vadd.f32 %v1457, %v1083
          %v1459 = vadd.f32 %v1458, %v1085
          %v1460 = vadd.f32 %v1459, %v1087
          %v1461 = vadd.f32 %v1460, %v1089
          %v1462 = vadd.f32 %v1461, %v1091
          %v1463 = vadd.f32 %v1462, %v1093
          %v1464 = vadd.f32 %v1463, %v1095
          %v1465 = vadd.f32 %v1464, %v1097
          %v1466 = vadd.f32 %v1465, %v1099
          %v1467 = vadd.f32 %v1466, %v1101
          %v1468 = vadd.f32 %v1467, %v1103
          %v1469 = vadd.f32 %v1468, %v1105
          %v1470 = vadd.f32 %v1469, %v1107
          %v1471 = vadd.f32 %v1470, %v1109
          %v1472 = vadd.f32 %v1471, %v1111
          %v1473 = vadd.f32 %v1472, %v1113
          %v1474 = vadd.f32 %v1473, %v1115
          %v1475 = vadd.f32 %v1474, %v1117
          %v1476 = vadd.f32 %v1475, %v1119
          %v1477 = vadd.f32 %v1476, %v1121
          %v1478 = vadd.f32 %v1477, %v1123
          %v1479 = vadd.f32 %v1478, %v1125
          %v1480 = vadd.f32 %v1479, %v1127
          %v1481 = vadd.f32 %v1480, %v1129
          %v1482 = vadd.f32 %v1481, %v1131
          %v1483 = vadd.f32 %v1482, %v1133
          %v1484 = vadd.f32 %v1483, %v1135
          %v1485 = vadd.f32 %v1484, %v1137
          %v1486 = vadd.f32 %v1485, %v1139
          %v1487 = vadd.f32 %v1486, %v1141
          %v1488 = vadd.f32 %v1487, %v1143
          %v1489 = vadd.f32 %v1488, %v1145
          %v1490 = vadd.f32 %v1489, %v1147
          %v1491 = vadd.f32 %v1490, %v1149
          %v1492 = vadd.f32 %v1491, %v1151
          %v1493 = vadd.f32 %v1492, %v1153
          %v1494 = vadd.f32 %v1493, %v1155
          %v1495 = vadd.f32 %v1494, %v1157
          %v1496 = vadd.f32 %v1495, %v1159
          %v1497 = vadd.f32 %v1496, %v1161
          %v1498 = vadd.f32 %v1497, %v1163
          %v1499 = vadd.f32 %v1498, %v1165
          %v1500 = vadd.f32 %v1499, %v1167
          %v1501 = vadd.f32 %v1500, %v1169
          %v1502 = vadd.f32 %v1501, %v1171
          %v1503 = vadd.f32 %v1502, %v1173
          %v1504 = vadd.f32 %v1503, %v1175
          %v1505 = vadd.f32 %v1504, %v1177
          %v1506 = vadd.f32 %v1505, %v1179
          %v1507 = vadd.f32 %v1506, %v1181
          %v1508 = vadd.f32 %v1507, %v1183
          %v1509 = vadd.f32 %v1508, %v1185
          %v1510 = vadd.f32 %v1509, %v1187
          %v1511 = vadd.f32 %v1510, %v1189
          %v1512 = vadd.f32 %v1511, %v1191
          %v1513 = vadd.f32 %v1512, %v1193
          %v1514 = vadd.f32 %v1513, %v1195
          %v1515 = vadd.f32 %v1514, %v1197
          %v1516 = vadd.f32 %v1515, %v1199
          %v1517 = vadd.f32 %v1516, %v1201
          %v1518 = vadd.f32 %v1517, %v1203
          %v1519 = vadd.f32 %v1518, %v1205
          %v1520 = vadd.f32 %v1519, %v1207
          %v1521 = vadd.f32 %v1520, %v1209
          %v1522 = vadd.f32 %v1521, %v1211
          %v1523 = vadd.f32 %v1522, %v1213
          %v1524 = vadd.f32 %v1523, %v1215
          %v1525 = vadd.f32 %v1524, %v1217
          %v1526 = vadd.f32 %v1525, %v1219
          %v1527 = vadd.f32 %v1526, %v1221
          %v1528 = vadd.f32 %v1527, %v1223
          %v1529 = vadd.f32 %v1528, %v1225
          %v1530 = vadd.f32 %v1529, %v1227
          %v1531 = vadd.f32 %v1530, %v1229
          %v1532 = vadd.f32 %v1531, %v1231
          %v1533 = vadd.f32 %v1532, %v1233
          %v1534 = vadd.f32 %v1533, %v1235
          %v1535 = vadd.f32 %v1534, %v1237
          %v1536 = vadd.f32 %v1535, %v1239
          %v1537 = vadd.f32 %v1536, %v1241
          %v1538 = vadd.f32 %v1537, %v1243
          %v1539 = vadd.f32 %v1538, %v1245
          %v1540 = vadd.f32 %v1539, %v1247
          %v1541 = vadd.f32 %v1540, %v1249
          %v1542 = vadd.f32 %v1541, %v1251
          %v1543 = vadd.f32 %v1542, %v1253
          %v1544 = vadd.f32 %v1543, %v1255
          %v1545 = vadd.f32 %v1544, %v1257
          %v1546 = vadd.f32 %v1545, %v1259
          %v1547 = vadd.f32 %v1546, %v1261
          %v1548 = vadd.f32 %v1547, %v1263
          %v1549 = vadd.f32 %v1548, %v1265
          %v1550 = vadd.f32 %v1549, %v1267
          %v1551 = vadd.f32 %v1550, %v1269
          %v1552 = vadd.f32 %v1551, %v1271
          %v1553 = vadd.f32 %v1552, %v1273
          %v1554 = vadd.f32 %v1553, %v1275
          %v1555 = vadd.f32 %v1554, %v1277
          %v1556 = vadd.f32 %v1555, %v1279
          %v1557 = vadd.f32 %v1556, %v1281
          %v1558 = vadd.f32 %v1557, %v1283
          %v1559 = vadd.f32 %v1558, %v1285
          %v1560 = vadd.f32 %v1559, %v1287
          %v1561 = vadd.f32 %v1560, %v1289
          %v1562 = vadd.f32 %v1561, %v1291
          %v1563 = vadd.f32 %v1562, %v1293
          %v1564 = vadd.f32 %v1563, %v1295
          %v1565 = vadd.f32 %v1564, %v1297
          %v1566 = vadd.f32 %v1565, %v1299
          %v1567 = vadd.f32 %v1566, %v1301
          %v1568 = vadd.f32 %v1567, %v1303
          %v1569 = vadd.f32 %v1568, %v1305
          %v1570 = vadd.f32 %v1569, %v1307
          %v1571 = vadd.f32 %v1570, %v1309
          %v1572 = vadd.f32 %v1571, %v1311
          %v1573 = vadd.f32 %v1572, %v1313
          %v1574 = vrot.slane %v1573, 4
          %v1575 = vadd.f32 %v1573, %v1574
          %v1576 = vrot.slane %v1575, 2
          %v1577 = vadd.f32 %v1575, %v1576
          %v1578 = vrot.slane %v1577, 1
          %v1579 = vadd.f32 %v1577, %v1578
          %v1580 = vmul.f32 %v1446, 0.0009765625
          %v1581 = vmul.f32 %v1579, 0.0009765625
          %v1582 = vld [vmem:[#allocation6] ss:$2 sm:$0x3]
          %v1583 = vadd.f32 %v1580, 1e-05
          %v1584 = vadd.f32 %v1581, 1e-05
          %v1585 = vrsqrt.pop %v1583
          %v1586 = vrsqrt.pop %v1584
          %v1589 = vcombine.low %v1585, %v1586
          %v1591 = vunpack.c.l.s4 1966171168
          %v1592 = vunpack.c.0.s8 %v1591
          %v1593 = vlaneseq
          %v1594 = vshrl.u32 %v1593, 7
          %v1595 = vsub.s32 %v1592, %v1594
          %v1596 = vrot.slane %v1589, %v1595
          %v1598 = vunpack.c.l.s4 1966171168
          %v1599 = vunpack.c.0.s8 %v1598
          %v1600 = vlaneseq
          %v1601 = vshrl.u32 %v1600, 7
          %v1602 = vsub.s32 %v1599, %v1601
          %v1603 = vrot.slane %v1596, %v1602
          %v1605 = vmul.f32 %v1582, %v1603
          %v1606 = vlaneseq
          %vm1607 = vcmp.ge.s32.totalorder %v1606, 0
          %vm1608 = vcmp.lt.s32.totalorder %v1606, 256
          %vm1609 = vmand %vm1607, %vm1608
          %1610 = vst.msk [vmem:[#allocation2] ss:$2 sm:$0x3] %vm1609, %v1605
          %s1611 = scalar_lea.vmem [#allocation6], 1
          %v1612 = vld [vmem:[%s1611] ss:$2 sm:$0x3]
          %v1614 = vlaneseq
          %v1615 = vshrl.u32 %v1614, 7
          %v1616 = vsub.s32 0, %v1615
          %v1617 = vrot.slane %v1605, %v1616
          %v1618 = vlaneseq
          %v1619 = vshrl.u32 %v1618, 7
          %v1620 = vsub.s32 1, %v1619
          %v1621 = vrot.slane %v1605, %v1620
          %v1624 = vmul.f32 %v800, %v1617
          %v1625 = vmul.f32 %v801, %v1621
          %v1628 = vcombine.low %v1624, %v1625
          %v1630 = vunpack.c.l.s4 1966171168
          %v1631 = vunpack.c.0.s8 %v1630
          %v1632 = vlaneseq
          %v1633 = vshrl.u32 %v1632, 7
          %v1634 = vsub.s32 %v1631, %v1633
          %v1635 = vrot.slane %v1628, %v1634
          %v1637 = vunpack.c.l.s4 1966171168
          %v1638 = vunpack.c.0.s8 %v1637
          %v1639 = vlaneseq
          %v1640 = vshrl.u32 %v1639, 7
          %v1641 = vsub.s32 %v1638, %v1640
          %v1642 = vrot.slane %v1635, %v1641
          %v1644 = vsub.f32 %v1612, %v1642
          %s1645 = scalar_lea.vmem [#allocation2], 1
          %1646 = vst.msk [vmem:[%s1645] ss:$2 sm:$0x3] %vm1609, %v1644
        $region64: #{tpu_custom_call.1} parent=39 // pred_fallthru
          _
        %s1647 = smul.u32 %s22, 512
        %s1648 = sshra.s32 %s1647, 3
        %s1649 = sand.u32 %s1647, 7
        %s1650 = smul.u32 %s1648, 2
        %s1651 = smul.addr %s1650, 8
        %s1652 = scalar_lea.vmem [#allocation3], %s1651
        %v1653 = vld [vmem:[%s1652] sm:$0xff]
        %v1654 = vld [vmem:[%s1652 + $0x8] sm:$0xff]
        %v1655 = vld [vmem:[%s1652 + $0x10] sm:$0xff]
        %v1656 = vld [vmem:[%s1652 + $0x18] sm:$0xff]
        %v1657 = vld [vmem:[%s1652 + $0x20] sm:$0xff]
        %v1658 = vld [vmem:[%s1652 + $0x28] sm:$0xff]
        %v1659 = vld [vmem:[%s1652 + $0x30] sm:$0xff]
        %v1660 = vld [vmem:[%s1652 + $0x38] sm:$0xff]
        %v1661 = vld [vmem:[%s1652 + $0x40] sm:$0xff]
        %v1662 = vld [vmem:[%s1652 + $0x48] sm:$0xff]
        %v1663 = vld [vmem:[%s1652 + $0x50] sm:$0xff]
        %v1664 = vld [vmem:[%s1652 + $0x58] sm:$0xff]
        %v1665 = vld [vmem:[%s1652 + $0x60] sm:$0xff]
        %v1666 = vld [vmem:[%s1652 + $0x68] sm:$0xff]
        %v1667 = vld [vmem:[%s1652 + $0x70] sm:$0xff]
        %v1668 = vld [vmem:[%s1652 + $0x78] sm:$0xff]
        %v1669 = vld [vmem:[%s1652 + $0x80] sm:$0xff]
        %v1670 = vld [vmem:[%s1652 + $0x88] sm:$0xff]
        %v1671 = vld [vmem:[%s1652 + $0x90] sm:$0xff]
        %v1672 = vld [vmem:[%s1652 + $0x98] sm:$0xff]
        %v1673 = vld [vmem:[%s1652 + $0xa0] sm:$0xff]
        %v1674 = vld [vmem:[%s1652 + $0xa8] sm:$0xff]
        %v1675 = vld [vmem:[%s1652 + $0xb0] sm:$0xff]
        %v1676 = vld [vmem:[%s1652 + $0xb8] sm:$0xff]
        %v1677 = vld [vmem:[%s1652 + $0xc0] sm:$0xff]
        %v1678 = vld [vmem:[%s1652 + $0xc8] sm:$0xff]
        %v1679 = vld [vmem:[%s1652 + $0xd0] sm:$0xff]
        %v1680 = vld [vmem:[%s1652 + $0xd8] sm:$0xff]
        %v1681 = vld [vmem:[%s1652 + $0xe0] sm:$0xff]
        %v1682 = vld [vmem:[%s1652 + $0xe8] sm:$0xff]
        %v1683 = vld [vmem:[%s1652 + $0xf0] sm:$0xff]
        %v1684 = vld [vmem:[%s1652 + $0xf8] sm:$0xff]
        %v1685 = vld [vmem:[%s1652 + $0x100] sm:$0xff]
        %v1686 = vld [vmem:[%s1652 + $0x108] sm:$0xff]
        %v1687 = vld [vmem:[%s1652 + $0x110] sm:$0xff]
        %v1688 = vld [vmem:[%s1652 + $0x118] sm:$0xff]
        %v1689 = vld [vmem:[%s1652 + $0x120] sm:$0xff]
        %v1690 = vld [vmem:[%s1652 + $0x128] sm:$0xff]
        %v1691 = vld [vmem:[%s1652 + $0x130] sm:$0xff]
        %v1692 = vld [vmem:[%s1652 + $0x138] sm:$0xff]
        %v1693 = vld [vmem:[%s1652 + $0x140] sm:$0xff]
        %v1694 = vld [vmem:[%s1652 + $0x148] sm:$0xff]
        %v1695 = vld [vmem:[%s1652 + $0x150] sm:$0xff]
        %v1696 = vld [vmem:[%s1652 + $0x158] sm:$0xff]
        %v1697 = vld [vmem:[%s1652 + $0x160] sm:$0xff]
        %v1698 = vld [vmem:[%s1652 + $0x168] sm:$0xff]
        %v1699 = vld [vmem:[%s1652 + $0x170] sm:$0xff]
        %v1700 = vld [vmem:[%s1652 + $0x178] sm:$0xff]
        %v1701 = vld [vmem:[%s1652 + $0x180] sm:$0xff]
        %v1702 = vld [vmem:[%s1652 + $0x188] sm:$0xff]
        %v1703 = vld [vmem:[%s1652 + $0x190] sm:$0xff]
        %v1704 = vld [vmem:[%s1652 + $0x198] sm:$0xff]
        %v1705 = vld [vmem:[%s1652 + $0x1a0] sm:$0xff]
        %v1706 = vld [vmem:[%s1652 + $0x1a8] sm:$0xff]
        %v1707 = vld [vmem:[%s1652 + $0x1b0] sm:$0xff]
        %v1708 = vld [vmem:[%s1652 + $0x1b8] sm:$0xff]
        %v1709 = vld [vmem:[%s1652 + $0x1c0] sm:$0xff]
        %v1710 = vld [vmem:[%s1652 + $0x1c8] sm:$0xff]
        %v1711 = vld [vmem:[%s1652 + $0x1d0] sm:$0xff]
        %v1712 = vld [vmem:[%s1652 + $0x1d8] sm:$0xff]
        %v1713 = vld [vmem:[%s1652 + $0x1e0] sm:$0xff]
        %v1714 = vld [vmem:[%s1652 + $0x1e8] sm:$0xff]
        %v1715 = vld [vmem:[%s1652 + $0x1f0] sm:$0xff]
        %v1716 = vld [vmem:[%s1652 + $0x1f8] sm:$0xff]
        %v1717 = vld [vmem:[%s1652 + $0x200] sm:$0xff]
        %v1718 = vld [vmem:[%s1652 + $0x208] sm:$0xff]
        %v1719 = vld [vmem:[%s1652 + $0x210] sm:$0xff]
        %v1720 = vld [vmem:[%s1652 + $0x218] sm:$0xff]
        %v1721 = vld [vmem:[%s1652 + $0x220] sm:$0xff]
        %v1722 = vld [vmem:[%s1652 + $0x228] sm:$0xff]
        %v1723 = vld [vmem:[%s1652 + $0x230] sm:$0xff]
        %v1724 = vld [vmem:[%s1652 + $0x238] sm:$0xff]
        %v1725 = vld [vmem:[%s1652 + $0x240] sm:$0xff]
        %v1726 = vld [vmem:[%s1652 + $0x248] sm:$0xff]
        %v1727 = vld [vmem:[%s1652 + $0x250] sm:$0xff]
        %v1728 = vld [vmem:[%s1652 + $0x258] sm:$0xff]
        %v1729 = vld [vmem:[%s1652 + $0x260] sm:$0xff]
        %v1730 = vld [vmem:[%s1652 + $0x268] sm:$0xff]
        %v1731 = vld [vmem:[%s1652 + $0x270] sm:$0xff]
        %v1732 = vld [vmem:[%s1652 + $0x278] sm:$0xff]
        %v1733 = vld [vmem:[%s1652 + $0x280] sm:$0xff]
        %v1734 = vld [vmem:[%s1652 + $0x288] sm:$0xff]
        %v1735 = vld [vmem:[%s1652 + $0x290] sm:$0xff]
        %v1736 = vld [vmem:[%s1652 + $0x298] sm:$0xff]
        %v1737 = vld [vmem:[%s1652 + $0x2a0] sm:$0xff]
        %v1738 = vld [vmem:[%s1652 + $0x2a8] sm:$0xff]
        %v1739 = vld [vmem:[%s1652 + $0x2b0] sm:$0xff]
        %v1740 = vld [vmem:[%s1652 + $0x2b8] sm:$0xff]
        %v1741 = vld [vmem:[%s1652 + $0x2c0] sm:$0xff]
        %v1742 = vld [vmem:[%s1652 + $0x2c8] sm:$0xff]
        %v1743 = vld [vmem:[%s1652 + $0x2d0] sm:$0xff]
        %v1744 = vld [vmem:[%s1652 + $0x2d8] sm:$0xff]
        %v1745 = vld [vmem:[%s1652 + $0x2e0] sm:$0xff]
        %v1746 = vld [vmem:[%s1652 + $0x2e8] sm:$0xff]
        %v1747 = vld [vmem:[%s1652 + $0x2f0] sm:$0xff]
        %v1748 = vld [vmem:[%s1652 + $0x2f8] sm:$0xff]
        %v1749 = vld [vmem:[%s1652 + $0x300] sm:$0xff]
        %v1750 = vld [vmem:[%s1652 + $0x308] sm:$0xff]
        %v1751 = vld [vmem:[%s1652 + $0x310] sm:$0xff]
        %v1752 = vld [vmem:[%s1652 + $0x318] sm:$0xff]
        %v1753 = vld [vmem:[%s1652 + $0x320] sm:$0xff]
        %v1754 = vld [vmem:[%s1652 + $0x328] sm:$0xff]
        %v1755 = vld [vmem:[%s1652 + $0x330] sm:$0xff]
        %v1756 = vld [vmem:[%s1652 + $0x338] sm:$0xff]
        %v1757 = vld [vmem:[%s1652 + $0x340] sm:$0xff]
        %v1758 = vld [vmem:[%s1652 + $0x348] sm:$0xff]
        %v1759 = vld [vmem:[%s1652 + $0x350] sm:$0xff]
        %v1760 = vld [vmem:[%s1652 + $0x358] sm:$0xff]
        %v1761 = vld [vmem:[%s1652 + $0x360] sm:$0xff]
        %v1762 = vld [vmem:[%s1652 + $0x368] sm:$0xff]
        %v1763 = vld [vmem:[%s1652 + $0x370] sm:$0xff]
        %v1764 = vld [vmem:[%s1652 + $0x378] sm:$0xff]
        %v1765 = vld [vmem:[%s1652 + $0x380] sm:$0xff]
        %v1766 = vld [vmem:[%s1652 + $0x388] sm:$0xff]
        %v1767 = vld [vmem:[%s1652 + $0x390] sm:$0xff]
        %v1768 = vld [vmem:[%s1652 + $0x398] sm:$0xff]
        %v1769 = vld [vmem:[%s1652 + $0x3a0] sm:$0xff]
        %v1770 = vld [vmem:[%s1652 + $0x3a8] sm:$0xff]
        %v1771 = vld [vmem:[%s1652 + $0x3b0] sm:$0xff]
        %v1772 = vld [vmem:[%s1652 + $0x3b8] sm:$0xff]
        %v1773 = vld [vmem:[%s1652 + $0x3c0] sm:$0xff]
        %v1774 = vld [vmem:[%s1652 + $0x3c8] sm:$0xff]
        %v1775 = vld [vmem:[%s1652 + $0x3d0] sm:$0xff]
        %v1776 = vld [vmem:[%s1652 + $0x3d8] sm:$0xff]
        %v1777 = vld [vmem:[%s1652 + $0x3e0] sm:$0xff]
        %v1778 = vld [vmem:[%s1652 + $0x3e8] sm:$0xff]
        %v1779 = vld [vmem:[%s1652 + $0x3f0] sm:$0xff]
        %v1780 = vld [vmem:[%s1652 + $0x3f8] sm:$0xff]
        %v1781 = vld [vmem:[#allocation2] ss:$2 sm:$0x3]
        %s1782 = scalar_lea.vmem [#allocation2], 1
        %v1783 = vld [vmem:[%s1782] ss:$2 sm:$0x3]
        %v1784 = vld [vmem:[#allocation8] sm:$0xf]
        %v1785 = vld [vmem:[#allocation8 + $0x4] sm:$0xf]
        %v1786 = vld [vmem:[#allocation8 + $0x8] sm:$0xf]
        %v1787 = vld [vmem:[#allocation8 + $0xc] sm:$0xf]
        %v1788 = vld [vmem:[#allocation8 + $0x10] sm:$0xf]
        %v1789 = vld [vmem:[#allocation8 + $0x14] sm:$0xf]
        %v1790 = vld [vmem:[#allocation8 + $0x18] sm:$0xf]
        %v1791 = vld [vmem:[#allocation8 + $0x1c] sm:$0xf]
        %v1792 = vld [vmem:[#allocation8 + $0x20] sm:$0xf]
        %v1793 = vld [vmem:[#allocation8 + $0x24] sm:$0xf]
        %v1794 = vld [vmem:[#allocation8 + $0x28] sm:$0xf]
        %v1795 = vld [vmem:[#allocation8 + $0x2c] sm:$0xf]
        %v1796 = vld [vmem:[#allocation8 + $0x30] sm:$0xf]
        %v1797 = vld [vmem:[#allocation8 + $0x34] sm:$0xf]
        %v1798 = vld [vmem:[#allocation8 + $0x38] sm:$0xf]
        %v1799 = vld [vmem:[#allocation8 + $0x3c] sm:$0xf]
        %v1800 = vld [vmem:[#allocation8 + $0x40] sm:$0xf]
        %v1801 = vld [vmem:[#allocation8 + $0x44] sm:$0xf]
        %v1802 = vld [vmem:[#allocation8 + $0x48] sm:$0xf]
        %v1803 = vld [vmem:[#allocation8 + $0x4c] sm:$0xf]
        %v1804 = vld [vmem:[#allocation8 + $0x50] sm:$0xf]
        %v1805 = vld [vmem:[#allocation8 + $0x54] sm:$0xf]
        %v1806 = vld [vmem:[#allocation8 + $0x58] sm:$0xf]
        %v1807 = vld [vmem:[#allocation8 + $0x5c] sm:$0xf]
        %v1808 = vld [vmem:[#allocation8 + $0x60] sm:$0xf]
        %v1809 = vld [vmem:[#allocation8 + $0x64] sm:$0xf]
        %v1810 = vld [vmem:[#allocation8 + $0x68] sm:$0xf]
        %v1811 = vld [vmem:[#allocation8 + $0x6c] sm:$0xf]
        %v1812 = vld [vmem:[#allocation8 + $0x70] sm:$0xf]
        %v1813 = vld [vmem:[#allocation8 + $0x74] sm:$0xf]
        %v1814 = vld [vmem:[#allocation8 + $0x78] sm:$0xf]
        %v1815 = vld [vmem:[#allocation8 + $0x7c] sm:$0xf]
        %v1816 = vld [vmem:[#allocation11] sm:$0x1]
        %v1817 = vld [vmem:[#allocation9] sm:$0xf]
        %v1818 = vld [vmem:[#allocation9 + $0x4] sm:$0xf]
        %v1819 = vld [vmem:[#allocation9 + $0x8] sm:$0xf]
        %v1820 = vld [vmem:[#allocation9 + $0xc] sm:$0xf]
        %v1821 = vld [vmem:[#allocation9 + $0x10] sm:$0xf]
        %v1822 = vld [vmem:[#allocation9 + $0x14] sm:$0xf]
        %v1823 = vld [vmem:[#allocation9 + $0x18] sm:$0xf]
        %v1824 = vld [vmem:[#allocation9 + $0x1c] sm:$0xf]
        %v1825 = vld [vmem:[#allocation9 + $0x20] sm:$0xf]
        %v1826 = vld [vmem:[#allocation9 + $0x24] sm:$0xf]
        %v1827 = vld [vmem:[#allocation9 + $0x28] sm:$0xf]
        %v1828 = vld [vmem:[#allocation9 + $0x2c] sm:$0xf]
        %v1829 = vld [vmem:[#allocation9 + $0x30] sm:$0xf]
        %v1830 = vld [vmem:[#allocation9 + $0x34] sm:$0xf]
        %v1831 = vld [vmem:[#allocation9 + $0x38] sm:$0xf]
        %v1832 = vld [vmem:[#allocation9 + $0x3c] sm:$0xf]
        %v1833 = vld [vmem:[#allocation11 + $0x1] sm:$0x1]
        %v1835 = vlaneseq
        %v1836 = vshrl.u32 %v1835, 7
        %v1837 = vsub.s32 0, %v1836
        %v1838 = vrot.slane %v1781, %v1837
        %v1839 = vlaneseq
        %v1840 = vshrl.u32 %v1839, 7
        %v1841 = vsub.s32 1, %v1840
        %v1842 = vrot.slane %v1781, %v1841
        %v1845 = vmul.f32 %v1653, %v1838
        %v1846 = vmul.f32 %v1654, %v1842
        %v1847 = vmul.f32 %v1655, %v1838
        %v1848 = vmul.f32 %v1656, %v1842
        %v1849 = vmul.f32 %v1657, %v1838
        %v1850 = vmul.f32 %v1658, %v1842
        %v1851 = vmul.f32 %v1659, %v1838
        %v1852 = vmul.f32 %v1660, %v1842
        %v1853 = vmul.f32 %v1661, %v1838
        %v1854 = vmul.f32 %v1662, %v1842
        %v1855 = vmul.f32 %v1663, %v1838
        %v1856 = vmul.f32 %v1664, %v1842
        %v1857 = vmul.f32 %v1665, %v1838
        %v1858 = vmul.f32 %v1666, %v1842
        %v1859 = vmul.f32 %v1667, %v1838
        %v1860 = vmul.f32 %v1668, %v1842
        %v1861 = vmul.f32 %v1669, %v1838
        %v1862 = vmul.f32 %v1670, %v1842
        %v1863 = vmul.f32 %v1671, %v1838
        %v1864 = vmul.f32 %v1672, %v1842
        %v1865 = vmul.f32 %v1673, %v1838
        %v1866 = vmul.f32 %v1674, %v1842
        %v1867 = vmul.f32 %v1675, %v1838
        %v1868 = vmul.f32 %v1676, %v1842
        %v1869 = vmul.f32 %v1677, %v1838
        %v1870 = vmul.f32 %v1678, %v1842
        %v1871 = vmul.f32 %v1679, %v1838
        %v1872 = vmul.f32 %v1680, %v1842
        %v1873 = vmul.f32 %v1681, %v1838
        %v1874 = vmul.f32 %v1682, %v1842
        %v1875 = vmul.f32 %v1683, %v1838
        %v1876 = vmul.f32 %v1684, %v1842
        %v1877 = vmul.f32 %v1685, %v1838
        %v1878 = vmul.f32 %v1686, %v1842
        %v1879 = vmul.f32 %v1687, %v1838
        %v1880 = vmul.f32 %v1688, %v1842
        %v1881 = vmul.f32 %v1689, %v1838
        %v1882 = vmul.f32 %v1690, %v1842
        %v1883 = vmul.f32 %v1691, %v1838
        %v1884 = vmul.f32 %v1692, %v1842
        %v1885 = vmul.f32 %v1693, %v1838
        %v1886 = vmul.f32 %v1694, %v1842
        %v1887 = vmul.f32 %v1695, %v1838
        %v1888 = vmul.f32 %v1696, %v1842
        %v1889 = vmul.f32 %v1697, %v1838
        %v1890 = vmul.f32 %v1698, %v1842
        %v1891 = vmul.f32 %v1699, %v1838
        %v1892 = vmul.f32 %v1700, %v1842
        %v1893 = vmul.f32 %v1701, %v1838
        %v1894 = vmul.f32 %v1702, %v1842
        %v1895 = vmul.f32 %v1703, %v1838
        %v1896 = vmul.f32 %v1704, %v1842
        %v1897 = vmul.f32 %v1705, %v1838
        %v1898 = vmul.f32 %v1706, %v1842
        %v1899 = vmul.f32 %v1707, %v1838
        %v1900 = vmul.f32 %v1708, %v1842
        %v1901 = vmul.f32 %v1709, %v1838
        %v1902 = vmul.f32 %v1710, %v1842
        %v1903 = vmul.f32 %v1711, %v1838
        %v1904 = vmul.f32 %v1712, %v1842
        %v1905 = vmul.f32 %v1713, %v1838
        %v1906 = vmul.f32 %v1714, %v1842
        %v1907 = vmul.f32 %v1715, %v1838
        %v1908 = vmul.f32 %v1716, %v1842
        %v1909 = vmul.f32 %v1717, %v1838
        %v1910 = vmul.f32 %v1718, %v1842
        %v1911 = vmul.f32 %v1719, %v1838
        %v1912 = vmul.f32 %v1720, %v1842
        %v1913 = vmul.f32 %v1721, %v1838
        %v1914 = vmul.f32 %v1722, %v1842
        %v1915 = vmul.f32 %v1723, %v1838
        %v1916 = vmul.f32 %v1724, %v1842
        %v1917 = vmul.f32 %v1725, %v1838
        %v1918 = vmul.f32 %v1726, %v1842
        %v1919 = vmul.f32 %v1727, %v1838
        %v1920 = vmul.f32 %v1728, %v1842
        %v1921 = vmul.f32 %v1729, %v1838
        %v1922 = vmul.f32 %v1730, %v1842
        %v1923 = vmul.f32 %v1731, %v1838
        %v1924 = vmul.f32 %v1732, %v1842
        %v1925 = vmul.f32 %v1733, %v1838
        %v1926 = vmul.f32 %v1734, %v1842
        %v1927 = vmul.f32 %v1735, %v1838
        %v1928 = vmul.f32 %v1736, %v1842
        %v1929 = vmul.f32 %v1737, %v1838
        %v1930 = vmul.f32 %v1738, %v1842
        %v1931 = vmul.f32 %v1739, %v1838
        %v1932 = vmul.f32 %v1740, %v1842
        %v1933 = vmul.f32 %v1741, %v1838
        %v1934 = vmul.f32 %v1742, %v1842
        %v1935 = vmul.f32 %v1743, %v1838
        %v1936 = vmul.f32 %v1744, %v1842
        %v1937 = vmul.f32 %v1745, %v1838
        %v1938 = vmul.f32 %v1746, %v1842
        %v1939 = vmul.f32 %v1747, %v1838
        %v1940 = vmul.f32 %v1748, %v1842
        %v1941 = vmul.f32 %v1749, %v1838
        %v1942 = vmul.f32 %v1750, %v1842
        %v1943 = vmul.f32 %v1751, %v1838
        %v1944 = vmul.f32 %v1752, %v1842
        %v1945 = vmul.f32 %v1753, %v1838
        %v1946 = vmul.f32 %v1754, %v1842
        %v1947 = vmul.f32 %v1755, %v1838
        %v1948 = vmul.f32 %v1756, %v1842
        %v1949 = vmul.f32 %v1757, %v1838
        %v1950 = vmul.f32 %v1758, %v1842
        %v1951 = vmul.f32 %v1759, %v1838
        %v1952 = vmul.f32 %v1760, %v1842
        %v1953 = vmul.f32 %v1761, %v1838
        %v1954 = vmul.f32 %v1762, %v1842
        %v1955 = vmul.f32 %v1763, %v1838
        %v1956 = vmul.f32 %v1764, %v1842
        %v1957 = vmul.f32 %v1765, %v1838
        %v1958 = vmul.f32 %v1766, %v1842
        %v1959 = vmul.f32 %v1767, %v1838
        %v1960 = vmul.f32 %v1768, %v1842
        %v1961 = vmul.f32 %v1769, %v1838
        %v1962 = vmul.f32 %v1770, %v1842
        %v1963 = vmul.f32 %v1771, %v1838
        %v1964 = vmul.f32 %v1772, %v1842
        %v1965 = vmul.f32 %v1773, %v1838
        %v1966 = vmul.f32 %v1774, %v1842
        %v1967 = vmul.f32 %v1775, %v1838
        %v1968 = vmul.f32 %v1776, %v1842
        %v1969 = vmul.f32 %v1777, %v1838
        %v1970 = vmul.f32 %v1778, %v1842
        %v1971 = vmul.f32 %v1779, %v1838
        %v1972 = vmul.f32 %v1780, %v1842
        %v1974 = vlaneseq
        %v1975 = vshrl.u32 %v1974, 7
        %v1976 = vsub.s32 0, %v1975
        %v1977 = vrot.slane %v1783, %v1976
        %v1978 = vlaneseq
        %v1979 = vshrl.u32 %v1978, 7
        %v1980 = vsub.s32 1, %v1979
        %v1981 = vrot.slane %v1783, %v1980
        %v1984 = vadd.f32 %v1845, %v1977
        %v1985 = vadd.f32 %v1846, %v1981
        %v1986 = vadd.f32 %v1847, %v1977
        %v1987 = vadd.f32 %v1848, %v1981
        %v1988 = vadd.f32 %v1849, %v1977
        %v1989 = vadd.f32 %v1850, %v1981
        %v1990 = vadd.f32 %v1851, %v1977
        %v1991 = vadd.f32 %v1852, %v1981
        %v1992 = vadd.f32 %v1853, %v1977
        %v1993 = vadd.f32 %v1854, %v1981
        %v1994 = vadd.f32 %v1855, %v1977
        %v1995 = vadd.f32 %v1856, %v1981
        %v1996 = vadd.f32 %v1857, %v1977
        %v1997 = vadd.f32 %v1858, %v1981
        %v1998 = vadd.f32 %v1859, %v1977
        %v1999 = vadd.f32 %v1860, %v1981
        %v2000 = vadd.f32 %v1861, %v1977
        %v2001 = vadd.f32 %v1862, %v1981
        %v2002 = vadd.f32 %v1863, %v1977
        %v2003 = vadd.f32 %v1864, %v1981
        %v2004 = vadd.f32 %v1865, %v1977
        %v2005 = vadd.f32 %v1866, %v1981
        %v2006 = vadd.f32 %v1867, %v1977
        %v2007 = vadd.f32 %v1868, %v1981
        %v2008 = vadd.f32 %v1869, %v1977
        %v2009 = vadd.f32 %v1870, %v1981
        %v2010 = vadd.f32 %v1871, %v1977
        %v2011 = vadd.f32 %v1872, %v1981
        %v2012 = vadd.f32 %v1873, %v1977
        %v2013 = vadd.f32 %v1874, %v1981
        %v2014 = vadd.f32 %v1875, %v1977
        %v2015 = vadd.f32 %v1876, %v1981
        %v2016 = vadd.f32 %v1877, %v1977
        %v2017 = vadd.f32 %v1878, %v1981
        %v2018 = vadd.f32 %v1879, %v1977
        %v2019 = vadd.f32 %v1880, %v1981
        %v2020 = vadd.f32 %v1881, %v1977
        %v2021 = vadd.f32 %v1882, %v1981
        %v2022 = vadd.f32 %v1883, %v1977
        %v2023 = vadd.f32 %v1884, %v1981
        %v2024 = vadd.f32 %v1885, %v1977
        %v2025 = vadd.f32 %v1886, %v1981
        %v2026 = vadd.f32 %v1887, %v1977
        %v2027 = vadd.f32 %v1888, %v1981
        %v2028 = vadd.f32 %v1889, %v1977
        %v2029 = vadd.f32 %v1890, %v1981
        %v2030 = vadd.f32 %v1891, %v1977
        %v2031 = vadd.f32 %v1892, %v1981
        %v2032 = vadd.f32 %v1893, %v1977
        %v2033 = vadd.f32 %v1894, %v1981
        %v2034 = vadd.f32 %v1895, %v1977
        %v2035 = vadd.f32 %v1896, %v1981
        %v2036 = vadd.f32 %v1897, %v1977
        %v2037 = vadd.f32 %v1898, %v1981
        %v2038 = vadd.f32 %v1899, %v1977
        %v2039 = vadd.f32 %v1900, %v1981
        %v2040 = vadd.f32 %v1901, %v1977
        %v2041 = vadd.f32 %v1902, %v1981
        %v2042 = vadd.f32 %v1903, %v1977
        %v2043 = vadd.f32 %v1904, %v1981
        %v2044 = vadd.f32 %v1905, %v1977
        %v2045 = vadd.f32 %v1906, %v1981
        %v2046 = vadd.f32 %v1907, %v1977
        %v2047 = vadd.f32 %v1908, %v1981
        %v2048 = vadd.f32 %v1909, %v1977
        %v2049 = vadd.f32 %v1910, %v1981
        %v2050 = vadd.f32 %v1911, %v1977
        %v2051 = vadd.f32 %v1912, %v1981
        %v2052 = vadd.f32 %v1913, %v1977
        %v2053 = vadd.f32 %v1914, %v1981
        %v2054 = vadd.f32 %v1915, %v1977
        %v2055 = vadd.f32 %v1916, %v1981
        %v2056 = vadd.f32 %v1917, %v1977
        %v2057 = vadd.f32 %v1918, %v1981
        %v2058 = vadd.f32 %v1919, %v1977
        %v2059 = vadd.f32 %v1920, %v1981
        %v2060 = vadd.f32 %v1921, %v1977
        %v2061 = vadd.f32 %v1922, %v1981
        %v2062 = vadd.f32 %v1923, %v1977
        %v2063 = vadd.f32 %v1924, %v1981
        %v2064 = vadd.f32 %v1925, %v1977
        %v2065 = vadd.f32 %v1926, %v1981
        %v2066 = vadd.f32 %v1927, %v1977
        %v2067 = vadd.f32 %v1928, %v1981
        %v2068 = vadd.f32 %v1929, %v1977
        %v2069 = vadd.f32 %v1930, %v1981
        %v2070 = vadd.f32 %v1931, %v1977
        %v2071 = vadd.f32 %v1932, %v1981
        %v2072 = vadd.f32 %v1933, %v1977
        %v2073 = vadd.f32 %v1934, %v1981
        %v2074 = vadd.f32 %v1935, %v1977
        %v2075 = vadd.f32 %v1936, %v1981
        %v2076 = vadd.f32 %v1937, %v1977
        %v2077 = vadd.f32 %v1938, %v1981
        %v2078 = vadd.f32 %v1939, %v1977
        %v2079 = vadd.f32 %v1940, %v1981
        %v2080 = vadd.f32 %v1941, %v1977
        %v2081 = vadd.f32 %v1942, %v1981
        %v2082 = vadd.f32 %v1943, %v1977
        %v2083 = vadd.f32 %v1944, %v1981
        %v2084 = vadd.f32 %v1945, %v1977
        %v2085 = vadd.f32 %v1946, %v1981
        %v2086 = vadd.f32 %v1947, %v1977
        %v2087 = vadd.f32 %v1948, %v1981
        %v2088 = vadd.f32 %v1949, %v1977
        %v2089 = vadd.f32 %v1950, %v1981
        %v2090 = vadd.f32 %v1951, %v1977
        %v2091 = vadd.f32 %v1952, %v1981
        %v2092 = vadd.f32 %v1953, %v1977
        %v2093 = vadd.f32 %v1954, %v1981
        %v2094 = vadd.f32 %v1955, %v1977
        %v2095 = vadd.f32 %v1956, %v1981
        %v2096 = vadd.f32 %v1957, %v1977
        %v2097 = vadd.f32 %v1958, %v1981
        %v2098 = vadd.f32 %v1959, %v1977
        %v2099 = vadd.f32 %v1960, %v1981
        %v2100 = vadd.f32 %v1961, %v1977
        %v2101 = vadd.f32 %v1962, %v1981
        %v2102 = vadd.f32 %v1963, %v1977
        %v2103 = vadd.f32 %v1964, %v1981
        %v2104 = vadd.f32 %v1965, %v1977
        %v2105 = vadd.f32 %v1966, %v1981
        %v2106 = vadd.f32 %v1967, %v1977
        %v2107 = vadd.f32 %v1968, %v1981
        %v2108 = vadd.f32 %v1969, %v1977
        %v2109 = vadd.f32 %v1970, %v1981
        %v2110 = vadd.f32 %v1971, %v1977
        %v2111 = vadd.f32 %v1972, %v1981
        %v2112 = vmax.f32 %v1984, 0.0
        %v2113 = vmax.f32 %v1985, 0.0
        %v2114 = vmax.f32 %v1986, 0.0
        %v2115 = vmax.f32 %v1987, 0.0
        %v2116 = vmax.f32 %v1988, 0.0
        %v2117 = vmax.f32 %v1989, 0.0
        %v2118 = vmax.f32 %v1990, 0.0
        %v2119 = vmax.f32 %v1991, 0.0
        %v2120 = vmax.f32 %v1992, 0.0
        %v2121 = vmax.f32 %v1993, 0.0
        %v2122 = vmax.f32 %v1994, 0.0
        %v2123 = vmax.f32 %v1995, 0.0
        %v2124 = vmax.f32 %v1996, 0.0
        %v2125 = vmax.f32 %v1997, 0.0
        %v2126 = vmax.f32 %v1998, 0.0
        %v2127 = vmax.f32 %v1999, 0.0
        %v2128 = vmax.f32 %v2000, 0.0
        %v2129 = vmax.f32 %v2001, 0.0
        %v2130 = vmax.f32 %v2002, 0.0
        %v2131 = vmax.f32 %v2003, 0.0
        %v2132 = vmax.f32 %v2004, 0.0
        %v2133 = vmax.f32 %v2005, 0.0
        %v2134 = vmax.f32 %v2006, 0.0
        %v2135 = vmax.f32 %v2007, 0.0
        %v2136 = vmax.f32 %v2008, 0.0
        %v2137 = vmax.f32 %v2009, 0.0
        %v2138 = vmax.f32 %v2010, 0.0
        %v2139 = vmax.f32 %v2011, 0.0
        %v2140 = vmax.f32 %v2012, 0.0
        %v2141 = vmax.f32 %v2013, 0.0
        %v2142 = vmax.f32 %v2014, 0.0
        %v2143 = vmax.f32 %v2015, 0.0
        %v2144 = vmax.f32 %v2016, 0.0
        %v2145 = vmax.f32 %v2017, 0.0
        %v2146 = vmax.f32 %v2018, 0.0
        %v2147 = vmax.f32 %v2019, 0.0
        %v2148 = vmax.f32 %v2020, 0.0
        %v2149 = vmax.f32 %v2021, 0.0
        %v2150 = vmax.f32 %v2022, 0.0
        %v2151 = vmax.f32 %v2023, 0.0
        %v2152 = vmax.f32 %v2024, 0.0
        %v2153 = vmax.f32 %v2025, 0.0
        %v2154 = vmax.f32 %v2026, 0.0
        %v2155 = vmax.f32 %v2027, 0.0
        %v2156 = vmax.f32 %v2028, 0.0
        %v2157 = vmax.f32 %v2029, 0.0
        %v2158 = vmax.f32 %v2030, 0.0
        %v2159 = vmax.f32 %v2031, 0.0
        %v2160 = vmax.f32 %v2032, 0.0
        %v2161 = vmax.f32 %v2033, 0.0
        %v2162 = vmax.f32 %v2034, 0.0
        %v2163 = vmax.f32 %v2035, 0.0
        %v2164 = vmax.f32 %v2036, 0.0
        %v2165 = vmax.f32 %v2037, 0.0
        %v2166 = vmax.f32 %v2038, 0.0
        %v2167 = vmax.f32 %v2039, 0.0
        %v2168 = vmax.f32 %v2040, 0.0
        %v2169 = vmax.f32 %v2041, 0.0
        %v2170 = vmax.f32 %v2042, 0.0
        %v2171 = vmax.f32 %v2043, 0.0
        %v2172 = vmax.f32 %v2044, 0.0
        %v2173 = vmax.f32 %v2045, 0.0
        %v2174 = vmax.f32 %v2046, 0.0
        %v2175 = vmax.f32 %v2047, 0.0
        %v2176 = vmax.f32 %v2048, 0.0
        %v2177 = vmax.f32 %v2049, 0.0
        %v2178 = vmax.f32 %v2050, 0.0
        %v2179 = vmax.f32 %v2051, 0.0
        %v2180 = vmax.f32 %v2052, 0.0
        %v2181 = vmax.f32 %v2053, 0.0
        %v2182 = vmax.f32 %v2054, 0.0
        %v2183 = vmax.f32 %v2055, 0.0
        %v2184 = vmax.f32 %v2056, 0.0
        %v2185 = vmax.f32 %v2057, 0.0
        %v2186 = vmax.f32 %v2058, 0.0
        %v2187 = vmax.f32 %v2059, 0.0
        %v2188 = vmax.f32 %v2060, 0.0
        %v2189 = vmax.f32 %v2061, 0.0
        %v2190 = vmax.f32 %v2062, 0.0
        %v2191 = vmax.f32 %v2063, 0.0
        %v2192 = vmax.f32 %v2064, 0.0
        %v2193 = vmax.f32 %v2065, 0.0
        %v2194 = vmax.f32 %v2066, 0.0
        %v2195 = vmax.f32 %v2067, 0.0
        %v2196 = vmax.f32 %v2068, 0.0
        %v2197 = vmax.f32 %v2069, 0.0
        %v2198 = vmax.f32 %v2070, 0.0
        %v2199 = vmax.f32 %v2071, 0.0
        %v2200 = vmax.f32 %v2072, 0.0
        %v2201 = vmax.f32 %v2073, 0.0
        %v2202 = vmax.f32 %v2074, 0.0
        %v2203 = vmax.f32 %v2075, 0.0
        %v2204 = vmax.f32 %v2076, 0.0
        %v2205 = vmax.f32 %v2077, 0.0
        %v2206 = vmax.f32 %v2078, 0.0
        %v2207 = vmax.f32 %v2079, 0.0
        %v2208 = vmax.f32 %v2080, 0.0
        %v2209 = vmax.f32 %v2081, 0.0
        %v2210 = vmax.f32 %v2082, 0.0
        %v2211 = vmax.f32 %v2083, 0.0
        %v2212 = vmax.f32 %v2084, 0.0
        %v2213 = vmax.f32 %v2085, 0.0
        %v2214 = vmax.f32 %v2086, 0.0
        %v2215 = vmax.f32 %v2087, 0.0
        %v2216 = vmax.f32 %v2088, 0.0
        %v2217 = vmax.f32 %v2089, 0.0
        %v2218 = vmax.f32 %v2090, 0.0
        %v2219 = vmax.f32 %v2091, 0.0
        %v2220 = vmax.f32 %v2092, 0.0
        %v2221 = vmax.f32 %v2093, 0.0
        %v2222 = vmax.f32 %v2094, 0.0
        %v2223 = vmax.f32 %v2095, 0.0
        %v2224 = vmax.f32 %v2096, 0.0
        %v2225 = vmax.f32 %v2097, 0.0
        %v2226 = vmax.f32 %v2098, 0.0
        %v2227 = vmax.f32 %v2099, 0.0
        %v2228 = vmax.f32 %v2100, 0.0
        %v2229 = vmax.f32 %v2101, 0.0
        %v2230 = vmax.f32 %v2102, 0.0
        %v2231 = vmax.f32 %v2103, 0.0
        %v2232 = vmax.f32 %v2104, 0.0
        %v2233 = vmax.f32 %v2105, 0.0
        %v2234 = vmax.f32 %v2106, 0.0
        %v2235 = vmax.f32 %v2107, 0.0
        %v2236 = vmax.f32 %v2108, 0.0
        %v2237 = vmax.f32 %v2109, 0.0
        %v2238 = vmax.f32 %v2110, 0.0
        %v2239 = vmax.f32 %v2111, 0.0
        %v2240 = vpack.c.bf16 %v2114, %v2112
        %v2241 = vpack.c.bf16 %v2115, %v2113
        %v2242 = vpack.c.bf16 %v2118, %v2116
        %v2243 = vpack.c.bf16 %v2119, %v2117
        %v2244 = vpack.c.bf16 %v2122, %v2120
        %v2245 = vpack.c.bf16 %v2123, %v2121
        %v2246 = vpack.c.bf16 %v2126, %v2124
        %v2247 = vpack.c.bf16 %v2127, %v2125
        %v2248 = vpack.c.bf16 %v2130, %v2128
        %v2249 = vpack.c.bf16 %v2131, %v2129
        %v2250 = vpack.c.bf16 %v2134, %v2132
        %v2251 = vpack.c.bf16 %v2135, %v2133
        %v2252 = vpack.c.bf16 %v2138, %v2136
        %v2253 = vpack.c.bf16 %v2139, %v2137
        %v2254 = vpack.c.bf16 %v2142, %v2140
        %v2255 = vpack.c.bf16 %v2143, %v2141
        %v2256 = vpack.c.bf16 %v2146, %v2144
        %v2257 = vpack.c.bf16 %v2147, %v2145
        %v2258 = vpack.c.bf16 %v2150, %v2148
        %v2259 = vpack.c.bf16 %v2151, %v2149
        %v2260 = vpack.c.bf16 %v2154, %v2152
        %v2261 = vpack.c.bf16 %v2155, %v2153
        %v2262 = vpack.c.bf16 %v2158, %v2156
        %v2263 = vpack.c.bf16 %v2159, %v2157
        %v2264 = vpack.c.bf16 %v2162, %v2160
        %v2265 = vpack.c.bf16 %v2163, %v2161
        %v2266 = vpack.c.bf16 %v2166, %v2164
        %v2267 = vpack.c.bf16 %v2167, %v2165
        %v2268 = vpack.c.bf16 %v2170, %v2168
        %v2269 = vpack.c.bf16 %v2171, %v2169
        %v2270 = vpack.c.bf16 %v2174, %v2172
        %v2271 = vpack.c.bf16 %v2175, %v2173
        %v2272 = vpack.c.bf16 %v2178, %v2176
        %v2273 = vpack.c.bf16 %v2179, %v2177
        %v2274 = vpack.c.bf16 %v2182, %v2180
        %v2275 = vpack.c.bf16 %v2183, %v2181
        %v2276 = vpack.c.bf16 %v2186, %v2184
        %v2277 = vpack.c.bf16 %v2187, %v2185
        %v2278 = vpack.c.bf16 %v2190, %v2188
        %v2279 = vpack.c.bf16 %v2191, %v2189
        %v2280 = vpack.c.bf16 %v2194, %v2192
        %v2281 = vpack.c.bf16 %v2195, %v2193
        %v2282 = vpack.c.bf16 %v2198, %v2196
        %v2283 = vpack.c.bf16 %v2199, %v2197
        %v2284 = vpack.c.bf16 %v2202, %v2200
        %v2285 = vpack.c.bf16 %v2203, %v2201
        %v2286 = vpack.c.bf16 %v2206, %v2204
        %v2287 = vpack.c.bf16 %v2207, %v2205
        %v2288 = vpack.c.bf16 %v2210, %v2208
        %v2289 = vpack.c.bf16 %v2211, %v2209
        %v2290 = vpack.c.bf16 %v2214, %v2212
        %v2291 = vpack.c.bf16 %v2215, %v2213
        %v2292 = vpack.c.bf16 %v2218, %v2216
        %v2293 = vpack.c.bf16 %v2219, %v2217
        %v2294 = vpack.c.bf16 %v2222, %v2220
        %v2295 = vpack.c.bf16 %v2223, %v2221
        %v2296 = vpack.c.bf16 %v2226, %v2224
        %v2297 = vpack.c.bf16 %v2227, %v2225
        %v2298 = vpack.c.bf16 %v2230, %v2228
        %v2299 = vpack.c.bf16 %v2231, %v2229
        %v2300 = vpack.c.bf16 %v2234, %v2232
        %v2301 = vpack.c.bf16 %v2235, %v2233
        %v2302 = vpack.c.bf16 %v2238, %v2236
        %v2303 = vpack.c.bf16 %v2239, %v2237
        %v2304 = vlaneseq
        %v2305 = vshrl.u32 %v2304, 7
        %v2306 = vsub.s32 0, %v2305
        %v2307 = vrot.slane %v1816, %v2306
        %v2340 = vunpack.c.l.b16 %v1784
        %v2341 = vunpack.c.l.b16 %v1785
        %v2342 = vunpack.c.l.b16 %v1786
        %v2343 = vunpack.c.l.b16 %v1787
        %v2344 = vunpack.c.l.b16 %v1788
        %v2345 = vunpack.c.l.b16 %v1789
        %v2346 = vunpack.c.l.b16 %v1790
        %v2347 = vunpack.c.l.b16 %v1791
        %v2348 = vunpack.c.l.b16 %v1792
        %v2349 = vunpack.c.l.b16 %v1793
        %v2350 = vunpack.c.l.b16 %v1794
        %v2351 = vunpack.c.l.b16 %v1795
        %v2352 = vunpack.c.l.b16 %v1796
        %v2353 = vunpack.c.l.b16 %v1797
        %v2354 = vunpack.c.l.b16 %v1798
        %v2355 = vunpack.c.l.b16 %v1799
        %v2356 = vunpack.c.l.b16 %v1800
        %v2357 = vunpack.c.l.b16 %v1801
        %v2358 = vunpack.c.l.b16 %v1802
        %v2359 = vunpack.c.l.b16 %v1803
        %v2360 = vunpack.c.l.b16 %v1804
        %v2361 = vunpack.c.l.b16 %v1805
        %v2362 = vunpack.c.l.b16 %v1806
        %v2363 = vunpack.c.l.b16 %v1807
        %v2364 = vunpack.c.l.b16 %v1808
        %v2365 = vunpack.c.l.b16 %v1809
        %v2366 = vunpack.c.l.b16 %v1810
        %v2367 = vunpack.c.l.b16 %v1811
        %v2368 = vunpack.c.l.b16 %v1812
        %v2369 = vunpack.c.l.b16 %v1813
        %v2370 = vunpack.c.l.b16 %v1814
        %v2371 = vunpack.c.l.b16 %v1815
        %v2372 = vpack.c.b16 %v2341, %v2340
        %v2373 = vpack.c.b16 %v2343, %v2342
        %v2374 = vpack.c.b16 %v2345, %v2344
        %v2375 = vpack.c.b16 %v2347, %v2346
        %v2376 = vpack.c.b16 %v2349, %v2348
        %v2377 = vpack.c.b16 %v2351, %v2350
        %v2378 = vpack.c.b16 %v2353, %v2352
        %v2379 = vpack.c.b16 %v2355, %v2354
        %v2380 = vpack.c.b16 %v2357, %v2356
        %v2381 = vpack.c.b16 %v2359, %v2358
        %v2382 = vpack.c.b16 %v2361, %v2360
        %v2383 = vpack.c.b16 %v2363, %v2362
        %v2384 = vpack.c.b16 %v2365, %v2364
        %v2385 = vpack.c.b16 %v2367, %v2366
        %v2386 = vpack.c.b16 %v2369, %v2368
        %v2387 = vpack.c.b16 %v2371, %v2370
        %2404 = vmatprep.subr.bf16.mxu0 0
        %2405 = vmatpush1.bf16.msra.mxu0 %v2379
        %2406 = vmatprep.subr.bf16.mxu0 0
        %2407 = vmatpush1.bf16.msra.mxu0 %v2378
        %2408 = vmatprep.subr.bf16.mxu0 0
        %2409 = vmatpush1.bf16.msra.mxu0 %v2377
        %2410 = vmatprep.subr.bf16.mxu0 0
        %2411 = vmatpush1.bf16.msra.mxu0 %v2376
        %2412 = vmatprep.subr.bf16.mxu0 0
        %2413 = vmatpush1.bf16.msra.mxu0 %v2375
        %2414 = vmatprep.subr.bf16.mxu0 0
        %2415 = vmatpush1.bf16.msra.mxu0 %v2374
        %2416 = vmatprep.subr.bf16.mxu0 0
        %2417 = vmatpush1.bf16.msra.mxu0 %v2373
        %2418 = vmatprep.subr.bf16.mxu0 0
        %2419 = vmatpush1.bf16.msra.mxu0 %v2372
        %2420 = vmatprep.subr.bf16.mxu0 0
        %2421 = vmatpush2.bf16.msra.mxu0 %v2387
        %2422 = vmatprep.subr.bf16.mxu0 0
        %2423 = vmatpush2.bf16.msra.mxu0 %v2386
        %2424 = vmatprep.subr.bf16.mxu0 0
        %2425 = vmatpush2.bf16.msra.mxu0 %v2385
        %2426 = vmatprep.subr.bf16.mxu0 0
        %2427 = vmatpush2.bf16.msra.mxu0 %v2384
        %2428 = vmatprep.subr.bf16.mxu0 0
        %2429 = vmatpush2.bf16.msra.mxu0 %v2383
        %2430 = vmatprep.subr.bf16.mxu0 0
        %2431 = vmatpush2.bf16.msra.mxu0 %v2382
        %2432 = vmatprep.subr.bf16.mxu0 0
        %2433 = vmatpush2.bf16.msra.mxu0 %v2381
        %2434 = vmatprep.subr.bf16.mxu0 0
        %2435 = vmatpush2.bf16.msra.mxu0 %v2380
        %2436 = vmatprep.mubr.bf16.mxu0 %v2241
        %2437 = vmatmul.mubr.bf16.gmra.mxu0 %v2240
        %v2438 = vpop.f32.mrf.mxu0
        %v2439 = vadd.f32 %v2307, %v2438
        %v2440 = vpop.f32.mrf.mxu0
        %v2441 = vpop.f32.mrf.mxu0
        %v2442 = vadd.f32 %v2307, %v2441
        %v2443 = vpop.f32.mrf.mxu0
        %2444 = vmatprep.mubr.bf16.mxu0 %v2243
        %2445 = vmatmul.mubr.bf16.gmra.mxu0 %v2242
        %v2446 = vpop.f32.mrf.mxu0
        %v2447 = vadd.f32 %v2307, %v2446
        %v2448 = vpop.f32.mrf.mxu0
        %v2449 = vpop.f32.mrf.mxu0
        %v2450 = vadd.f32 %v2307, %v2449
        %v2451 = vpop.f32.mrf.mxu0
        %2452 = vmatprep.mubr.bf16.mxu0 %v2245
        %2453 = vmatmul.mubr.bf16.gmra.mxu0 %v2244
        %v2454 = vpop.f32.mrf.mxu0
        %v2455 = vadd.f32 %v2307, %v2454
        %v2456 = vpop.f32.mrf.mxu0
        %v2457 = vpop.f32.mrf.mxu0
        %v2458 = vadd.f32 %v2307, %v2457
        %v2459 = vpop.f32.mrf.mxu0
        %2460 = vmatprep.mubr.bf16.mxu0 %v2247
        %2461 = vmatmul.mubr.bf16.gmra.mxu0 %v2246
        %v2462 = vpop.f32.mrf.mxu0
        %v2463 = vadd.f32 %v2307, %v2462
        %v2464 = vpop.f32.mrf.mxu0
        %v2465 = vpop.f32.mrf.mxu0
        %v2466 = vadd.f32 %v2307, %v2465
        %v2467 = vpop.f32.mrf.mxu0
        %2468 = vmatprep.mubr.bf16.mxu0 %v2249
        %2469 = vmatmul.mubr.bf16.gmra.mxu0 %v2248
        %v2470 = vpop.f32.mrf.mxu0
        %v2471 = vadd.f32 %v2307, %v2470
        %v2472 = vpop.f32.mrf.mxu0
        %v2473 = vpop.f32.mrf.mxu0
        %v2474 = vadd.f32 %v2307, %v2473
        %v2475 = vpop.f32.mrf.mxu0
        %2476 = vmatprep.mubr.bf16.mxu0 %v2251
        %2477 = vmatmul.mubr.bf16.gmra.mxu0 %v2250
        %v2478 = vpop.f32.mrf.mxu0
        %v2479 = vadd.f32 %v2307, %v2478
        %v2480 = vpop.f32.mrf.mxu0
        %v2481 = vpop.f32.mrf.mxu0
        %v2482 = vadd.f32 %v2307, %v2481
        %v2483 = vpop.f32.mrf.mxu0
        %2484 = vmatprep.mubr.bf16.mxu0 %v2253
        %2485 = vmatmul.mubr.bf16.gmra.mxu0 %v2252
        %v2486 = vpop.f32.mrf.mxu0
        %v2487 = vadd.f32 %v2307, %v2486
        %v2488 = vpop.f32.mrf.mxu0
        %v2489 = vpop.f32.mrf.mxu0
        %v2490 = vadd.f32 %v2307, %v2489
        %v2491 = vpop.f32.mrf.mxu0
        %2492 = vmatprep.mubr.bf16.mxu0 %v2255
        %2493 = vmatmul.mubr.bf16.gmra.mxu0 %v2254
        %v2494 = vpop.f32.mrf.mxu0
        %v2495 = vadd.f32 %v2307, %v2494
        %v2496 = vpop.f32.mrf.mxu0
        %v2497 = vpop.f32.mrf.mxu0
        %v2498 = vadd.f32 %v2307, %v2497
        %v2499 = vpop.f32.mrf.mxu0
        %2500 = vmatprep.mubr.bf16.mxu0 %v2257
        %2501 = vmatmul.mubr.bf16.gmra.mxu0 %v2256
        %v2502 = vpop.f32.mrf.mxu0
        %v2503 = vadd.f32 %v2307, %v2502
        %v2504 = vpop.f32.mrf.mxu0
        %v2505 = vpop.f32.mrf.mxu0
        %v2506 = vadd.f32 %v2307, %v2505
        %v2507 = vpop.f32.mrf.mxu0
        %2508 = vmatprep.mubr.bf16.mxu0 %v2259
        %2509 = vmatmul.mubr.bf16.gmra.mxu0 %v2258
        %v2510 = vpop.f32.mrf.mxu0
        %v2511 = vadd.f32 %v2307, %v2510
        %v2512 = vpop.f32.mrf.mxu0
        %v2513 = vpop.f32.mrf.mxu0
        %v2514 = vadd.f32 %v2307, %v2513
        %v2515 = vpop.f32.mrf.mxu0
        %2516 = vmatprep.mubr.bf16.mxu0 %v2261
        %2517 = vmatmul.mubr.bf16.gmra.mxu0 %v2260
        %v2518 = vpop.f32.mrf.mxu0
        %v2519 = vadd.f32 %v2307, %v2518
        %v2520 = vpop.f32.mrf.mxu0
        %v2521 = vpop.f32.mrf.mxu0
        %v2522 = vadd.f32 %v2307, %v2521
        %v2523 = vpop.f32.mrf.mxu0
        %2524 = vmatprep.mubr.bf16.mxu0 %v2263
        %2525 = vmatmul.mubr.bf16.gmra.mxu0 %v2262
        %v2526 = vpop.f32.mrf.mxu0
        %v2527 = vadd.f32 %v2307, %v2526
        %v2528 = vpop.f32.mrf.mxu0
        %v2529 = vpop.f32.mrf.mxu0
        %v2530 = vadd.f32 %v2307, %v2529
        %v2531 = vpop.f32.mrf.mxu0
        %2532 = vmatprep.mubr.bf16.mxu0 %v2265
        %2533 = vmatmul.mubr.bf16.gmra.mxu0 %v2264
        %v2534 = vpop.f32.mrf.mxu0
        %v2535 = vadd.f32 %v2307, %v2534
        %v2536 = vpop.f32.mrf.mxu0
        %v2537 = vpop.f32.mrf.mxu0
        %v2538 = vadd.f32 %v2307, %v2537
        %v2539 = vpop.f32.mrf.mxu0
        %2540 = vmatprep.mubr.bf16.mxu0 %v2267
        %2541 = vmatmul.mubr.bf16.gmra.mxu0 %v2266
        %v2542 = vpop.f32.mrf.mxu0
        %v2543 = vadd.f32 %v2307, %v2542
        %v2544 = vpop.f32.mrf.mxu0
        %v2545 = vpop.f32.mrf.mxu0
        %v2546 = vadd.f32 %v2307, %v2545
        %v2547 = vpop.f32.mrf.mxu0
        %2548 = vmatprep.mubr.bf16.mxu0 %v2269
        %2549 = vmatmul.mubr.bf16.gmra.mxu0 %v2268
        %v2550 = vpop.f32.mrf.mxu0
        %v2551 = vadd.f32 %v2307, %v2550
        %v2552 = vpop.f32.mrf.mxu0
        %v2553 = vpop.f32.mrf.mxu0
        %v2554 = vadd.f32 %v2307, %v2553
        %v2555 = vpop.f32.mrf.mxu0
        %2556 = vmatprep.mubr.bf16.mxu0 %v2271
        %2557 = vmatmul.mubr.bf16.gmra.mxu0 %v2270
        %v2558 = vpop.f32.mrf.mxu0
        %v2559 = vadd.f32 %v2307, %v2558
        %v2560 = vpop.f32.mrf.mxu0
        %v2561 = vpop.f32.mrf.mxu0
        %v2562 = vadd.f32 %v2307, %v2561
        %v2563 = vpop.f32.mrf.mxu0
        %2564 = vmatprep.mubr.bf16.mxu0 %v2273
        %2565 = vmatmul.mubr.bf16.gmra.mxu0 %v2272
        %v2566 = vpop.f32.mrf.mxu0
        %v2567 = vadd.f32 %v2307, %v2566
        %v2568 = vpop.f32.mrf.mxu0
        %v2569 = vpop.f32.mrf.mxu0
        %v2570 = vadd.f32 %v2307, %v2569
        %v2571 = vpop.f32.mrf.mxu0
        %2572 = vmatprep.mubr.bf16.mxu0 %v2275
        %2573 = vmatmul.mubr.bf16.gmra.mxu0 %v2274
        %v2574 = vpop.f32.mrf.mxu0
        %v2575 = vadd.f32 %v2307, %v2574
        %v2576 = vpop.f32.mrf.mxu0
        %v2577 = vpop.f32.mrf.mxu0
        %v2578 = vadd.f32 %v2307, %v2577
        %v2579 = vpop.f32.mrf.mxu0
        %2580 = vmatprep.mubr.bf16.mxu0 %v2277
        %2581 = vmatmul.mubr.bf16.gmra.mxu0 %v2276
        %v2582 = vpop.f32.mrf.mxu0
        %v2583 = vadd.f32 %v2307, %v2582
        %v2584 = vpop.f32.mrf.mxu0
        %v2585 = vpop.f32.mrf.mxu0
        %v2586 = vadd.f32 %v2307, %v2585
        %v2587 = vpop.f32.mrf.mxu0
        %2588 = vmatprep.mubr.bf16.mxu0 %v2279
        %2589 = vmatmul.mubr.bf16.gmra.mxu0 %v2278
        %v2590 = vpop.f32.mrf.mxu0
        %v2591 = vadd.f32 %v2307, %v2590
        %v2592 = vpop.f32.mrf.mxu0
        %v2593 = vpop.f32.mrf.mxu0
        %v2594 = vadd.f32 %v2307, %v2593
        %v2595 = vpop.f32.mrf.mxu0
        %2596 = vmatprep.mubr.bf16.mxu0 %v2281
        %2597 = vmatmul.mubr.bf16.gmra.mxu0 %v2280
        %v2598 = vpop.f32.mrf.mxu0
        %v2599 = vadd.f32 %v2307, %v2598
        %v2600 = vpop.f32.mrf.mxu0
        %v2601 = vpop.f32.mrf.mxu0
        %v2602 = vadd.f32 %v2307, %v2601
        %v2603 = vpop.f32.mrf.mxu0
        %2604 = vmatprep.mubr.bf16.mxu0 %v2283
        %2605 = vmatmul.mubr.bf16.gmra.mxu0 %v2282
        %v2606 = vpop.f32.mrf.mxu0
        %v2607 = vadd.f32 %v2307, %v2606
        %v2608 = vpop.f32.mrf.mxu0
        %v2609 = vpop.f32.mrf.mxu0
        %v2610 = vadd.f32 %v2307, %v2609
        %v2611 = vpop.f32.mrf.mxu0
        %2612 = vmatprep.mubr.bf16.mxu0 %v2285
        %2613 = vmatmul.mubr.bf16.gmra.mxu0 %v2284
        %v2614 = vpop.f32.mrf.mxu0
        %v2615 = vadd.f32 %v2307, %v2614
        %v2616 = vpop.f32.mrf.mxu0
        %v2617 = vpop.f32.mrf.mxu0
        %v2618 = vadd.f32 %v2307, %v2617
        %v2619 = vpop.f32.mrf.mxu0
        %2620 = vmatprep.mubr.bf16.mxu0 %v2287
        %2621 = vmatmul.mubr.bf16.gmra.mxu0 %v2286
        %v2622 = vpop.f32.mrf.mxu0
        %v2623 = vadd.f32 %v2307, %v2622
        %v2624 = vpop.f32.mrf.mxu0
        %v2625 = vpop.f32.mrf.mxu0
        %v2626 = vadd.f32 %v2307, %v2625
        %v2627 = vpop.f32.mrf.mxu0
        %2628 = vmatprep.mubr.bf16.mxu0 %v2289
        %2629 = vmatmul.mubr.bf16.gmra.mxu0 %v2288
        %v2630 = vpop.f32.mrf.mxu0
        %v2631 = vadd.f32 %v2307, %v2630
        %v2632 = vpop.f32.mrf.mxu0
        %v2633 = vpop.f32.mrf.mxu0
        %v2634 = vadd.f32 %v2307, %v2633
        %v2635 = vpop.f32.mrf.mxu0
        %2636 = vmatprep.mubr.bf16.mxu0 %v2291
        %2637 = vmatmul.mubr.bf16.gmra.mxu0 %v2290
        %v2638 = vpop.f32.mrf.mxu0
        %v2639 = vadd.f32 %v2307, %v2638
        %v2640 = vpop.f32.mrf.mxu0
        %v2641 = vpop.f32.mrf.mxu0
        %v2642 = vadd.f32 %v2307, %v2641
        %v2643 = vpop.f32.mrf.mxu0
        %2644 = vmatprep.mubr.bf16.mxu0 %v2293
        %2645 = vmatmul.mubr.bf16.gmra.mxu0 %v2292
        %v2646 = vpop.f32.mrf.mxu0
        %v2647 = vadd.f32 %v2307, %v2646
        %v2648 = vpop.f32.mrf.mxu0
        %v2649 = vpop.f32.mrf.mxu0
        %v2650 = vadd.f32 %v2307, %v2649
        %v2651 = vpop.f32.mrf.mxu0
        %2652 = vmatprep.mubr.bf16.mxu0 %v2295
        %2653 = vmatmul.mubr.bf16.gmra.mxu0 %v2294
        %v2654 = vpop.f32.mrf.mxu0
        %v2655 = vadd.f32 %v2307, %v2654
        %v2656 = vpop.f32.mrf.mxu0
        %v2657 = vpop.f32.mrf.mxu0
        %v2658 = vadd.f32 %v2307, %v2657
        %v2659 = vpop.f32.mrf.mxu0
        %2660 = vmatprep.mubr.bf16.mxu0 %v2297
        %2661 = vmatmul.mubr.bf16.gmra.mxu0 %v2296
        %v2662 = vpop.f32.mrf.mxu0
        %v2663 = vadd.f32 %v2307, %v2662
        %v2664 = vpop.f32.mrf.mxu0
        %v2665 = vpop.f32.mrf.mxu0
        %v2666 = vadd.f32 %v2307, %v2665
        %v2667 = vpop.f32.mrf.mxu0
        %2668 = vmatprep.mubr.bf16.mxu0 %v2299
        %2669 = vmatmul.mubr.bf16.gmra.mxu0 %v2298
        %v2670 = vpop.f32.mrf.mxu0
        %v2671 = vadd.f32 %v2307, %v2670
        %v2672 = vpop.f32.mrf.mxu0
        %v2673 = vpop.f32.mrf.mxu0
        %v2674 = vadd.f32 %v2307, %v2673
        %v2675 = vpop.f32.mrf.mxu0
        %2676 = vmatprep.mubr.bf16.mxu0 %v2301
        %2677 = vmatmul.mubr.bf16.gmra.mxu0 %v2300
        %v2678 = vpop.f32.mrf.mxu0
        %v2679 = vadd.f32 %v2307, %v2678
        %v2680 = vpop.f32.mrf.mxu0
        %v2681 = vpop.f32.mrf.mxu0
        %v2682 = vadd.f32 %v2307, %v2681
        %v2683 = vpop.f32.mrf.mxu0
        %2684 = vmatprep.mubr.bf16.mxu0 %v2303
        %2685 = vmatmul.mubr.bf16.gmra.mxu0 %v2302
        %v2686 = vpop.f32.mrf.mxu0
        %v2687 = vadd.f32 %v2307, %v2686
        %v2688 = vpop.f32.mrf.mxu0
        %v2689 = vpop.f32.mrf.mxu0
        %v2690 = vadd.f32 %v2307, %v2689
        %v2691 = vpop.f32.mrf.mxu0
        %2692 = vdwg.mxu0
        %v2693 = vmax.f32 %v2439, 0.0
        %v2694 = vmax.f32 %v2442, 0.0
        %v2695 = vmax.f32 %v2447, 0.0
        %v2696 = vmax.f32 %v2450, 0.0
        %v2697 = vmax.f32 %v2455, 0.0
        %v2698 = vmax.f32 %v2458, 0.0
        %v2699 = vmax.f32 %v2463, 0.0
        %v2700 = vmax.f32 %v2466, 0.0
        %v2701 = vmax.f32 %v2471, 0.0
        %v2702 = vmax.f32 %v2474, 0.0
        %v2703 = vmax.f32 %v2479, 0.0
        %v2704 = vmax.f32 %v2482, 0.0
        %v2705 = vmax.f32 %v2487, 0.0
        %v2706 = vmax.f32 %v2490, 0.0
        %v2707 = vmax.f32 %v2495, 0.0
        %v2708 = vmax.f32 %v2498, 0.0
        %v2709 = vmax.f32 %v2503, 0.0
        %v2710 = vmax.f32 %v2506, 0.0
        %v2711 = vmax.f32 %v2511, 0.0
        %v2712 = vmax.f32 %v2514, 0.0
        %v2713 = vmax.f32 %v2519, 0.0
        %v2714 = vmax.f32 %v2522, 0.0
        %v2715 = vmax.f32 %v2527, 0.0
        %v2716 = vmax.f32 %v2530, 0.0
        %v2717 = vmax.f32 %v2535, 0.0
        %v2718 = vmax.f32 %v2538, 0.0
        %v2719 = vmax.f32 %v2543, 0.0
        %v2720 = vmax.f32 %v2546, 0.0
        %v2721 = vmax.f32 %v2551, 0.0
        %v2722 = vmax.f32 %v2554, 0.0
        %v2723 = vmax.f32 %v2559, 0.0
        %v2724 = vmax.f32 %v2562, 0.0
        %v2725 = vmax.f32 %v2567, 0.0
        %v2726 = vmax.f32 %v2570, 0.0
        %v2727 = vmax.f32 %v2575, 0.0
        %v2728 = vmax.f32 %v2578, 0.0
        %v2729 = vmax.f32 %v2583, 0.0
        %v2730 = vmax.f32 %v2586, 0.0
        %v2731 = vmax.f32 %v2591, 0.0
        %v2732 = vmax.f32 %v2594, 0.0
        %v2733 = vmax.f32 %v2599, 0.0
        %v2734 = vmax.f32 %v2602, 0.0
        %v2735 = vmax.f32 %v2607, 0.0
        %v2736 = vmax.f32 %v2610, 0.0
        %v2737 = vmax.f32 %v2615, 0.0
        %v2738 = vmax.f32 %v2618, 0.0
        %v2739 = vmax.f32 %v2623, 0.0
        %v2740 = vmax.f32 %v2626, 0.0
        %v2741 = vmax.f32 %v2631, 0.0
        %v2742 = vmax.f32 %v2634, 0.0
        %v2743 = vmax.f32 %v2639, 0.0
        %v2744 = vmax.f32 %v2642, 0.0
        %v2745 = vmax.f32 %v2647, 0.0
        %v2746 = vmax.f32 %v2650, 0.0
        %v2747 = vmax.f32 %v2655, 0.0
        %v2748 = vmax.f32 %v2658, 0.0
        %v2749 = vmax.f32 %v2663, 0.0
        %v2750 = vmax.f32 %v2666, 0.0
        %v2751 = vmax.f32 %v2671, 0.0
        %v2752 = vmax.f32 %v2674, 0.0
        %v2753 = vmax.f32 %v2679, 0.0
        %v2754 = vmax.f32 %v2682, 0.0
        %v2755 = vmax.f32 %v2687, 0.0
        %v2756 = vmax.f32 %v2690, 0.0
        %v2757 = vpack.c.bf16 %v2694, %v2693
        %v2758 = vpack.c.bf16 %v2696, %v2695
        %v2759 = vpack.c.bf16 %v2698, %v2697
        %v2760 = vpack.c.bf16 %v2700, %v2699
        %v2761 = vpack.c.bf16 %v2702, %v2701
        %v2762 = vpack.c.bf16 %v2704, %v2703
        %v2763 = vpack.c.bf16 %v2706, %v2705
        %v2764 = vpack.c.bf16 %v2708, %v2707
        %v2765 = vpack.c.bf16 %v2710, %v2709
        %v2766 = vpack.c.bf16 %v2712, %v2711
        %v2767 = vpack.c.bf16 %v2714, %v2713
        %v2768 = vpack.c.bf16 %v2716, %v2715
        %v2769 = vpack.c.bf16 %v2718, %v2717
        %v2770 = vpack.c.bf16 %v2720, %v2719
        %v2771 = vpack.c.bf16 %v2722, %v2721
        %v2772 = vpack.c.bf16 %v2724, %v2723
        %v2773 = vpack.c.bf16 %v2726, %v2725
        %v2774 = vpack.c.bf16 %v2728, %v2727
        %v2775 = vpack.c.bf16 %v2730, %v2729
        %v2776 = vpack.c.bf16 %v2732, %v2731
        %v2777 = vpack.c.bf16 %v2734, %v2733
        %v2778 = vpack.c.bf16 %v2736, %v2735
        %v2779 = vpack.c.bf16 %v2738, %v2737
        %v2780 = vpack.c.bf16 %v2740, %v2739
        %v2781 = vpack.c.bf16 %v2742, %v2741
        %v2782 = vpack.c.bf16 %v2744, %v2743
        %v2783 = vpack.c.bf16 %v2746, %v2745
        %v2784 = vpack.c.bf16 %v2748, %v2747
        %v2785 = vpack.c.bf16 %v2750, %v2749
        %v2786 = vpack.c.bf16 %v2752, %v2751
        %v2787 = vpack.c.bf16 %v2754, %v2753
        %v2788 = vpack.c.bf16 %v2756, %v2755
        %v2789 = vlaneseq
        %v2790 = vshrl.u32 %v2789, 7
        %v2791 = vsub.s32 0, %v2790
        %v2792 = vrot.slane %v1833, %v2791
        %v2809 = vunpack.c.l.b16 %v1817
        %v2810 = vunpack.c.l.b16 %v1818
        %v2811 = vunpack.c.l.b16 %v1819
        %v2812 = vunpack.c.l.b16 %v1820
        %v2813 = vunpack.c.l.b16 %v1821
        %v2814 = vunpack.c.l.b16 %v1822
        %v2815 = vunpack.c.l.b16 %v1823
        %v2816 = vunpack.c.l.b16 %v1824
        %v2817 = vunpack.c.l.b16 %v1825
        %v2818 = vunpack.c.l.b16 %v1826
        %v2819 = vunpack.c.l.b16 %v1827
        %v2820 = vunpack.c.l.b16 %v1828
        %v2821 = vunpack.c.l.b16 %v1829
        %v2822 = vunpack.c.l.b16 %v1830
        %v2823 = vunpack.c.l.b16 %v1831
        %v2824 = vunpack.c.l.b16 %v1832
        %v2825 = vpack.c.b16 %v2810, %v2809
        %v2826 = vpack.c.b16 %v2812, %v2811
        %v2827 = vpack.c.b16 %v2814, %v2813
        %v2828 = vpack.c.b16 %v2816, %v2815
        %v2829 = vpack.c.b16 %v2818, %v2817
        %v2830 = vpack.c.b16 %v2820, %v2819
        %v2831 = vpack.c.b16 %v2822, %v2821
        %v2832 = vpack.c.b16 %v2824, %v2823
        %2841 = vmatprep.subr.bf16.mxu0 0
        %2842 = vmatpush1.bf16.msra.mxu0 %v2832
        %2843 = vmatprep.subr.bf16.mxu0 0
        %2844 = vmatpush1.bf16.msra.mxu0 %v2831
        %2845 = vmatprep.subr.bf16.mxu0 0
        %2846 = vmatpush1.bf16.msra.mxu0 %v2830
        %2847 = vmatprep.subr.bf16.mxu0 0
        %2848 = vmatpush1.bf16.msra.mxu0 %v2829
        %2849 = vmatprep.subr.bf16.mxu0 0
        %2850 = vmatpush1.bf16.msra.mxu0 %v2828
        %2851 = vmatprep.subr.bf16.mxu0 0
        %2852 = vmatpush1.bf16.msra.mxu0 %v2827
        %2853 = vmatprep.subr.bf16.mxu0 0
        %2854 = vmatpush1.bf16.msra.mxu0 %v2826
        %2855 = vmatprep.subr.bf16.mxu0 0
        %2856 = vmatpush1.bf16.msra.mxu0 %v2825
        %2857 = vmatprep.subr.bf16.mxu0 0
        %2858 = vmatpush2.bf16.msra.mxu0 0
        %2859 = vmatprep.subr.bf16.mxu0 0
        %2860 = vmatpush2.bf16.msra.mxu0 0
        %2861 = vmatprep.subr.bf16.mxu0 0
        %2862 = vmatpush2.bf16.msra.mxu0 0
        %2863 = vmatprep.subr.bf16.mxu0 0
        %2864 = vmatpush2.bf16.msra.mxu0 0
        %2865 = vmatprep.subr.bf16.mxu0 0
        %2866 = vmatpush2.bf16.msra.mxu0 0
        %2867 = vmatprep.subr.bf16.mxu0 0
        %2868 = vmatpush2.bf16.msra.mxu0 0
        %2869 = vmatprep.subr.bf16.mxu0 0
        %2870 = vmatpush2.bf16.msra.mxu0 0
        %2871 = vmatprep.subr.bf16.mxu0 0
        %2872 = vmatpush2.bf16.msra.mxu0 0
        %2873 = vmatprep.mubr.bf16.mxu0 0
        %2874 = vmatmul.mubr.bf16.gmra.mxu0 %v2757
        %v2875 = vpop.f32.mrf.mxu0
        %v2876 = vadd.f32 %v2792, %v2875
        %v2877 = vpop.f32.mrf.mxu0
        %v2878 = vpop.f32.mrf.mxu0
        %v2879 = vadd.f32 %v2792, %v2878
        %v2880 = vpop.f32.mrf.mxu0
        %2881 = vmatprep.mubr.bf16.mxu0 0
        %2882 = vmatmul.mubr.bf16.gmra.mxu0 %v2758
        %v2883 = vpop.f32.mrf.mxu0
        %v2884 = vadd.f32 %v2792, %v2883
        %v2885 = vpop.f32.mrf.mxu0
        %v2886 = vpop.f32.mrf.mxu0
        %v2887 = vadd.f32 %v2792, %v2886
        %v2888 = vpop.f32.mrf.mxu0
        %2889 = vmatprep.mubr.bf16.mxu0 0
        %2890 = vmatmul.mubr.bf16.gmra.mxu0 %v2759
        %v2891 = vpop.f32.mrf.mxu0
        %v2892 = vadd.f32 %v2792, %v2891
        %v2893 = vpop.f32.mrf.mxu0
        %v2894 = vpop.f32.mrf.mxu0
        %v2895 = vadd.f32 %v2792, %v2894
        %v2896 = vpop.f32.mrf.mxu0
        %2897 = vmatprep.mubr.bf16.mxu0 0
        %2898 = vmatmul.mubr.bf16.gmra.mxu0 %v2760
        %v2899 = vpop.f32.mrf.mxu0
        %v2900 = vadd.f32 %v2792, %v2899
        %v2901 = vpop.f32.mrf.mxu0
        %v2902 = vpop.f32.mrf.mxu0
        %v2903 = vadd.f32 %v2792, %v2902
        %v2904 = vpop.f32.mrf.mxu0
        %2905 = vmatprep.mubr.bf16.mxu0 0
        %2906 = vmatmul.mubr.bf16.gmra.mxu0 %v2761
        %v2907 = vpop.f32.mrf.mxu0
        %v2908 = vadd.f32 %v2792, %v2907
        %v2909 = vpop.f32.mrf.mxu0
        %v2910 = vpop.f32.mrf.mxu0
        %v2911 = vadd.f32 %v2792, %v2910
        %v2912 = vpop.f32.mrf.mxu0
        %2913 = vmatprep.mubr.bf16.mxu0 0
        %2914 = vmatmul.mubr.bf16.gmra.mxu0 %v2762
        %v2915 = vpop.f32.mrf.mxu0
        %v2916 = vadd.f32 %v2792, %v2915
        %v2917 = vpop.f32.mrf.mxu0
        %v2918 = vpop.f32.mrf.mxu0
        %v2919 = vadd.f32 %v2792, %v2918
        %v2920 = vpop.f32.mrf.mxu0
        %2921 = vmatprep.mubr.bf16.mxu0 0
        %2922 = vmatmul.mubr.bf16.gmra.mxu0 %v2763
        %v2923 = vpop.f32.mrf.mxu0
        %v2924 = vadd.f32 %v2792, %v2923
        %v2925 = vpop.f32.mrf.mxu0
        %v2926 = vpop.f32.mrf.mxu0
        %v2927 = vadd.f32 %v2792, %v2926
        %v2928 = vpop.f32.mrf.mxu0
        %2929 = vmatprep.mubr.bf16.mxu0 0
        %2930 = vmatmul.mubr.bf16.gmra.mxu0 %v2764
        %v2931 = vpop.f32.mrf.mxu0
        %v2932 = vadd.f32 %v2792, %v2931
        %v2933 = vpop.f32.mrf.mxu0
        %v2934 = vpop.f32.mrf.mxu0
        %v2935 = vadd.f32 %v2792, %v2934
        %v2936 = vpop.f32.mrf.mxu0
        %2937 = vmatprep.mubr.bf16.mxu0 0
        %2938 = vmatmul.mubr.bf16.gmra.mxu0 %v2765
        %v2939 = vpop.f32.mrf.mxu0
        %v2940 = vadd.f32 %v2792, %v2939
        %v2941 = vpop.f32.mrf.mxu0
        %v2942 = vpop.f32.mrf.mxu0
        %v2943 = vadd.f32 %v2792, %v2942
        %v2944 = vpop.f32.mrf.mxu0
        %2945 = vmatprep.mubr.bf16.mxu0 0
        %2946 = vmatmul.mubr.bf16.gmra.mxu0 %v2766
        %v2947 = vpop.f32.mrf.mxu0
        %v2948 = vadd.f32 %v2792, %v2947
        %v2949 = vpop.f32.mrf.mxu0
        %v2950 = vpop.f32.mrf.mxu0
        %v2951 = vadd.f32 %v2792, %v2950
        %v2952 = vpop.f32.mrf.mxu0
        %2953 = vmatprep.mubr.bf16.mxu0 0
        %2954 = vmatmul.mubr.bf16.gmra.mxu0 %v2767
        %v2955 = vpop.f32.mrf.mxu0
        %v2956 = vadd.f32 %v2792, %v2955
        %v2957 = vpop.f32.mrf.mxu0
        %v2958 = vpop.f32.mrf.mxu0
        %v2959 = vadd.f32 %v2792, %v2958
        %v2960 = vpop.f32.mrf.mxu0
        %2961 = vmatprep.mubr.bf16.mxu0 0
        %2962 = vmatmul.mubr.bf16.gmra.mxu0 %v2768
        %v2963 = vpop.f32.mrf.mxu0
        %v2964 = vadd.f32 %v2792, %v2963
        %v2965 = vpop.f32.mrf.mxu0
        %v2966 = vpop.f32.mrf.mxu0
        %v2967 = vadd.f32 %v2792, %v2966
        %v2968 = vpop.f32.mrf.mxu0
        %2969 = vmatprep.mubr.bf16.mxu0 0
        %2970 = vmatmul.mubr.bf16.gmra.mxu0 %v2769
        %v2971 = vpop.f32.mrf.mxu0
        %v2972 = vadd.f32 %v2792, %v2971
        %v2973 = vpop.f32.mrf.mxu0
        %v2974 = vpop.f32.mrf.mxu0
        %v2975 = vadd.f32 %v2792, %v2974
        %v2976 = vpop.f32.mrf.mxu0
        %2977 = vmatprep.mubr.bf16.mxu0 0
        %2978 = vmatmul.mubr.bf16.gmra.mxu0 %v2770
        %v2979 = vpop.f32.mrf.mxu0
        %v2980 = vadd.f32 %v2792, %v2979
        %v2981 = vpop.f32.mrf.mxu0
        %v2982 = vpop.f32.mrf.mxu0
        %v2983 = vadd.f32 %v2792, %v2982
        %v2984 = vpop.f32.mrf.mxu0
        %2985 = vmatprep.mubr.bf16.mxu0 0
        %2986 = vmatmul.mubr.bf16.gmra.mxu0 %v2771
        %v2987 = vpop.f32.mrf.mxu0
        %v2988 = vadd.f32 %v2792, %v2987
        %v2989 = vpop.f32.mrf.mxu0
        %v2990 = vpop.f32.mrf.mxu0
        %v2991 = vadd.f32 %v2792, %v2990
        %v2992 = vpop.f32.mrf.mxu0
        %2993 = vmatprep.mubr.bf16.mxu0 0
        %2994 = vmatmul.mubr.bf16.gmra.mxu0 %v2772
        %v2995 = vpop.f32.mrf.mxu0
        %v2996 = vadd.f32 %v2792, %v2995
        %v2997 = vpop.f32.mrf.mxu0
        %v2998 = vpop.f32.mrf.mxu0
        %v2999 = vadd.f32 %v2792, %v2998
        %v3000 = vpop.f32.mrf.mxu0
        %3001 = vmatprep.mubr.bf16.mxu0 0
        %3002 = vmatmul.mubr.bf16.gmra.mxu0 %v2773
        %v3003 = vpop.f32.mrf.mxu0
        %v3004 = vadd.f32 %v2792, %v3003
        %v3005 = vpop.f32.mrf.mxu0
        %v3006 = vpop.f32.mrf.mxu0
        %v3007 = vadd.f32 %v2792, %v3006
        %v3008 = vpop.f32.mrf.mxu0
        %3009 = vmatprep.mubr.bf16.mxu0 0
        %3010 = vmatmul.mubr.bf16.gmra.mxu0 %v2774
        %v3011 = vpop.f32.mrf.mxu0
        %v3012 = vadd.f32 %v2792, %v3011
        %v3013 = vpop.f32.mrf.mxu0
        %v3014 = vpop.f32.mrf.mxu0
        %v3015 = vadd.f32 %v2792, %v3014
        %v3016 = vpop.f32.mrf.mxu0
        %3017 = vmatprep.mubr.bf16.mxu0 0
        %3018 = vmatmul.mubr.bf16.gmra.mxu0 %v2775
        %v3019 = vpop.f32.mrf.mxu0
        %v3020 = vadd.f32 %v2792, %v3019
        %v3021 = vpop.f32.mrf.mxu0
        %v3022 = vpop.f32.mrf.mxu0
        %v3023 = vadd.f32 %v2792, %v3022
        %v3024 = vpop.f32.mrf.mxu0
        %3025 = vmatprep.mubr.bf16.mxu0 0
        %3026 = vmatmul.mubr.bf16.gmra.mxu0 %v2776
        %v3027 = vpop.f32.mrf.mxu0
        %v3028 = vadd.f32 %v2792, %v3027
        %v3029 = vpop.f32.mrf.mxu0
        %v3030 = vpop.f32.mrf.mxu0
        %v3031 = vadd.f32 %v2792, %v3030
        %v3032 = vpop.f32.mrf.mxu0
        %3033 = vmatprep.mubr.bf16.mxu0 0
        %3034 = vmatmul.mubr.bf16.gmra.mxu0 %v2777
        %v3035 = vpop.f32.mrf.mxu0
        %v3036 = vadd.f32 %v2792, %v3035
        %v3037 = vpop.f32.mrf.mxu0
        %v3038 = vpop.f32.mrf.mxu0
        %v3039 = vadd.f32 %v2792, %v3038
        %v3040 = vpop.f32.mrf.mxu0
        %3041 = vmatprep.mubr.bf16.mxu0 0
        %3042 = vmatmul.mubr.bf16.gmra.mxu0 %v2778
        %v3043 = vpop.f32.mrf.mxu0
        %v3044 = vadd.f32 %v2792, %v3043
        %v3045 = vpop.f32.mrf.mxu0
        %v3046 = vpop.f32.mrf.mxu0
        %v3047 = vadd.f32 %v2792, %v3046
        %v3048 = vpop.f32.mrf.mxu0
        %3049 = vmatprep.mubr.bf16.mxu0 0
        %3050 = vmatmul.mubr.bf16.gmra.mxu0 %v2779
        %v3051 = vpop.f32.mrf.mxu0
        %v3052 = vadd.f32 %v2792, %v3051
        %v3053 = vpop.f32.mrf.mxu0
        %v3054 = vpop.f32.mrf.mxu0
        %v3055 = vadd.f32 %v2792, %v3054
        %v3056 = vpop.f32.mrf.mxu0
        %3057 = vmatprep.mubr.bf16.mxu0 0
        %3058 = vmatmul.mubr.bf16.gmra.mxu0 %v2780
        %v3059 = vpop.f32.mrf.mxu0
        %v3060 = vadd.f32 %v2792, %v3059
        %v3061 = vpop.f32.mrf.mxu0
        %v3062 = vpop.f32.mrf.mxu0
        %v3063 = vadd.f32 %v2792, %v3062
        %v3064 = vpop.f32.mrf.mxu0
        %3065 = vmatprep.mubr.bf16.mxu0 0
        %3066 = vmatmul.mubr.bf16.gmra.mxu0 %v2781
        %v3067 = vpop.f32.mrf.mxu0
        %v3068 = vadd.f32 %v2792, %v3067
        %v3069 = vpop.f32.mrf.mxu0
        %v3070 = vpop.f32.mrf.mxu0
        %v3071 = vadd.f32 %v2792, %v3070
        %v3072 = vpop.f32.mrf.mxu0
        %3073 = vmatprep.mubr.bf16.mxu0 0
        %3074 = vmatmul.mubr.bf16.gmra.mxu0 %v2782
        %v3075 = vpop.f32.mrf.mxu0
        %v3076 = vadd.f32 %v2792, %v3075
        %v3077 = vpop.f32.mrf.mxu0
        %v3078 = vpop.f32.mrf.mxu0
        %v3079 = vadd.f32 %v2792, %v3078
        %v3080 = vpop.f32.mrf.mxu0
        %3081 = vmatprep.mubr.bf16.mxu0 0
        %3082 = vmatmul.mubr.bf16.gmra.mxu0 %v2783
        %v3083 = vpop.f32.mrf.mxu0
        %v3084 = vadd.f32 %v2792, %v3083
        %v3085 = vpop.f32.mrf.mxu0
        %v3086 = vpop.f32.mrf.mxu0
        %v3087 = vadd.f32 %v2792, %v3086
        %v3088 = vpop.f32.mrf.mxu0
        %3089 = vmatprep.mubr.bf16.mxu0 0
        %3090 = vmatmul.mubr.bf16.gmra.mxu0 %v2784
        %v3091 = vpop.f32.mrf.mxu0
        %v3092 = vadd.f32 %v2792, %v3091
        %v3093 = vpop.f32.mrf.mxu0
        %v3094 = vpop.f32.mrf.mxu0
        %v3095 = vadd.f32 %v2792, %v3094
        %v3096 = vpop.f32.mrf.mxu0
        %3097 = vmatprep.mubr.bf16.mxu0 0
        %3098 = vmatmul.mubr.bf16.gmra.mxu0 %v2785
        %v3099 = vpop.f32.mrf.mxu0
        %v3100 = vadd.f32 %v2792, %v3099
        %v3101 = vpop.f32.mrf.mxu0
        %v3102 = vpop.f32.mrf.mxu0
        %v3103 = vadd.f32 %v2792, %v3102
        %v3104 = vpop.f32.mrf.mxu0
        %3105 = vmatprep.mubr.bf16.mxu0 0
        %3106 = vmatmul.mubr.bf16.gmra.mxu0 %v2786
        %v3107 = vpop.f32.mrf.mxu0
        %v3108 = vadd.f32 %v2792, %v3107
        %v3109 = vpop.f32.mrf.mxu0
        %v3110 = vpop.f32.mrf.mxu0
        %v3111 = vadd.f32 %v2792, %v3110
        %v3112 = vpop.f32.mrf.mxu0
        %3113 = vmatprep.mubr.bf16.mxu0 0
        %3114 = vmatmul.mubr.bf16.gmra.mxu0 %v2787
        %v3115 = vpop.f32.mrf.mxu0
        %v3116 = vadd.f32 %v2792, %v3115
        %v3117 = vpop.f32.mrf.mxu0
        %v3118 = vpop.f32.mrf.mxu0
        %v3119 = vadd.f32 %v2792, %v3118
        %v3120 = vpop.f32.mrf.mxu0
        %3121 = vmatprep.mubr.bf16.mxu0 0
        %3122 = vmatmul.mubr.bf16.gmra.mxu0 %v2788
        %v3123 = vpop.f32.mrf.mxu0
        %v3124 = vadd.f32 %v2792, %v3123
        %v3125 = vpop.f32.mrf.mxu0
        %v3126 = vpop.f32.mrf.mxu0
        %v3127 = vadd.f32 %v2792, %v3126
        %v3128 = vpop.f32.mrf.mxu0
        %3129 = vdwg.mxu0
        %3130 = vst [vmem:[%s271] sm:$0xff] %v2876
        %3131 = vst [vmem:[%s271 + $0x8] sm:$0xff] %v2879
        %3132 = vst [vmem:[%s271 + $0x10] sm:$0xff] %v2884
        %3133 = vst [vmem:[%s271 + $0x18] sm:$0xff] %v2887
        %3134 = vst [vmem:[%s271 + $0x20] sm:$0xff] %v2892
        %3135 = vst [vmem:[%s271 + $0x28] sm:$0xff] %v2895
        %3136 = vst [vmem:[%s271 + $0x30] sm:$0xff] %v2900
        %3137 = vst [vmem:[%s271 + $0x38] sm:$0xff] %v2903
        %3138 = vst [vmem:[%s271 + $0x40] sm:$0xff] %v2908
        %3139 = vst [vmem:[%s271 + $0x48] sm:$0xff] %v2911
        %3140 = vst [vmem:[%s271 + $0x50] sm:$0xff] %v2916
        %3141 = vst [vmem:[%s271 + $0x58] sm:$0xff] %v2919
        %3142 = vst [vmem:[%s271 + $0x60] sm:$0xff] %v2924
        %3143 = vst [vmem:[%s271 + $0x68] sm:$0xff] %v2927
        %3144 = vst [vmem:[%s271 + $0x70] sm:$0xff] %v2932
        %3145 = vst [vmem:[%s271 + $0x78] sm:$0xff] %v2935
        %3146 = vst [vmem:[%s271 + $0x80] sm:$0xff] %v2940
        %3147 = vst [vmem:[%s271 + $0x88] sm:$0xff] %v2943
        %3148 = vst [vmem:[%s271 + $0x90] sm:$0xff] %v2948
        %3149 = vst [vmem:[%s271 + $0x98] sm:$0xff] %v2951
        %3150 = vst [vmem:[%s271 + $0xa0] sm:$0xff] %v2956
        %3151 = vst [vmem:[%s271 + $0xa8] sm:$0xff] %v2959
        %3152 = vst [vmem:[%s271 + $0xb0] sm:$0xff] %v2964
        %3153 = vst [vmem:[%s271 + $0xb8] sm:$0xff] %v2967
        %3154 = vst [vmem:[%s271 + $0xc0] sm:$0xff] %v2972
        %3155 = vst [vmem:[%s271 + $0xc8] sm:$0xff] %v2975
        %3156 = vst [vmem:[%s271 + $0xd0] sm:$0xff] %v2980
        %3157 = vst [vmem:[%s271 + $0xd8] sm:$0xff] %v2983
        %3158 = vst [vmem:[%s271 + $0xe0] sm:$0xff] %v2988
        %3159 = vst [vmem:[%s271 + $0xe8] sm:$0xff] %v2991
        %3160 = vst [vmem:[%s271 + $0xf0] sm:$0xff] %v2996
        %3161 = vst [vmem:[%s271 + $0xf8] sm:$0xff] %v2999
        %3162 = vst [vmem:[%s271 + $0x100] sm:$0xff] %v3004
        %3163 = vst [vmem:[%s271 + $0x108] sm:$0xff] %v3007
        %3164 = vst [vmem:[%s271 + $0x110] sm:$0xff] %v3012
        %3165 = vst [vmem:[%s271 + $0x118] sm:$0xff] %v3015
        %3166 = vst [vmem:[%s271 + $0x120] sm:$0xff] %v3020
        %3167 = vst [vmem:[%s271 + $0x128] sm:$0xff] %v3023
        %3168 = vst [vmem:[%s271 + $0x130] sm:$0xff] %v3028
        %3169 = vst [vmem:[%s271 + $0x138] sm:$0xff] %v3031
        %3170 = vst [vmem:[%s271 + $0x140] sm:$0xff] %v3036
        %3171 = vst [vmem:[%s271 + $0x148] sm:$0xff] %v3039
        %3172 = vst [vmem:[%s271 + $0x150] sm:$0xff] %v3044
        %3173 = vst [vmem:[%s271 + $0x158] sm:$0xff] %v3047
        %3174 = vst [vmem:[%s271 + $0x160] sm:$0xff] %v3052
        %3175 = vst [vmem:[%s271 + $0x168] sm:$0xff] %v3055
        %3176 = vst [vmem:[%s271 + $0x170] sm:$0xff] %v3060
        %3177 = vst [vmem:[%s271 + $0x178] sm:$0xff] %v3063
        %3178 = vst [vmem:[%s271 + $0x180] sm:$0xff] %v3068
        %3179 = vst [vmem:[%s271 + $0x188] sm:$0xff] %v3071
        %3180 = vst [vmem:[%s271 + $0x190] sm:$0xff] %v3076
        %3181 = vst [vmem:[%s271 + $0x198] sm:$0xff] %v3079
        %3182 = vst [vmem:[%s271 + $0x1a0] sm:$0xff] %v3084
        %3183 = vst [vmem:[%s271 + $0x1a8] sm:$0xff] %v3087
        %3184 = vst [vmem:[%s271 + $0x1b0] sm:$0xff] %v3092
        %3185 = vst [vmem:[%s271 + $0x1b8] sm:$0xff] %v3095
        %3186 = vst [vmem:[%s271 + $0x1c0] sm:$0xff] %v3100
        %3187 = vst [vmem:[%s271 + $0x1c8] sm:$0xff] %v3103
        %3188 = vst [vmem:[%s271 + $0x1d0] sm:$0xff] %v3108
        %3189 = vst [vmem:[%s271 + $0x1d8] sm:$0xff] %v3111
        %3190 = vst [vmem:[%s271 + $0x1e0] sm:$0xff] %v3116
        %3191 = vst [vmem:[%s271 + $0x1e8] sm:$0xff] %v3119
        %3192 = vst [vmem:[%s271 + $0x1f0] sm:$0xff] %v3124
        %3193 = vst [vmem:[%s271 + $0x1f8] sm:$0xff] %v3127
        %s3194 = sand.u32 %s135, 1
        %s3195 = scalar_lea.sflag [#allocation5], %s3194
        %s3196 = sand.u32 %s135, 1
        %s3197 = smul.addr %s3196, 512
        %s3198 = scalar_lea.vmem [#allocation12], %s3197
        // Predicated region
        $region65: #{tpu_custom_call.1} parent=39 // pred_check
          %p3199 = pneg %p145
        $region66: #{tpu_custom_call.1} parent=39 // pred_check_branch
          %3201 = sbr.rel (%p3199) target = $region68
        $region67: #{tpu_custom_call.1} parent=39 // pred_region
          %s3202 = smul.u32 64, %s22
          %s3204 = ssub.s32 8192, 8192
          %3205 = vsyncadd %s3195, %s3204
          %s3206 = smul.addr %s3202, 128
          %s3207 = scalar_lea.hbm %s5, %s3206
          %s3208 = sshll.u32 %s3198, 4
          %s3209 = int_to_ptr.vmem [resolvable:$true] %s3208
          %3214 = dma.vmem_to_hbm [thread:$0]  %s3209, 8192, %s3207, %s3195, 128, 128, 8
        $region68: #{tpu_custom_call.1} parent=39 // pred_fallthru
          _
      $region40: #{tpu_custom_call.1} parent=5 // pred_fallthru
        _
      %p3215 = scmp.le.s32.totalorder 2, %s17
      // Predicated region
      $region69: #{tpu_custom_call.1} parent=5 // pred_check
        %p3216 = pneg %p3215
      $region70: #{tpu_custom_call.1} parent=5 // pred_check_branch
        %3218 = sbr.rel (%p3216) target = $region72
      $region71: #{tpu_custom_call.1} parent=5 // pred_region
        %s3219 = ssub.s32 %s17, 2
        // Predicated region
        $region73: #{tpu_custom_call.1} parent=71 // pred_check
          %p3220 = pneg %p151
        $region74: #{tpu_custom_call.1} parent=71 // pred_check_branch
          %3222 = sbr.rel (%p3220) target = $region76
        $region75: #{tpu_custom_call.1} parent=71 // pred_region
          %s3223 = sand.u32 %s136, 1
          %s3224 = scalar_lea.sflag [#allocation5], %s3223
          %s3225 = sand.u32 %s136, 1
          %s3226 = smul.addr %s3225, 512
          %s3227 = scalar_lea.vmem [#allocation12], %s3226
          %3228 = dma.done %s3224, 8192
        $region76: #{tpu_custom_call.1} parent=71 // pred_fallthru
          _
      $region72: #{tpu_custom_call.1} parent=5 // pred_fallthru
        _
    $region6: #{tpu_custom_call.1} parent=1 // loop_footer
      %s21 = sadd.s32 1, %s17
    $region7: #{tpu_custom_call.1} parent=1 // loop_footer_branch
      %16 = sbr.rel target = $region3
    $region8: #{tpu_custom_call.1} parent=1 // loop_exit
      _
    %3229 = vsyncpa [#allocation4], 1
    %s3230 = scalar_lea.sflag [#allocation4], 1
    %3231 = vsyncpa %s3230, 1
    %3232 = vsyncpa [#allocation7], 1
    %3233 = vsyncpa [#allocation10], 1
    %3234 = vsyncpa [#allocation5], 1
    %s3235 = scalar_lea.sflag [#allocation5], 1
    %3236 = vsyncpa %s3235, 1

</llo_original>
